<compile_context>
chip_gen: v5e
topology: v5e:2x2
jax: 0.10.0
libtpu: 0.0.40
codegen_flags: <defaults>
</compile_context>

<pallas_src>
import functools

import jax
import jax.numpy as jnp
from jax import lax
from jax.experimental import pallas as pl
from jax.experimental.pallas import tpu as pltpu


# --------------------------------------------------------------------------------------
# K1+K2 fused: farthest point sampling + anchor gather + square_distance + ball query
# --------------------------------------------------------------------------------------
def fps_ball_query_kernel(start_ref, xyzt_ref, new_xyz_ref, fps_ref, idx_ref, *,
                          radius, nsample):
    # start_ref:   (B,)      int32 SMEM (scalar prefetch) -- random initial FPS index
    # xyzt_ref:    (1, 3, N) f32   -- xyz transposed so N sits on the lane axis
    # new_xyz_ref: (1, S, 3) f32   (output)
    # fps_ref:     (1, S, 1) int32 (output) -- sampled anchor indices
    # idx_ref:     (1, S, K) int32 (output) -- ball-query neighbor indices
    b = pl.program_id(0)
    N = xyzt_ref.shape[2]
    S = fps_ref.shape[1]

    xt = xyzt_ref[0].astype(jnp.float32)                         # (3, N)
    lane_iota1 = lax.broadcasted_iota(jnp.int32, (1, N), 1)      # point ids on lanes
    sub_iota = lax.broadcasted_iota(jnp.int32, (S, 1), 0)        # output slots

    # ---- farthest point sampling (sequential; distance vector stays on-chip) --------
    def body(i, carry):
        farthest, dist, selected = carry
        selected = jnp.where(sub_iota == i, farthest, selected)  # centroids[:, i]
        onehot = (lane_iota1 == farthest).astype(jnp.float32)    # (1, N)
        centroid = jnp.sum(xt * onehot, axis=1, keepdims=True)   # (3, 1) exact select
        diff = xt - centroid
        d = jnp.sum(diff * diff, axis=0, keepdims=True)          # (1, N)
        dist = jnp.minimum(dist, d)
        m = jnp.max(dist)                                        # argmax (first on ties)
        farthest = jnp.min(jnp.where(dist == m, lane_iota1, N)).astype(jnp.int32)
        return farthest, dist, selected

    init = (start_ref[b],
            jnp.full((1, N), 1e10, dtype=jnp.float32),
            jnp.zeros((S, 1), jnp.int32))
    _, _, selected = lax.fori_loop(0, S, body, init, unroll=S <= 64)
    fps_ref[0] = selected

    # ---- new_xyz = index_points(xyz, fps_idx): exact one-hot MXU gather --------------
    n_iota = lax.broadcasted_iota(jnp.int32, (S, N), 1)
    onehot_fps = (selected == n_iota).astype(jnp.float32)        # (S, N)
    q = lax.dot_general(onehot_fps, xt, (((1,), (1,)), ((), ())),
                        precision=lax.Precision.HIGHEST,
                        preferred_element_type=jnp.float32)      # (S, 3)
    new_xyz_ref[0] = q.astype(new_xyz_ref.dtype)

    # ---- square_distance(new_xyz, xyz): one MXU matmul + broadcast adds --------------
    qx = jnp.dot(q, xt, precision=lax.Precision.HIGHEST,
                 preferred_element_type=jnp.float32)             # (S, N)
    sq_q = jnp.sum(q * q, axis=1, keepdims=True)                 # (S, 1)
    sq_x = jnp.sum(xt * xt, axis=0, keepdims=True)               # (1, N)
    d = sq_q + sq_x - 2.0 * qx                                   # (S, N)

    # ---- query_ball_point: indices within radius, ascending, first nsample, pad ------
    cur = jnp.where(d <= radius * radius, n_iota, N)
    cols = []
    for _ in range(nsample):                 # nsample is small & static -> unrolled
        m = jnp.min(cur, axis=1, keepdims=True)                  # (S, 1)
        cols.append(m)
        cur = jnp.where(cur == m, N, cur)
    idx = jnp.concatenate(cols, axis=1)                          # (S, K)
    idx = jnp.where(idx == N, cols[0], idx)                      # group_first padding
    idx_ref[0] = idx.astype(jnp.int32)


# --------------------------------------------------------------------------------------
# K3: grouped gathers (neighbors + repeated anchor) via one-hot MXU matmuls
# --------------------------------------------------------------------------------------
def group_concat_kernel(idx_ref, fpsrep_ref, feats_ref, out_ref, *, d_points):
    # idx_ref:    (1, S*K, 1)   int32   neighbor indices (row r = s*K + k)
    # fpsrep_ref: (1, S*K, 1)   int32   anchor index repeated K times
    # feats_ref:  (1, N, D[+3]) f32     [points | xyz] (xyz appended iff use_xyz)
    # out_ref:    (1, S*K, C)   f32     C = 2*D + 3 if use_xyz else 2*D
    SK = idx_ref.shape[1]
    N = feats_ref.shape[1]

    f = feats_ref[0].astype(jnp.float32)                         # (N, D[+3])
    p = f[:, :d_points]                                          # (N, D) points only
    n_iota = lax.broadcasted_iota(jnp.int32, (SK, N), 1)
    oh = (idx_ref[0] == n_iota).astype(jnp.float32)              # (S*K, N)
    oh_anchor = (fpsrep_ref[0] == n_iota).astype(jnp.float32)    # (S*K, N)

    grouped = jnp.dot(oh, f, precision=lax.Precision.HIGHEST,
                      preferred_element_type=jnp.float32)        # (S*K, D[+3])
    anchor = jnp.dot(oh_anchor, p, precision=lax.Precision.HIGHEST,
                     preferred_element_type=jnp.float32)         # (S*K, D)
    out_ref[0] = jnp.concatenate([grouped, anchor], axis=1).astype(out_ref.dtype)


# --------------------------------------------------------------------------------------
# Wrapper: LocalGrouper.forward
# --------------------------------------------------------------------------------------
def local_grouper(xyz, points, *, groups, kneighbors, radius, use_xyz=True,
                  normalize="anchor", start_key=None):
    """xyz: (B, N, 3), points: (B, N, D).
    Returns new_xyz (B, S, 3), new_points (B, S, K, 2D+3) (or 2D if not use_xyz).
    `normalize` / affine_alpha / affine_beta exist on the module but are not used by
    this forward() variant, so they are accepted and ignored."""
    del normalize
    B, N, _ = xyz.shape
    D = points.shape[2]
    S, K = groups, kneighbors
    c_out = 2 * D + (3 if use_xyz else 0)

    if start_key is None:
        start_key = jax.random.PRNGKey(0)
    # torch.randint(0, N, (B,)) initial FPS seed, made deterministic via JAX PRNG.
    start = jax.random.randint(start_key, (B,), 0, N, dtype=jnp.int32)

    xyz32 = xyz.astype(jnp.float32)
    pts32 = points.astype(jnp.float32)
    # Tiny layout glue: put N on the lane axis for the distance-heavy kernel, and build
    # the [points | xyz] feature slab once so the grouped gather is a single matmul.
    xyz_t = jnp.transpose(xyz32, (0, 2, 1))                      # (B, 3, N)
    feats = jnp.concatenate([pts32, xyz32], axis=-1) if use_xyz else pts32
    Df = feats.shape[2]

    parallel = pltpu.CompilerParams(dimension_semantics=("parallel",))

    # --- K1+K2: FPS + anchor gather + square distance + ball query ---------------------
    new_xyz, fps_idx, idx = pl.pallas_call(
        functools.partial(fps_ball_query_kernel, radius=float(radius), nsample=K),
        out_shape=(jax.ShapeDtypeStruct((B, S, 3), jnp.float32),
                   jax.ShapeDtypeStruct((B, S, 1), jnp.int32),
                   jax.ShapeDtypeStruct((B, S, K), jnp.int32)),
        grid_spec=pltpu.PrefetchScalarGridSpec(
            num_scalar_prefetch=1,
            grid=(B,),
            in_specs=[pl.BlockSpec((1, 3, N), lambda b, start: (b, 0, 0))],
            out_specs=(pl.BlockSpec((1, S, 3), lambda b, start: (b, 0, 0)),
                       pl.BlockSpec((1, S, 1), lambda b, start: (b, 0, 0)),
                       pl.BlockSpec((1, S, K), lambda b, start: (b, 0, 0)))),
        compiler_params=parallel,
    )(start, xyz_t)

    # Tiny integer glue (contiguous reshape / repeat on index tensors only).
    idx_flat = idx.reshape(B, S * K, 1)
    fps_rep = jnp.repeat(fps_idx, K, axis=1)                     # (B, S*K, 1)

    # --- K3: grouped gathers + channel concat -------------------------------------------
    new_points_flat = pl.pallas_call(
        functools.partial(group_concat_kernel, d_points=D),
        out_shape=jax.ShapeDtypeStruct((B, S * K, c_out), jnp.float32),
        grid=(B,),
        in_specs=[pl.BlockSpec((1, S * K, 1), lambda b: (b, 0, 0)),   # neighbor idx
                  pl.BlockSpec((1, S * K, 1), lambda b: (b, 0, 0)),   # anchor idx (rep.)
                  pl.BlockSpec((1, N, Df), lambda b: (b, 0, 0))],     # [points | xyz]
        out_specs=pl.BlockSpec((1, S * K, c_out), lambda b: (b, 0, 0)),
        compiler_params=parallel,
    )(idx_flat, fps_rep, feats)

    new_points = new_points_flat.reshape(B, S, K, c_out)
    return new_xyz, new_points


if __name__ == "__main__":
    # LocalGrouper(channel=4, groups=16, kneighbors=8, radius=0.3, use_xyz=True)
    B, N, D = 2, 64, 4
    groups, kneighbors = 16, 8
    radius = 0.3
    use_xyz = True

    key = jax.random.PRNGKey(0)
    kxyz, kfea, kstart = jax.random.split(key, 3)
    xyz = jax.random.uniform(kxyz, (B, N, 3), dtype=jnp.float32)
    points = jax.random.normal(kfea, (B, N, D), dtype=jnp.float32)

    fn = jax.jit(functools.partial(local_grouper, groups=groups,
                                   kneighbors=kneighbors, radius=radius,
                                   use_xyz=use_xyz))
    new_xyz, new_points = fn(xyz, points, start_key=kstart)
    jax.block_until_ready((new_xyz, new_points))

    c_out = 2 * D + (3 if use_xyz else 0)
    assert new_xyz.shape == (B, groups, 3)
    assert new_points.shape == (B, groups, kneighbors, c_out)
    assert bool(jnp.all(jnp.isfinite(new_xyz)))
    assert bool(jnp.all(jnp.isfinite(new_points)))
    # anchor features (last D channels) must be identical across the K axis
    assert bool(jnp.allclose(new_points[..., -D:], new_points[:, :, :1, -D:]))
    print("KERNEL_OK")
</pallas_src>

<mosaic_0001>
module attributes {stable_mosaic.version = 11 : i64} {
  func.func @fps_ball_query_kernel(%arg0: i32, %arg1: memref<2xi32, #tpu.memory_space<smem>>, %arg2: memref<1x3x64xf32, #tpu.memory_space<vmem>>, %arg3: memref<1x16x3xf32, #tpu.memory_space<vmem>>, %arg4: memref<1x16x1xi32, #tpu.memory_space<vmem>>, %arg5: memref<1x16x8xi32, #tpu.memory_space<vmem>>) attributes {dimension_semantics = [#tpu.dimension_semantics<parallel>], iteration_bounds = array<i64: 2>, scalar_prefetch = 1 : i64, scratch_operands = 0 : i64, tpu.core_type = #tpu.core_type<tc>, window_params = [{transform_indices = @transform_0, window_bounds = array<i64: 1, 3, 64>}, {transform_indices = @transform_1, window_bounds = array<i64: 1, 16, 3>}, {transform_indices = @transform_2, window_bounds = array<i64: 1, 16, 1>}, {transform_indices = @transform_3, window_bounds = array<i64: 1, 16, 8>}]} {
    %c0 = arith.constant 0 : index
    %c0_0 = arith.constant 0 : index
    %c0_1 = arith.constant 0 : index
    %0 = vector.load %arg2[%c0, %c0_0, %c0_1] : memref<1x3x64xf32, #tpu.memory_space<vmem>>, vector<1x3x64xf32>
    %1 = vector.shape_cast %0 : vector<1x3x64xf32> to vector<3x64xf32>
    %2 = tpu.iota {dimensions = array<i32: 1>} : vector<1x64xi32>
    %3 = tpu.iota {dimensions = array<i32: 0>} : vector<16x1xi32>
    %4 = arith.index_cast %arg0 : i32 to index
    %5 = memref.load %arg1[%4] : memref<2xi32, #tpu.memory_space<smem>>
    %cst = arith.constant 1.000000e+10 : f32
    %6 = vector.broadcast %cst : f32 to vector<1x64xf32>
    %c0_i32 = arith.constant 0 : i32
    %7 = vector.broadcast %c0_i32 : i32 to vector<16x1xi32>
    %c0_i32_2 = arith.constant 0 : i32
    %8 = vector.broadcast %c0_i32_2 : i32 to vector<16x1xi32>
    %9 = arith.cmpi eq, %3, %8 : vector<16x1xi32>
    %10 = vector.broadcast %5 : i32 to vector<16x1xi32>
    %11 = arith.select %9, %10, %7 : vector<16x1xi1>, vector<16x1xi32>
    %12 = vector.broadcast %5 : i32 to vector<1x64xi32>
    %13 = arith.cmpi eq, %2, %12 : vector<1x64xi32>
    %14 = arith.extui %13 : vector<1x64xi1> to vector<1x64xi32>
    %15 = arith.sitofp %14 : vector<1x64xi32> to vector<1x64xf32>
    %16 = vector.broadcast %15 : vector<1x64xf32> to vector<3x64xf32>
    %17 = arith.mulf %1, %16 : vector<3x64xf32>
    %cst_3 = arith.constant dense<0.000000e+00> : vector<3xf32>
    %18 = vector.multi_reduction <add>, %17, %cst_3 [1] : vector<3x64xf32> to vector<3xf32>
    %19 = vector.shape_cast %18 : vector<3xf32> to vector<3x1xf32>
    %20 = vector.broadcast %19 : vector<3x1xf32> to vector<3x64xf32>
    %21 = arith.subf %1, %20 : vector<3x64xf32>
    %22 = arith.mulf %21, %21 : vector<3x64xf32>
    %cst_4 = arith.constant dense<0.000000e+00> : vector<64xf32>
    %23 = vector.multi_reduction <add>, %22, %cst_4 [0] : vector<3x64xf32> to vector<64xf32>
    %24 = vector.shape_cast %23 : vector<64xf32> to vector<1x64xf32>
    %25 = arith.minimumf %6, %24 : vector<1x64xf32>
    %26 = vector.shape_cast %25 : vector<1x64xf32> to vector<1x1x64xf32>
    %cst_5 = arith.constant dense<0xFF800000> : vector<1xf32>
    %27 = vector.multi_reduction <maximumf>, %26, %cst_5 [1, 2] : vector<1x1x64xf32> to vector<1xf32>
    %28 = vector.shape_cast %27 : vector<1xf32> to vector<1x1x1xf32>
    %29 = vector.extract %28[0, 0, 0] : f32 from vector<1x1x1xf32>
    %30 = vector.broadcast %29 : f32 to vector<1x64xf32>
    %31 = arith.cmpf oeq, %25, %30 : vector<1x64xf32>
    %c64_i32 = arith.constant 64 : i32
    %32 = vector.broadcast %c64_i32 : i32 to vector<1x64xi32>
    %33 = arith.select %31, %2, %32 : vector<1x64xi1>, vector<1x64xi32>
    %34 = vector.shape_cast %33 : vector<1x64xi32> to vector<1x1x64xi32>
    %cst_6 = arith.constant dense<2147483647> : vector<1xi32>
    %35 = vector.multi_reduction <minsi>, %34, %cst_6 [1, 2] : vector<1x1x64xi32> to vector<1xi32>
    %36 = vector.shape_cast %35 : vector<1xi32> to vector<1x1x1xi32>
    %37 = vector.extract %36[0, 0, 0] : i32 from vector<1x1x1xi32>
    %c1_i32 = arith.constant 1 : i32
    %38 = vector.broadcast %c1_i32 : i32 to vector<16x1xi32>
    %39 = arith.cmpi eq, %3, %38 : vector<16x1xi32>
    %40 = vector.broadcast %37 : i32 to vector<16x1xi32>
    %41 = arith.select %39, %40, %11 : vector<16x1xi1>, vector<16x1xi32>
    %42 = vector.broadcast %37 : i32 to vector<1x64xi32>
    %43 = arith.cmpi eq, %2, %42 : vector<1x64xi32>
    %44 = arith.extui %43 : vector<1x64xi1> to vector<1x64xi32>
    %45 = arith.sitofp %44 : vector<1x64xi32> to vector<1x64xf32>
    %46 = vector.broadcast %45 : vector<1x64xf32> to vector<3x64xf32>
    %47 = arith.mulf %1, %46 : vector<3x64xf32>
    %cst_7 = arith.constant dense<0.000000e+00> : vector<3xf32>
    %48 = vector.multi_reduction <add>, %47, %cst_7 [1] : vector<3x64xf32> to vector<3xf32>
    %49 = vector.shape_cast %48 : vector<3xf32> to vector<3x1xf32>
    %50 = vector.broadcast %49 : vector<3x1xf32> to vector<3x64xf32>
    %51 = arith.subf %1, %50 : vector<3x64xf32>
    %52 = arith.mulf %51, %51 : vector<3x64xf32>
    %cst_8 = arith.constant dense<0.000000e+00> : vector<64xf32>
    %53 = vector.multi_reduction <add>, %52, %cst_8 [0] : vector<3x64xf32> to vector<64xf32>
    %54 = vector.shape_cast %53 : vector<64xf32> to vector<1x64xf32>
    %55 = arith.minimumf %25, %54 : vector<1x64xf32>
    %56 = vector.shape_cast %55 : vector<1x64xf32> to vector<1x1x64xf32>
    %cst_9 = arith.constant dense<0xFF800000> : vector<1xf32>
    %57 = vector.multi_reduction <maximumf>, %56, %cst_9 [1, 2] : vector<1x1x64xf32> to vector<1xf32>
    %58 = vector.shape_cast %57 : vector<1xf32> to vector<1x1x1xf32>
    %59 = vector.extract %58[0, 0, 0] : f32 from vector<1x1x1xf32>
    %60 = vector.broadcast %59 : f32 to vector<1x64xf32>
    %61 = arith.cmpf oeq, %55, %60 : vector<1x64xf32>
    %c64_i32_10 = arith.constant 64 : i32
    %62 = vector.broadcast %c64_i32_10 : i32 to vector<1x64xi32>
    %63 = arith.select %61, %2, %62 : vector<1x64xi1>, vector<1x64xi32>
    %64 = vector.shape_cast %63 : vector<1x64xi32> to vector<1x1x64xi32>
    %cst_11 = arith.constant dense<2147483647> : vector<1xi32>
    %65 = vector.multi_reduction <minsi>, %64, %cst_11 [1, 2] : vector<1x1x64xi32> to vector<1xi32>
    %66 = vector.shape_cast %65 : vector<1xi32> to vector<1x1x1xi32>
    %67 = vector.extract %66[0, 0, 0] : i32 from vector<1x1x1xi32>
    %c2_i32 = arith.constant 2 : i32
    %68 = vector.broadcast %c2_i32 : i32 to vector<16x1xi32>
    %69 = arith.cmpi eq, %3, %68 : vector<16x1xi32>
    %70 = vector.broadcast %67 : i32 to vector<16x1xi32>
    %71 = arith.select %69, %70, %41 : vector<16x1xi1>, vector<16x1xi32>
    %72 = vector.broadcast %67 : i32 to vector<1x64xi32>
    %73 = arith.cmpi eq, %2, %72 : vector<1x64xi32>
    %74 = arith.extui %73 : vector<1x64xi1> to vector<1x64xi32>
    %75 = arith.sitofp %74 : vector<1x64xi32> to vector<1x64xf32>
    %76 = vector.broadcast %75 : vector<1x64xf32> to vector<3x64xf32>
    %77 = arith.mulf %1, %76 : vector<3x64xf32>
    %cst_12 = arith.constant dense<0.000000e+00> : vector<3xf32>
    %78 = vector.multi_reduction <add>, %77, %cst_12 [1] : vector<3x64xf32> to vector<3xf32>
    %79 = vector.shape_cast %78 : vector<3xf32> to vector<3x1xf32>
    %80 = vector.broadcast %79 : vector<3x1xf32> to vector<3x64xf32>
    %81 = arith.subf %1, %80 : vector<3x64xf32>
    %82 = arith.mulf %81, %81 : vector<3x64xf32>
    %cst_13 = arith.constant dense<0.000000e+00> : vector<64xf32>
    %83 = vector.multi_reduction <add>, %82, %cst_13 [0] : vector<3x64xf32> to vector<64xf32>
    %84 = vector.shape_cast %83 : vector<64xf32> to vector<1x64xf32>
    %85 = arith.minimumf %55, %84 : vector<1x64xf32>
    %86 = vector.shape_cast %85 : vector<1x64xf32> to vector<1x1x64xf32>
    %cst_14 = arith.constant dense<0xFF800000> : vector<1xf32>
    %87 = vector.multi_reduction <maximumf>, %86, %cst_14 [1, 2] : vector<1x1x64xf32> to vector<1xf32>
    %88 = vector.shape_cast %87 : vector<1xf32> to vector<1x1x1xf32>
    %89 = vector.extract %88[0, 0, 0] : f32 from vector<1x1x1xf32>
    %90 = vector.broadcast %89 : f32 to vector<1x64xf32>
    %91 = arith.cmpf oeq, %85, %90 : vector<1x64xf32>
    %c64_i32_15 = arith.constant 64 : i32
    %92 = vector.broadcast %c64_i32_15 : i32 to vector<1x64xi32>
    %93 = arith.select %91, %2, %92 : vector<1x64xi1>, vector<1x64xi32>
    %94 = vector.shape_cast %93 : vector<1x64xi32> to vector<1x1x64xi32>
    %cst_16 = arith.constant dense<2147483647> : vector<1xi32>
    %95 = vector.multi_reduction <minsi>, %94, %cst_16 [1, 2] : vector<1x1x64xi32> to vector<1xi32>
    %96 = vector.shape_cast %95 : vector<1xi32> to vector<1x1x1xi32>
    %97 = vector.extract %96[0, 0, 0] : i32 from vector<1x1x1xi32>
    %c3_i32 = arith.constant 3 : i32
    %98 = vector.broadcast %c3_i32 : i32 to vector<16x1xi32>
    %99 = arith.cmpi eq, %3, %98 : vector<16x1xi32>
    %100 = vector.broadcast %97 : i32 to vector<16x1xi32>
    %101 = arith.select %99, %100, %71 : vector<16x1xi1>, vector<16x1xi32>
    %102 = vector.broadcast %97 : i32 to vector<1x64xi32>
    %103 = arith.cmpi eq, %2, %102 : vector<1x64xi32>
    %104 = arith.extui %103 : vector<1x64xi1> to vector<1x64xi32>
    %105 = arith.sitofp %104 : vector<1x64xi32> to vector<1x64xf32>
    %106 = vector.broadcast %105 : vector<1x64xf32> to vector<3x64xf32>
    %107 = arith.mulf %1, %106 : vector<3x64xf32>
    %cst_17 = arith.constant dense<0.000000e+00> : vector<3xf32>
    %108 = vector.multi_reduction <add>, %107, %cst_17 [1] : vector<3x64xf32> to vector<3xf32>
    %109 = vector.shape_cast %108 : vector<3xf32> to vector<3x1xf32>
    %110 = vector.broadcast %109 : vector<3x1xf32> to vector<3x64xf32>
    %111 = arith.subf %1, %110 : vector<3x64xf32>
    %112 = arith.mulf %111, %111 : vector<3x64xf32>
    %cst_18 = arith.constant dense<0.000000e+00> : vector<64xf32>
    %113 = vector.multi_reduction <add>, %112, %cst_18 [0] : vector<3x64xf32> to vector<64xf32>
    %114 = vector.shape_cast %113 : vector<64xf32> to vector<1x64xf32>
    %115 = arith.minimumf %85, %114 : vector<1x64xf32>
    %116 = vector.shape_cast %115 : vector<1x64xf32> to vector<1x1x64xf32>
    %cst_19 = arith.constant dense<0xFF800000> : vector<1xf32>
    %117 = vector.multi_reduction <maximumf>, %116, %cst_19 [1, 2] : vector<1x1x64xf32> to vector<1xf32>
    %118 = vector.shape_cast %117 : vector<1xf32> to vector<1x1x1xf32>
    %119 = vector.extract %118[0, 0, 0] : f32 from vector<1x1x1xf32>
    %120 = vector.broadcast %119 : f32 to vector<1x64xf32>
    %121 = arith.cmpf oeq, %115, %120 : vector<1x64xf32>
    %c64_i32_20 = arith.constant 64 : i32
    %122 = vector.broadcast %c64_i32_20 : i32 to vector<1x64xi32>
    %123 = arith.select %121, %2, %122 : vector<1x64xi1>, vector<1x64xi32>
    %124 = vector.shape_cast %123 : vector<1x64xi32> to vector<1x1x64xi32>
    %cst_21 = arith.constant dense<2147483647> : vector<1xi32>
    %125 = vector.multi_reduction <minsi>, %124, %cst_21 [1, 2] : vector<1x1x64xi32> to vector<1xi32>
    %126 = vector.shape_cast %125 : vector<1xi32> to vector<1x1x1xi32>
    %127 = vector.extract %126[0, 0, 0] : i32 from vector<1x1x1xi32>
    %c4_i32 = arith.constant 4 : i32
    %128 = vector.broadcast %c4_i32 : i32 to vector<16x1xi32>
    %129 = arith.cmpi eq, %3, %128 : vector<16x1xi32>
    %130 = vector.broadcast %127 : i32 to vector<16x1xi32>
    %131 = arith.select %129, %130, %101 : vector<16x1xi1>, vector<16x1xi32>
    %132 = vector.broadcast %127 : i32 to vector<1x64xi32>
    %133 = arith.cmpi eq, %2, %132 : vector<1x64xi32>
    %134 = arith.extui %133 : vector<1x64xi1> to vector<1x64xi32>
    %135 = arith.sitofp %134 : vector<1x64xi32> to vector<1x64xf32>
    %136 = vector.broadcast %135 : vector<1x64xf32> to vector<3x64xf32>
    %137 = arith.mulf %1, %136 : vector<3x64xf32>
    %cst_22 = arith.constant dense<0.000000e+00> : vector<3xf32>
    %138 = vector.multi_reduction <add>, %137, %cst_22 [1] : vector<3x64xf32> to vector<3xf32>
    %139 = vector.shape_cast %138 : vector<3xf32> to vector<3x1xf32>
    %140 = vector.broadcast %139 : vector<3x1xf32> to vector<3x64xf32>
    %141 = arith.subf %1, %140 : vector<3x64xf32>
    %142 = arith.mulf %141, %141 : vector<3x64xf32>
    %cst_23 = arith.constant dense<0.000000e+00> : vector<64xf32>
    %143 = vector.multi_reduction <add>, %142, %cst_23 [0] : vector<3x64xf32> to vector<64xf32>
    %144 = vector.shape_cast %143 : vector<64xf32> to vector<1x64xf32>
    %145 = arith.minimumf %115, %144 : vector<1x64xf32>
    %146 = vector.shape_cast %145 : vector<1x64xf32> to vector<1x1x64xf32>
    %cst_24 = arith.constant dense<0xFF800000> : vector<1xf32>
    %147 = vector.multi_reduction <maximumf>, %146, %cst_24 [1, 2] : vector<1x1x64xf32> to vector<1xf32>
    %148 = vector.shape_cast %147 : vector<1xf32> to vector<1x1x1xf32>
    %149 = vector.extract %148[0, 0, 0] : f32 from vector<1x1x1xf32>
    %150 = vector.broadcast %149 : f32 to vector<1x64xf32>
    %151 = arith.cmpf oeq, %145, %150 : vector<1x64xf32>
    %c64_i32_25 = arith.constant 64 : i32
    %152 = vector.broadcast %c64_i32_25 : i32 to vector<1x64xi32>
    %153 = arith.select %151, %2, %152 : vector<1x64xi1>, vector<1x64xi32>
    %154 = vector.shape_cast %153 : vector<1x64xi32> to vector<1x1x64xi32>
    %cst_26 = arith.constant dense<2147483647> : vector<1xi32>
    %155 = vector.multi_reduction <minsi>, %154, %cst_26 [1, 2] : vector<1x1x64xi32> to vector<1xi32>
    %156 = vector.shape_cast %155 : vector<1xi32> to vector<1x1x1xi32>
    %157 = vector.extract %156[0, 0, 0] : i32 from vector<1x1x1xi32>
    %c5_i32 = arith.constant 5 : i32
    %158 = vector.broadcast %c5_i32 : i32 to vector<16x1xi32>
    %159 = arith.cmpi eq, %3, %158 : vector<16x1xi32>
    %160 = vector.broadcast %157 : i32 to vector<16x1xi32>
    %161 = arith.select %159, %160, %131 : vector<16x1xi1>, vector<16x1xi32>
    %162 = vector.broadcast %157 : i32 to vector<1x64xi32>
    %163 = arith.cmpi eq, %2, %162 : vector<1x64xi32>
    %164 = arith.extui %163 : vector<1x64xi1> to vector<1x64xi32>
    %165 = arith.sitofp %164 : vector<1x64xi32> to vector<1x64xf32>
    %166 = vector.broadcast %165 : vector<1x64xf32> to vector<3x64xf32>
    %167 = arith.mulf %1, %166 : vector<3x64xf32>
    %cst_27 = arith.constant dense<0.000000e+00> : vector<3xf32>
    %168 = vector.multi_reduction <add>, %167, %cst_27 [1] : vector<3x64xf32> to vector<3xf32>
    %169 = vector.shape_cast %168 : vector<3xf32> to vector<3x1xf32>
    %170 = vector.broadcast %169 : vector<3x1xf32> to vector<3x64xf32>
    %171 = arith.subf %1, %170 : vector<3x64xf32>
    %172 = arith.mulf %171, %171 : vector<3x64xf32>
    %cst_28 = arith.constant dense<0.000000e+00> : vector<64xf32>
    %173 = vector.multi_reduction <add>, %172, %cst_28 [0] : vector<3x64xf32> to vector<64xf32>
    %174 = vector.shape_cast %173 : vector<64xf32> to vector<1x64xf32>
    %175 = arith.minimumf %145, %174 : vector<1x64xf32>
    %176 = vector.shape_cast %175 : vector<1x64xf32> to vector<1x1x64xf32>
    %cst_29 = arith.constant dense<0xFF800000> : vector<1xf32>
    %177 = vector.multi_reduction <maximumf>, %176, %cst_29 [1, 2] : vector<1x1x64xf32> to vector<1xf32>
    %178 = vector.shape_cast %177 : vector<1xf32> to vector<1x1x1xf32>
    %179 = vector.extract %178[0, 0, 0] : f32 from vector<1x1x1xf32>
    %180 = vector.broadcast %179 : f32 to vector<1x64xf32>
    %181 = arith.cmpf oeq, %175, %180 : vector<1x64xf32>
    %c64_i32_30 = arith.constant 64 : i32
    %182 = vector.broadcast %c64_i32_30 : i32 to vector<1x64xi32>
    %183 = arith.select %181, %2, %182 : vector<1x64xi1>, vector<1x64xi32>
    %184 = vector.shape_cast %183 : vector<1x64xi32> to vector<1x1x64xi32>
    %cst_31 = arith.constant dense<2147483647> : vector<1xi32>
    %185 = vector.multi_reduction <minsi>, %184, %cst_31 [1, 2] : vector<1x1x64xi32> to vector<1xi32>
    %186 = vector.shape_cast %185 : vector<1xi32> to vector<1x1x1xi32>
    %187 = vector.extract %186[0, 0, 0] : i32 from vector<1x1x1xi32>
    %c6_i32 = arith.constant 6 : i32
    %188 = vector.broadcast %c6_i32 : i32 to vector<16x1xi32>
    %189 = arith.cmpi eq, %3, %188 : vector<16x1xi32>
    %190 = vector.broadcast %187 : i32 to vector<16x1xi32>
    %191 = arith.select %189, %190, %161 : vector<16x1xi1>, vector<16x1xi32>
    %192 = vector.broadcast %187 : i32 to vector<1x64xi32>
    %193 = arith.cmpi eq, %2, %192 : vector<1x64xi32>
    %194 = arith.extui %193 : vector<1x64xi1> to vector<1x64xi32>
    %195 = arith.sitofp %194 : vector<1x64xi32> to vector<1x64xf32>
    %196 = vector.broadcast %195 : vector<1x64xf32> to vector<3x64xf32>
    %197 = arith.mulf %1, %196 : vector<3x64xf32>
    %cst_32 = arith.constant dense<0.000000e+00> : vector<3xf32>
    %198 = vector.multi_reduction <add>, %197, %cst_32 [1] : vector<3x64xf32> to vector<3xf32>
    %199 = vector.shape_cast %198 : vector<3xf32> to vector<3x1xf32>
    %200 = vector.broadcast %199 : vector<3x1xf32> to vector<3x64xf32>
    %201 = arith.subf %1, %200 : vector<3x64xf32>
    %202 = arith.mulf %201, %201 : vector<3x64xf32>
    %cst_33 = arith.constant dense<0.000000e+00> : vector<64xf32>
    %203 = vector.multi_reduction <add>, %202, %cst_33 [0] : vector<3x64xf32> to vector<64xf32>
    %204 = vector.shape_cast %203 : vector<64xf32> to vector<1x64xf32>
    %205 = arith.minimumf %175, %204 : vector<1x64xf32>
    %206 = vector.shape_cast %205 : vector<1x64xf32> to vector<1x1x64xf32>
    %cst_34 = arith.constant dense<0xFF800000> : vector<1xf32>
    %207 = vector.multi_reduction <maximumf>, %206, %cst_34 [1, 2] : vector<1x1x64xf32> to vector<1xf32>
    %208 = vector.shape_cast %207 : vector<1xf32> to vector<1x1x1xf32>
    %209 = vector.extract %208[0, 0, 0] : f32 from vector<1x1x1xf32>
    %210 = vector.broadcast %209 : f32 to vector<1x64xf32>
    %211 = arith.cmpf oeq, %205, %210 : vector<1x64xf32>
    %c64_i32_35 = arith.constant 64 : i32
    %212 = vector.broadcast %c64_i32_35 : i32 to vector<1x64xi32>
    %213 = arith.select %211, %2, %212 : vector<1x64xi1>, vector<1x64xi32>
    %214 = vector.shape_cast %213 : vector<1x64xi32> to vector<1x1x64xi32>
    %cst_36 = arith.constant dense<2147483647> : vector<1xi32>
    %215 = vector.multi_reduction <minsi>, %214, %cst_36 [1, 2] : vector<1x1x64xi32> to vector<1xi32>
    %216 = vector.shape_cast %215 : vector<1xi32> to vector<1x1x1xi32>
    %217 = vector.extract %216[0, 0, 0] : i32 from vector<1x1x1xi32>
    %c7_i32 = arith.constant 7 : i32
    %218 = vector.broadcast %c7_i32 : i32 to vector<16x1xi32>
    %219 = arith.cmpi eq, %3, %218 : vector<16x1xi32>
    %220 = vector.broadcast %217 : i32 to vector<16x1xi32>
    %221 = arith.select %219, %220, %191 : vector<16x1xi1>, vector<16x1xi32>
    %222 = vector.broadcast %217 : i32 to vector<1x64xi32>
    %223 = arith.cmpi eq, %2, %222 : vector<1x64xi32>
    %224 = arith.extui %223 : vector<1x64xi1> to vector<1x64xi32>
    %225 = arith.sitofp %224 : vector<1x64xi32> to vector<1x64xf32>
    %226 = vector.broadcast %225 : vector<1x64xf32> to vector<3x64xf32>
    %227 = arith.mulf %1, %226 : vector<3x64xf32>
    %cst_37 = arith.constant dense<0.000000e+00> : vector<3xf32>
    %228 = vector.multi_reduction <add>, %227, %cst_37 [1] : vector<3x64xf32> to vector<3xf32>
    %229 = vector.shape_cast %228 : vector<3xf32> to vector<3x1xf32>
    %230 = vector.broadcast %229 : vector<3x1xf32> to vector<3x64xf32>
    %231 = arith.subf %1, %230 : vector<3x64xf32>
    %232 = arith.mulf %231, %231 : vector<3x64xf32>
    %cst_38 = arith.constant dense<0.000000e+00> : vector<64xf32>
    %233 = vector.multi_reduction <add>, %232, %cst_38 [0] : vector<3x64xf32> to vector<64xf32>
    %234 = vector.shape_cast %233 : vector<64xf32> to vector<1x64xf32>
    %235 = arith.minimumf %205, %234 : vector<1x64xf32>
    %236 = vector.shape_cast %235 : vector<1x64xf32> to vector<1x1x64xf32>
    %cst_39 = arith.constant dense<0xFF800000> : vector<1xf32>
    %237 = vector.multi_reduction <maximumf>, %236, %cst_39 [1, 2] : vector<1x1x64xf32> to vector<1xf32>
    %238 = vector.shape_cast %237 : vector<1xf32> to vector<1x1x1xf32>
    %239 = vector.extract %238[0, 0, 0] : f32 from vector<1x1x1xf32>
    %240 = vector.broadcast %239 : f32 to vector<1x64xf32>
    %241 = arith.cmpf oeq, %235, %240 : vector<1x64xf32>
    %c64_i32_40 = arith.constant 64 : i32
    %242 = vector.broadcast %c64_i32_40 : i32 to vector<1x64xi32>
    %243 = arith.select %241, %2, %242 : vector<1x64xi1>, vector<1x64xi32>
    %244 = vector.shape_cast %243 : vector<1x64xi32> to vector<1x1x64xi32>
    %cst_41 = arith.constant dense<2147483647> : vector<1xi32>
    %245 = vector.multi_reduction <minsi>, %244, %cst_41 [1, 2] : vector<1x1x64xi32> to vector<1xi32>
    %246 = vector.shape_cast %245 : vector<1xi32> to vector<1x1x1xi32>
    %247 = vector.extract %246[0, 0, 0] : i32 from vector<1x1x1xi32>
    %c8_i32 = arith.constant 8 : i32
    %248 = vector.broadcast %c8_i32 : i32 to vector<16x1xi32>
    %249 = arith.cmpi eq, %3, %248 : vector<16x1xi32>
    %250 = vector.broadcast %247 : i32 to vector<16x1xi32>
    %251 = arith.select %249, %250, %221 : vector<16x1xi1>, vector<16x1xi32>
    %252 = vector.broadcast %247 : i32 to vector<1x64xi32>
    %253 = arith.cmpi eq, %2, %252 : vector<1x64xi32>
    %254 = arith.extui %253 : vector<1x64xi1> to vector<1x64xi32>
    %255 = arith.sitofp %254 : vector<1x64xi32> to vector<1x64xf32>
    %256 = vector.broadcast %255 : vector<1x64xf32> to vector<3x64xf32>
    %257 = arith.mulf %1, %256 : vector<3x64xf32>
    %cst_42 = arith.constant dense<0.000000e+00> : vector<3xf32>
    %258 = vector.multi_reduction <add>, %257, %cst_42 [1] : vector<3x64xf32> to vector<3xf32>
    %259 = vector.shape_cast %258 : vector<3xf32> to vector<3x1xf32>
    %260 = vector.broadcast %259 : vector<3x1xf32> to vector<3x64xf32>
    %261 = arith.subf %1, %260 : vector<3x64xf32>
    %262 = arith.mulf %261, %261 : vector<3x64xf32>
    %cst_43 = arith.constant dense<0.000000e+00> : vector<64xf32>
    %263 = vector.multi_reduction <add>, %262, %cst_43 [0] : vector<3x64xf32> to vector<64xf32>
    %264 = vector.shape_cast %263 : vector<64xf32> to vector<1x64xf32>
    %265 = arith.minimumf %235, %264 : vector<1x64xf32>
    %266 = vector.shape_cast %265 : vector<1x64xf32> to vector<1x1x64xf32>
    %cst_44 = arith.constant dense<0xFF800000> : vector<1xf32>
    %267 = vector.multi_reduction <maximumf>, %266, %cst_44 [1, 2] : vector<1x1x64xf32> to vector<1xf32>
    %268 = vector.shape_cast %267 : vector<1xf32> to vector<1x1x1xf32>
    %269 = vector.extract %268[0, 0, 0] : f32 from vector<1x1x1xf32>
    %270 = vector.broadcast %269 : f32 to vector<1x64xf32>
    %271 = arith.cmpf oeq, %265, %270 : vector<1x64xf32>
    %c64_i32_45 = arith.constant 64 : i32
    %272 = vector.broadcast %c64_i32_45 : i32 to vector<1x64xi32>
    %273 = arith.select %271, %2, %272 : vector<1x64xi1>, vector<1x64xi32>
    %274 = vector.shape_cast %273 : vector<1x64xi32> to vector<1x1x64xi32>
    %cst_46 = arith.constant dense<2147483647> : vector<1xi32>
    %275 = vector.multi_reduction <minsi>, %274, %cst_46 [1, 2] : vector<1x1x64xi32> to vector<1xi32>
    %276 = vector.shape_cast %275 : vector<1xi32> to vector<1x1x1xi32>
    %277 = vector.extract %276[0, 0, 0] : i32 from vector<1x1x1xi32>
    %c9_i32 = arith.constant 9 : i32
    %278 = vector.broadcast %c9_i32 : i32 to vector<16x1xi32>
    %279 = arith.cmpi eq, %3, %278 : vector<16x1xi32>
    %280 = vector.broadcast %277 : i32 to vector<16x1xi32>
    %281 = arith.select %279, %280, %251 : vector<16x1xi1>, vector<16x1xi32>
    %282 = vector.broadcast %277 : i32 to vector<1x64xi32>
    %283 = arith.cmpi eq, %2, %282 : vector<1x64xi32>
    %284 = arith.extui %283 : vector<1x64xi1> to vector<1x64xi32>
    %285 = arith.sitofp %284 : vector<1x64xi32> to vector<1x64xf32>
    %286 = vector.broadcast %285 : vector<1x64xf32> to vector<3x64xf32>
    %287 = arith.mulf %1, %286 : vector<3x64xf32>
    %cst_47 = arith.constant dense<0.000000e+00> : vector<3xf32>
    %288 = vector.multi_reduction <add>, %287, %cst_47 [1] : vector<3x64xf32> to vector<3xf32>
    %289 = vector.shape_cast %288 : vector<3xf32> to vector<3x1xf32>
    %290 = vector.broadcast %289 : vector<3x1xf32> to vector<3x64xf32>
    %291 = arith.subf %1, %290 : vector<3x64xf32>
    %292 = arith.mulf %291, %291 : vector<3x64xf32>
    %cst_48 = arith.constant dense<0.000000e+00> : vector<64xf32>
    %293 = vector.multi_reduction <add>, %292, %cst_48 [0] : vector<3x64xf32> to vector<64xf32>
    %294 = vector.shape_cast %293 : vector<64xf32> to vector<1x64xf32>
    %295 = arith.minimumf %265, %294 : vector<1x64xf32>
    %296 = vector.shape_cast %295 : vector<1x64xf32> to vector<1x1x64xf32>
    %cst_49 = arith.constant dense<0xFF800000> : vector<1xf32>
    %297 = vector.multi_reduction <maximumf>, %296, %cst_49 [1, 2] : vector<1x1x64xf32> to vector<1xf32>
    %298 = vector.shape_cast %297 : vector<1xf32> to vector<1x1x1xf32>
    %299 = vector.extract %298[0, 0, 0] : f32 from vector<1x1x1xf32>
    %300 = vector.broadcast %299 : f32 to vector<1x64xf32>
    %301 = arith.cmpf oeq, %295, %300 : vector<1x64xf32>
    %c64_i32_50 = arith.constant 64 : i32
    %302 = vector.broadcast %c64_i32_50 : i32 to vector<1x64xi32>
    %303 = arith.select %301, %2, %302 : vector<1x64xi1>, vector<1x64xi32>
    %304 = vector.shape_cast %303 : vector<1x64xi32> to vector<1x1x64xi32>
    %cst_51 = arith.constant dense<2147483647> : vector<1xi32>
    %305 = vector.multi_reduction <minsi>, %304, %cst_51 [1, 2] : vector<1x1x64xi32> to vector<1xi32>
    %306 = vector.shape_cast %305 : vector<1xi32> to vector<1x1x1xi32>
    %307 = vector.extract %306[0, 0, 0] : i32 from vector<1x1x1xi32>
    %c10_i32 = arith.constant 10 : i32
    %308 = vector.broadcast %c10_i32 : i32 to vector<16x1xi32>
    %309 = arith.cmpi eq, %3, %308 : vector<16x1xi32>
    %310 = vector.broadcast %307 : i32 to vector<16x1xi32>
    %311 = arith.select %309, %310, %281 : vector<16x1xi1>, vector<16x1xi32>
    %312 = vector.broadcast %307 : i32 to vector<1x64xi32>
    %313 = arith.cmpi eq, %2, %312 : vector<1x64xi32>
    %314 = arith.extui %313 : vector<1x64xi1> to vector<1x64xi32>
    %315 = arith.sitofp %314 : vector<1x64xi32> to vector<1x64xf32>
    %316 = vector.broadcast %315 : vector<1x64xf32> to vector<3x64xf32>
    %317 = arith.mulf %1, %316 : vector<3x64xf32>
    %cst_52 = arith.constant dense<0.000000e+00> : vector<3xf32>
    %318 = vector.multi_reduction <add>, %317, %cst_52 [1] : vector<3x64xf32> to vector<3xf32>
    %319 = vector.shape_cast %318 : vector<3xf32> to vector<3x1xf32>
    %320 = vector.broadcast %319 : vector<3x1xf32> to vector<3x64xf32>
    %321 = arith.subf %1, %320 : vector<3x64xf32>
    %322 = arith.mulf %321, %321 : vector<3x64xf32>
    %cst_53 = arith.constant dense<0.000000e+00> : vector<64xf32>
    %323 = vector.multi_reduction <add>, %322, %cst_53 [0] : vector<3x64xf32> to vector<64xf32>
    %324 = vector.shape_cast %323 : vector<64xf32> to vector<1x64xf32>
    %325 = arith.minimumf %295, %324 : vector<1x64xf32>
    %326 = vector.shape_cast %325 : vector<1x64xf32> to vector<1x1x64xf32>
    %cst_54 = arith.constant dense<0xFF800000> : vector<1xf32>
    %327 = vector.multi_reduction <maximumf>, %326, %cst_54 [1, 2] : vector<1x1x64xf32> to vector<1xf32>
    %328 = vector.shape_cast %327 : vector<1xf32> to vector<1x1x1xf32>
    %329 = vector.extract %328[0, 0, 0] : f32 from vector<1x1x1xf32>
    %330 = vector.broadcast %329 : f32 to vector<1x64xf32>
    %331 = arith.cmpf oeq, %325, %330 : vector<1x64xf32>
    %c64_i32_55 = arith.constant 64 : i32
    %332 = vector.broadcast %c64_i32_55 : i32 to vector<1x64xi32>
    %333 = arith.select %331, %2, %332 : vector<1x64xi1>, vector<1x64xi32>
    %334 = vector.shape_cast %333 : vector<1x64xi32> to vector<1x1x64xi32>
    %cst_56 = arith.constant dense<2147483647> : vector<1xi32>
    %335 = vector.multi_reduction <minsi>, %334, %cst_56 [1, 2] : vector<1x1x64xi32> to vector<1xi32>
    %336 = vector.shape_cast %335 : vector<1xi32> to vector<1x1x1xi32>
    %337 = vector.extract %336[0, 0, 0] : i32 from vector<1x1x1xi32>
    %c11_i32 = arith.constant 11 : i32
    %338 = vector.broadcast %c11_i32 : i32 to vector<16x1xi32>
    %339 = arith.cmpi eq, %3, %338 : vector<16x1xi32>
    %340 = vector.broadcast %337 : i32 to vector<16x1xi32>
    %341 = arith.select %339, %340, %311 : vector<16x1xi1>, vector<16x1xi32>
    %342 = vector.broadcast %337 : i32 to vector<1x64xi32>
    %343 = arith.cmpi eq, %2, %342 : vector<1x64xi32>
    %344 = arith.extui %343 : vector<1x64xi1> to vector<1x64xi32>
    %345 = arith.sitofp %344 : vector<1x64xi32> to vector<1x64xf32>
    %346 = vector.broadcast %345 : vector<1x64xf32> to vector<3x64xf32>
    %347 = arith.mulf %1, %346 : vector<3x64xf32>
    %cst_57 = arith.constant dense<0.000000e+00> : vector<3xf32>
    %348 = vector.multi_reduction <add>, %347, %cst_57 [1] : vector<3x64xf32> to vector<3xf32>
    %349 = vector.shape_cast %348 : vector<3xf32> to vector<3x1xf32>
    %350 = vector.broadcast %349 : vector<3x1xf32> to vector<3x64xf32>
    %351 = arith.subf %1, %350 : vector<3x64xf32>
    %352 = arith.mulf %351, %351 : vector<3x64xf32>
    %cst_58 = arith.constant dense<0.000000e+00> : vector<64xf32>
    %353 = vector.multi_reduction <add>, %352, %cst_58 [0] : vector<3x64xf32> to vector<64xf32>
    %354 = vector.shape_cast %353 : vector<64xf32> to vector<1x64xf32>
    %355 = arith.minimumf %325, %354 : vector<1x64xf32>
    %356 = vector.shape_cast %355 : vector<1x64xf32> to vector<1x1x64xf32>
    %cst_59 = arith.constant dense<0xFF800000> : vector<1xf32>
    %357 = vector.multi_reduction <maximumf>, %356, %cst_59 [1, 2] : vector<1x1x64xf32> to vector<1xf32>
    %358 = vector.shape_cast %357 : vector<1xf32> to vector<1x1x1xf32>
    %359 = vector.extract %358[0, 0, 0] : f32 from vector<1x1x1xf32>
    %360 = vector.broadcast %359 : f32 to vector<1x64xf32>
    %361 = arith.cmpf oeq, %355, %360 : vector<1x64xf32>
    %c64_i32_60 = arith.constant 64 : i32
    %362 = vector.broadcast %c64_i32_60 : i32 to vector<1x64xi32>
    %363 = arith.select %361, %2, %362 : vector<1x64xi1>, vector<1x64xi32>
    %364 = vector.shape_cast %363 : vector<1x64xi32> to vector<1x1x64xi32>
    %cst_61 = arith.constant dense<2147483647> : vector<1xi32>
    %365 = vector.multi_reduction <minsi>, %364, %cst_61 [1, 2] : vector<1x1x64xi32> to vector<1xi32>
    %366 = vector.shape_cast %365 : vector<1xi32> to vector<1x1x1xi32>
    %367 = vector.extract %366[0, 0, 0] : i32 from vector<1x1x1xi32>
    %c12_i32 = arith.constant 12 : i32
    %368 = vector.broadcast %c12_i32 : i32 to vector<16x1xi32>
    %369 = arith.cmpi eq, %3, %368 : vector<16x1xi32>
    %370 = vector.broadcast %367 : i32 to vector<16x1xi32>
    %371 = arith.select %369, %370, %341 : vector<16x1xi1>, vector<16x1xi32>
    %372 = vector.broadcast %367 : i32 to vector<1x64xi32>
    %373 = arith.cmpi eq, %2, %372 : vector<1x64xi32>
    %374 = arith.extui %373 : vector<1x64xi1> to vector<1x64xi32>
    %375 = arith.sitofp %374 : vector<1x64xi32> to vector<1x64xf32>
    %376 = vector.broadcast %375 : vector<1x64xf32> to vector<3x64xf32>
    %377 = arith.mulf %1, %376 : vector<3x64xf32>
    %cst_62 = arith.constant dense<0.000000e+00> : vector<3xf32>
    %378 = vector.multi_reduction <add>, %377, %cst_62 [1] : vector<3x64xf32> to vector<3xf32>
    %379 = vector.shape_cast %378 : vector<3xf32> to vector<3x1xf32>
    %380 = vector.broadcast %379 : vector<3x1xf32> to vector<3x64xf32>
    %381 = arith.subf %1, %380 : vector<3x64xf32>
    %382 = arith.mulf %381, %381 : vector<3x64xf32>
    %cst_63 = arith.constant dense<0.000000e+00> : vector<64xf32>
    %383 = vector.multi_reduction <add>, %382, %cst_63 [0] : vector<3x64xf32> to vector<64xf32>
    %384 = vector.shape_cast %383 : vector<64xf32> to vector<1x64xf32>
    %385 = arith.minimumf %355, %384 : vector<1x64xf32>
    %386 = vector.shape_cast %385 : vector<1x64xf32> to vector<1x1x64xf32>
    %cst_64 = arith.constant dense<0xFF800000> : vector<1xf32>
    %387 = vector.multi_reduction <maximumf>, %386, %cst_64 [1, 2] : vector<1x1x64xf32> to vector<1xf32>
    %388 = vector.shape_cast %387 : vector<1xf32> to vector<1x1x1xf32>
    %389 = vector.extract %388[0, 0, 0] : f32 from vector<1x1x1xf32>
    %390 = vector.broadcast %389 : f32 to vector<1x64xf32>
    %391 = arith.cmpf oeq, %385, %390 : vector<1x64xf32>
    %c64_i32_65 = arith.constant 64 : i32
    %392 = vector.broadcast %c64_i32_65 : i32 to vector<1x64xi32>
    %393 = arith.select %391, %2, %392 : vector<1x64xi1>, vector<1x64xi32>
    %394 = vector.shape_cast %393 : vector<1x64xi32> to vector<1x1x64xi32>
    %cst_66 = arith.constant dense<2147483647> : vector<1xi32>
    %395 = vector.multi_reduction <minsi>, %394, %cst_66 [1, 2] : vector<1x1x64xi32> to vector<1xi32>
    %396 = vector.shape_cast %395 : vector<1xi32> to vector<1x1x1xi32>
    %397 = vector.extract %396[0, 0, 0] : i32 from vector<1x1x1xi32>
    %c13_i32 = arith.constant 13 : i32
    %398 = vector.broadcast %c13_i32 : i32 to vector<16x1xi32>
    %399 = arith.cmpi eq, %3, %398 : vector<16x1xi32>
    %400 = vector.broadcast %397 : i32 to vector<16x1xi32>
    %401 = arith.select %399, %400, %371 : vector<16x1xi1>, vector<16x1xi32>
    %402 = vector.broadcast %397 : i32 to vector<1x64xi32>
    %403 = arith.cmpi eq, %2, %402 : vector<1x64xi32>
    %404 = arith.extui %403 : vector<1x64xi1> to vector<1x64xi32>
    %405 = arith.sitofp %404 : vector<1x64xi32> to vector<1x64xf32>
    %406 = vector.broadcast %405 : vector<1x64xf32> to vector<3x64xf32>
    %407 = arith.mulf %1, %406 : vector<3x64xf32>
    %cst_67 = arith.constant dense<0.000000e+00> : vector<3xf32>
    %408 = vector.multi_reduction <add>, %407, %cst_67 [1] : vector<3x64xf32> to vector<3xf32>
    %409 = vector.shape_cast %408 : vector<3xf32> to vector<3x1xf32>
    %410 = vector.broadcast %409 : vector<3x1xf32> to vector<3x64xf32>
    %411 = arith.subf %1, %410 : vector<3x64xf32>
    %412 = arith.mulf %411, %411 : vector<3x64xf32>
    %cst_68 = arith.constant dense<0.000000e+00> : vector<64xf32>
    %413 = vector.multi_reduction <add>, %412, %cst_68 [0] : vector<3x64xf32> to vector<64xf32>
    %414 = vector.shape_cast %413 : vector<64xf32> to vector<1x64xf32>
    %415 = arith.minimumf %385, %414 : vector<1x64xf32>
    %416 = vector.shape_cast %415 : vector<1x64xf32> to vector<1x1x64xf32>
    %cst_69 = arith.constant dense<0xFF800000> : vector<1xf32>
    %417 = vector.multi_reduction <maximumf>, %416, %cst_69 [1, 2] : vector<1x1x64xf32> to vector<1xf32>
    %418 = vector.shape_cast %417 : vector<1xf32> to vector<1x1x1xf32>
    %419 = vector.extract %418[0, 0, 0] : f32 from vector<1x1x1xf32>
    %420 = vector.broadcast %419 : f32 to vector<1x64xf32>
    %421 = arith.cmpf oeq, %415, %420 : vector<1x64xf32>
    %c64_i32_70 = arith.constant 64 : i32
    %422 = vector.broadcast %c64_i32_70 : i32 to vector<1x64xi32>
    %423 = arith.select %421, %2, %422 : vector<1x64xi1>, vector<1x64xi32>
    %424 = vector.shape_cast %423 : vector<1x64xi32> to vector<1x1x64xi32>
    %cst_71 = arith.constant dense<2147483647> : vector<1xi32>
    %425 = vector.multi_reduction <minsi>, %424, %cst_71 [1, 2] : vector<1x1x64xi32> to vector<1xi32>
    %426 = vector.shape_cast %425 : vector<1xi32> to vector<1x1x1xi32>
    %427 = vector.extract %426[0, 0, 0] : i32 from vector<1x1x1xi32>
    %c14_i32 = arith.constant 14 : i32
    %428 = vector.broadcast %c14_i32 : i32 to vector<16x1xi32>
    %429 = arith.cmpi eq, %3, %428 : vector<16x1xi32>
    %430 = vector.broadcast %427 : i32 to vector<16x1xi32>
    %431 = arith.select %429, %430, %401 : vector<16x1xi1>, vector<16x1xi32>
    %432 = vector.broadcast %427 : i32 to vector<1x64xi32>
    %433 = arith.cmpi eq, %2, %432 : vector<1x64xi32>
    %434 = arith.extui %433 : vector<1x64xi1> to vector<1x64xi32>
    %435 = arith.sitofp %434 : vector<1x64xi32> to vector<1x64xf32>
    %436 = vector.broadcast %435 : vector<1x64xf32> to vector<3x64xf32>
    %437 = arith.mulf %1, %436 : vector<3x64xf32>
    %cst_72 = arith.constant dense<0.000000e+00> : vector<3xf32>
    %438 = vector.multi_reduction <add>, %437, %cst_72 [1] : vector<3x64xf32> to vector<3xf32>
    %439 = vector.shape_cast %438 : vector<3xf32> to vector<3x1xf32>
    %440 = vector.broadcast %439 : vector<3x1xf32> to vector<3x64xf32>
    %441 = arith.subf %1, %440 : vector<3x64xf32>
    %442 = arith.mulf %441, %441 : vector<3x64xf32>
    %cst_73 = arith.constant dense<0.000000e+00> : vector<64xf32>
    %443 = vector.multi_reduction <add>, %442, %cst_73 [0] : vector<3x64xf32> to vector<64xf32>
    %444 = vector.shape_cast %443 : vector<64xf32> to vector<1x64xf32>
    %445 = arith.minimumf %415, %444 : vector<1x64xf32>
    %446 = vector.shape_cast %445 : vector<1x64xf32> to vector<1x1x64xf32>
    %cst_74 = arith.constant dense<0xFF800000> : vector<1xf32>
    %447 = vector.multi_reduction <maximumf>, %446, %cst_74 [1, 2] : vector<1x1x64xf32> to vector<1xf32>
    %448 = vector.shape_cast %447 : vector<1xf32> to vector<1x1x1xf32>
    %449 = vector.extract %448[0, 0, 0] : f32 from vector<1x1x1xf32>
    %450 = vector.broadcast %449 : f32 to vector<1x64xf32>
    %451 = arith.cmpf oeq, %445, %450 : vector<1x64xf32>
    %c64_i32_75 = arith.constant 64 : i32
    %452 = vector.broadcast %c64_i32_75 : i32 to vector<1x64xi32>
    %453 = arith.select %451, %2, %452 : vector<1x64xi1>, vector<1x64xi32>
    %454 = vector.shape_cast %453 : vector<1x64xi32> to vector<1x1x64xi32>
    %cst_76 = arith.constant dense<2147483647> : vector<1xi32>
    %455 = vector.multi_reduction <minsi>, %454, %cst_76 [1, 2] : vector<1x1x64xi32> to vector<1xi32>
    %456 = vector.shape_cast %455 : vector<1xi32> to vector<1x1x1xi32>
    %457 = vector.extract %456[0, 0, 0] : i32 from vector<1x1x1xi32>
    %c15_i32 = arith.constant 15 : i32
    %458 = vector.broadcast %c15_i32 : i32 to vector<16x1xi32>
    %459 = arith.cmpi eq, %3, %458 : vector<16x1xi32>
    %460 = vector.broadcast %457 : i32 to vector<16x1xi32>
    %461 = arith.select %459, %460, %431 : vector<16x1xi1>, vector<16x1xi32>
    %462 = vector.broadcast %457 : i32 to vector<1x64xi32>
    %463 = arith.cmpi eq, %2, %462 : vector<1x64xi32>
    %464 = arith.extui %463 : vector<1x64xi1> to vector<1x64xi32>
    %465 = arith.sitofp %464 : vector<1x64xi32> to vector<1x64xf32>
    %466 = vector.broadcast %465 : vector<1x64xf32> to vector<3x64xf32>
    %467 = arith.mulf %1, %466 : vector<3x64xf32>
    %cst_77 = arith.constant dense<0.000000e+00> : vector<3xf32>
    %468 = vector.multi_reduction <add>, %467, %cst_77 [1] : vector<3x64xf32> to vector<3xf32>
    %469 = vector.shape_cast %468 : vector<3xf32> to vector<3x1xf32>
    %470 = vector.broadcast %469 : vector<3x1xf32> to vector<3x64xf32>
    %471 = arith.subf %1, %470 : vector<3x64xf32>
    %472 = arith.mulf %471, %471 : vector<3x64xf32>
    %cst_78 = arith.constant dense<0.000000e+00> : vector<64xf32>
    %473 = vector.multi_reduction <add>, %472, %cst_78 [0] : vector<3x64xf32> to vector<64xf32>
    %474 = vector.shape_cast %473 : vector<64xf32> to vector<1x64xf32>
    %475 = arith.minimumf %445, %474 : vector<1x64xf32>
    %476 = vector.shape_cast %475 : vector<1x64xf32> to vector<1x1x64xf32>
    %cst_79 = arith.constant dense<0xFF800000> : vector<1xf32>
    %477 = vector.multi_reduction <maximumf>, %476, %cst_79 [1, 2] : vector<1x1x64xf32> to vector<1xf32>
    %478 = vector.shape_cast %477 : vector<1xf32> to vector<1x1x1xf32>
    %479 = vector.extract %478[0, 0, 0] : f32 from vector<1x1x1xf32>
    %480 = vector.broadcast %479 : f32 to vector<1x64xf32>
    %481 = arith.cmpf oeq, %475, %480 : vector<1x64xf32>
    %c64_i32_80 = arith.constant 64 : i32
    %482 = vector.broadcast %c64_i32_80 : i32 to vector<1x64xi32>
    %483 = arith.select %481, %2, %482 : vector<1x64xi1>, vector<1x64xi32>
    %484 = vector.shape_cast %483 : vector<1x64xi32> to vector<1x1x64xi32>
    %cst_81 = arith.constant dense<2147483647> : vector<1xi32>
    %485 = vector.multi_reduction <minsi>, %484, %cst_81 [1, 2] : vector<1x1x64xi32> to vector<1xi32>
    %486 = vector.shape_cast %485 : vector<1xi32> to vector<1x1x1xi32>
    %487 = vector.extract %486[0, 0, 0] : i32 from vector<1x1x1xi32>
    %c16_i32 = arith.constant 16 : i32
    %c0_82 = arith.constant 0 : index
    %c0_83 = arith.constant 0 : index
    %c0_84 = arith.constant 0 : index
    %488 = vector.load %arg4[%c0_82, %c0_83, %c0_84] : memref<1x16x1xi32, #tpu.memory_space<vmem>>, vector<1x16x1xi32>
    %489 = vector.shape_cast %488 : vector<1x16x1xi32> to vector<16x1xi32>
    %490 = vector.shape_cast %461 : vector<16x1xi32> to vector<1x16x1xi32>
    tpu.vector_store %arg4[%c0_82, %c0_83, %c0_84], %490 {strides = array<i32>} : memref<1x16x1xi32, #tpu.memory_space<vmem>>, vector<1x16x1xi32>,
    %491 = tpu.iota {dimensions = array<i32: 1>} : vector<16x64xi32>
    %492 = vector.broadcast %461 : vector<16x1xi32> to vector<16x64xi32>
    %493 = arith.cmpi eq, %492, %491 : vector<16x64xi32>
    %494 = arith.extui %493 : vector<16x64xi1> to vector<16x64xi32>
    %495 = arith.sitofp %494 : vector<16x64xi32> to vector<16x64xf32>
    %cst_85 = arith.constant dense<0.000000e+00> : vector<16x3xf32>
    %496 = tpu.matmul %495, %1, %cst_85 {dimension_numbers = #tpu.dot_dimension_numbers<[1], [1], [0], [0], [0, 0, 1, 0], [], []>, precision = #tpu.contract_precision<fp32>} : vector<16x64xf32>, vector<3x64xf32>, vector<16x3xf32> -> vector<16x3xf32>
    %c0_86 = arith.constant 0 : index
    %c0_87 = arith.constant 0 : index
    %c0_88 = arith.constant 0 : index
    %497 = vector.load %arg3[%c0_86, %c0_87, %c0_88] : memref<1x16x3xf32, #tpu.memory_space<vmem>>, vector<1x16x3xf32>
    %498 = vector.shape_cast %497 : vector<1x16x3xf32> to vector<16x3xf32>
    %499 = vector.shape_cast %496 : vector<16x3xf32> to vector<1x16x3xf32>
    tpu.vector_store %arg3[%c0_86, %c0_87, %c0_88], %499 {strides = array<i32>} : memref<1x16x3xf32, #tpu.memory_space<vmem>>, vector<1x16x3xf32>,
    %cst_89 = arith.constant dense<0.000000e+00> : vector<16x64xf32>
    %500 = tpu.matmul %496, %1, %cst_89 {dimension_numbers = #tpu.dot_dimension_numbers<[1], [0], [0], [1], [0, 0, 1, 1], [], []>, precision = #tpu.contract_precision<fp32>} : vector<16x3xf32>, vector<3x64xf32>, vector<16x64xf32> -> vector<16x64xf32>
    %501 = arith.mulf %496, %496 : vector<16x3xf32>
    %cst_90 = arith.constant dense<0.000000e+00> : vector<16xf32>
    %502 = vector.multi_reduction <add>, %501, %cst_90 [1] : vector<16x3xf32> to vector<16xf32>
    %503 = vector.shape_cast %502 : vector<16xf32> to vector<16x1xf32>
    %504 = arith.mulf %1, %1 : vector<3x64xf32>
    %cst_91 = arith.constant dense<0.000000e+00> : vector<64xf32>
    %505 = vector.multi_reduction <add>, %504, %cst_91 [0] : vector<3x64xf32> to vector<64xf32>
    %506 = vector.shape_cast %505 : vector<64xf32> to vector<1x64xf32>
    %507 = vector.broadcast %503 : vector<16x1xf32> to vector<16x64xf32>
    %508 = vector.broadcast %506 : vector<1x64xf32> to vector<16x64xf32>
    %509 = arith.addf %507, %508 : vector<16x64xf32>
    %cst_92 = arith.constant 2.000000e+00 : f32
    %510 = vector.broadcast %cst_92 : f32 to vector<16x64xf32>
    %511 = arith.mulf %510, %500 : vector<16x64xf32>
    %512 = arith.subf %509, %511 : vector<16x64xf32>
    %cst_93 = arith.constant 9.000000e-02 : f32
    %513 = vector.broadcast %cst_93 : f32 to vector<16x64xf32>
    %514 = arith.cmpf ole, %512, %513 : vector<16x64xf32>
    %c64_i32_94 = arith.constant 64 : i32
    %515 = vector.broadcast %c64_i32_94 : i32 to vector<16x64xi32>
    %516 = arith.select %514, %491, %515 : vector<16x64xi1>, vector<16x64xi32>
    %cst_95 = arith.constant dense<2147483647> : vector<16xi32>
    %517 = vector.multi_reduction <minsi>, %516, %cst_95 [1] : vector<16x64xi32> to vector<16xi32>
    %518 = vector.shape_cast %517 : vector<16xi32> to vector<16x1xi32>
    %519 = vector.broadcast %518 : vector<16x1xi32> to vector<16x64xi32>
    %520 = arith.cmpi eq, %516, %519 : vector<16x64xi32>
    %c64_i32_96 = arith.constant 64 : i32
    %521 = vector.broadcast %c64_i32_96 : i32 to vector<16x64xi32>
    %522 = arith.select %520, %521, %516 : vector<16x64xi1>, vector<16x64xi32>
    %cst_97 = arith.constant dense<2147483647> : vector<16xi32>
    %523 = vector.multi_reduction <minsi>, %522, %cst_97 [1] : vector<16x64xi32> to vector<16xi32>
    %524 = vector.shape_cast %523 : vector<16xi32> to vector<16x1xi32>
    %525 = vector.broadcast %524 : vector<16x1xi32> to vector<16x64xi32>
    %526 = arith.cmpi eq, %522, %525 : vector<16x64xi32>
    %c64_i32_98 = arith.constant 64 : i32
    %527 = vector.broadcast %c64_i32_98 : i32 to vector<16x64xi32>
    %528 = arith.select %526, %527, %522 : vector<16x64xi1>, vector<16x64xi32>
    %cst_99 = arith.constant dense<2147483647> : vector<16xi32>
    %529 = vector.multi_reduction <minsi>, %528, %cst_99 [1] : vector<16x64xi32> to vector<16xi32>
    %530 = vector.shape_cast %529 : vector<16xi32> to vector<16x1xi32>
    %531 = vector.broadcast %530 : vector<16x1xi32> to vector<16x64xi32>
    %532 = arith.cmpi eq, %528, %531 : vector<16x64xi32>
    %c64_i32_100 = arith.constant 64 : i32
    %533 = vector.broadcast %c64_i32_100 : i32 to vector<16x64xi32>
    %534 = arith.select %532, %533, %528 : vector<16x64xi1>, vector<16x64xi32>
    %cst_101 = arith.constant dense<2147483647> : vector<16xi32>
    %535 = vector.multi_reduction <minsi>, %534, %cst_101 [1] : vector<16x64xi32> to vector<16xi32>
    %536 = vector.shape_cast %535 : vector<16xi32> to vector<16x1xi32>
    %537 = vector.broadcast %536 : vector<16x1xi32> to vector<16x64xi32>
    %538 = arith.cmpi eq, %534, %537 : vector<16x64xi32>
    %c64_i32_102 = arith.constant 64 : i32
    %539 = vector.broadcast %c64_i32_102 : i32 to vector<16x64xi32>
    %540 = arith.select %538, %539, %534 : vector<16x64xi1>, vector<16x64xi32>
    %cst_103 = arith.constant dense<2147483647> : vector<16xi32>
    %541 = vector.multi_reduction <minsi>, %540, %cst_103 [1] : vector<16x64xi32> to vector<16xi32>
    %542 = vector.shape_cast %541 : vector<16xi32> to vector<16x1xi32>
    %543 = vector.broadcast %542 : vector<16x1xi32> to vector<16x64xi32>
    %544 = arith.cmpi eq, %540, %543 : vector<16x64xi32>
    %c64_i32_104 = arith.constant 64 : i32
    %545 = vector.broadcast %c64_i32_104 : i32 to vector<16x64xi32>
    %546 = arith.select %544, %545, %540 : vector<16x64xi1>, vector<16x64xi32>
    %cst_105 = arith.constant dense<2147483647> : vector<16xi32>
    %547 = vector.multi_reduction <minsi>, %546, %cst_105 [1] : vector<16x64xi32> to vector<16xi32>
    %548 = vector.shape_cast %547 : vector<16xi32> to vector<16x1xi32>
    %549 = vector.broadcast %548 : vector<16x1xi32> to vector<16x64xi32>
    %550 = arith.cmpi eq, %546, %549 : vector<16x64xi32>
    %c64_i32_106 = arith.constant 64 : i32
    %551 = vector.broadcast %c64_i32_106 : i32 to vector<16x64xi32>
    %552 = arith.select %550, %551, %546 : vector<16x64xi1>, vector<16x64xi32>
    %cst_107 = arith.constant dense<2147483647> : vector<16xi32>
    %553 = vector.multi_reduction <minsi>, %552, %cst_107 [1] : vector<16x64xi32> to vector<16xi32>
    %554 = vector.shape_cast %553 : vector<16xi32> to vector<16x1xi32>
    %555 = vector.broadcast %554 : vector<16x1xi32> to vector<16x64xi32>
    %556 = arith.cmpi eq, %552, %555 : vector<16x64xi32>
    %c64_i32_108 = arith.constant 64 : i32
    %557 = vector.broadcast %c64_i32_108 : i32 to vector<16x64xi32>
    %558 = arith.select %556, %557, %552 : vector<16x64xi1>, vector<16x64xi32>
    %cst_109 = arith.constant dense<2147483647> : vector<16xi32>
    %559 = vector.multi_reduction <minsi>, %558, %cst_109 [1] : vector<16x64xi32> to vector<16xi32>
    %560 = vector.shape_cast %559 : vector<16xi32> to vector<16x1xi32>
    %561 = tpu.concatenate %518, %524, %530, %536, %542, %548, %554, %560 in 1 : vector<16x1xi32>, vector<16x1xi32>, vector<16x1xi32>, vector<16x1xi32>, vector<16x1xi32>, vector<16x1xi32>, vector<16x1xi32>, vector<16x1xi32> -> vector<16x8xi32>
    %c64_i32_110 = arith.constant 64 : i32
    %562 = vector.broadcast %c64_i32_110 : i32 to vector<16x8xi32>
    %563 = arith.cmpi eq, %561, %562 : vector<16x8xi32>
    %564 = vector.shape_cast %518 : vector<16x1xi32> to vector<16x1xi32>
    %565 = vector.broadcast %564 : vector<16x1xi32> to vector<16x8xi32>
    %566 = arith.select %563, %565, %561 : vector<16x8xi1>, vector<16x8xi32>
    %c0_111 = arith.constant 0 : index
    %c0_112 = arith.constant 0 : index
    %c0_113 = arith.constant 0 : index
    %567 = vector.load %arg5[%c0_111, %c0_112, %c0_113] : memref<1x16x8xi32, #tpu.memory_space<vmem>>, vector<1x16x8xi32>
    %568 = vector.shape_cast %567 : vector<1x16x8xi32> to vector<16x8xi32>
    %569 = vector.shape_cast %566 : vector<16x8xi32> to vector<1x16x8xi32>
    tpu.vector_store %arg5[%c0_111, %c0_112, %c0_113], %569 {strides = array<i32>} : memref<1x16x8xi32, #tpu.memory_space<vmem>>, vector<1x16x8xi32>,
    return
  }
  func.func @transform_0(%arg0: i32, %arg1: memref<2xi32, #tpu.memory_space<smem>>) -> (i32, i32, i32) {
    %c0_i32 = arith.constant 0 : i32
    %c0_i32_0 = arith.constant 0 : i32
    %c0_i32_1 = arith.constant 0 : i32
    return %arg0, %c0_i32, %c0_i32_0 : i32, i32, i32
  }
  func.func @transform_1(%arg0: i32, %arg1: memref<2xi32, #tpu.memory_space<smem>>) -> (i32, i32, i32) {
    %c0_i32 = arith.constant 0 : i32
    %c0_i32_0 = arith.constant 0 : i32
    %c0_i32_1 = arith.constant 0 : i32
    return %arg0, %c0_i32, %c0_i32_0 : i32, i32, i32
  }
  func.func @transform_2(%arg0: i32, %arg1: memref<2xi32, #tpu.memory_space<smem>>) -> (i32, i32, i32) {
    %c0_i32 = arith.constant 0 : i32
    %c0_i32_0 = arith.constant 0 : i32
    %c0_i32_1 = arith.constant 0 : i32
    return %arg0, %c0_i32, %c0_i32_0 : i32, i32, i32
  }
  func.func @transform_3(%arg0: i32, %arg1: memref<2xi32, #tpu.memory_space<smem>>) -> (i32, i32, i32) {
    %c0_i32 = arith.constant 0 : i32
    %c0_i32_0 = arith.constant 0 : i32
    %c0_i32_1 = arith.constant 0 : i32
    return %arg0, %c0_i32, %c0_i32_0 : i32, i32, i32
  }
}

module attributes {stable_mosaic.version = 11 : i64} {
  func.func @group_concat_kernel(%arg0: i32, %arg1: memref<1x128x1xi32, #tpu.memory_space<vmem>>, %arg2: memref<1x128x1xi32, #tpu.memory_space<vmem>>, %arg3: memref<1x64x7xf32, #tpu.memory_space<vmem>>, %arg4: memref<1x128x11xf32, #tpu.memory_space<vmem>>) attributes {dimension_semantics = [#tpu.dimension_semantics<parallel>], iteration_bounds = array<i64: 2>, scalar_prefetch = 0 : i64, scratch_operands = 0 : i64, tpu.core_type = #tpu.core_type<tc>, window_params = [{transform_indices = @transform_0, window_bounds = array<i64: 1, 128, 1>}, {transform_indices = @transform_1, window_bounds = array<i64: 1, 128, 1>}, {transform_indices = @transform_2, window_bounds = array<i64: 1, 64, 7>}, {transform_indices = @transform_3, window_bounds = array<i64: 1, 128, 11>}]} {
    %c0 = arith.constant 0 : index
    %c0_0 = arith.constant 0 : index
    %c0_1 = arith.constant 0 : index
    %0 = vector.load %arg3[%c0, %c0_0, %c0_1] : memref<1x64x7xf32, #tpu.memory_space<vmem>>, vector<1x64x7xf32>
    %1 = vector.shape_cast %0 : vector<1x64x7xf32> to vector<64x7xf32>
    %2 = vector.extract_strided_slice %1 {offsets = [0, 0], sizes = [64, 4], strides = [1, 1]} : vector<64x7xf32> to vector<64x4xf32>
    %3 = tpu.iota {dimensions = array<i32: 1>} : vector<128x64xi32>
    %c0_2 = arith.constant 0 : index
    %c0_3 = arith.constant 0 : index
    %c0_4 = arith.constant 0 : index
    %4 = vector.load %arg1[%c0_2, %c0_3, %c0_4] : memref<1x128x1xi32, #tpu.memory_space<vmem>>, vector<1x128x1xi32>
    %5 = vector.shape_cast %4 : vector<1x128x1xi32> to vector<128x1xi32>
    %6 = vector.broadcast %5 : vector<128x1xi32> to vector<128x64xi32>
    %7 = arith.cmpi eq, %6, %3 : vector<128x64xi32>
    %8 = arith.extui %7 : vector<128x64xi1> to vector<128x64xi32>
    %9 = arith.sitofp %8 : vector<128x64xi32> to vector<128x64xf32>
    %c0_5 = arith.constant 0 : index
    %c0_6 = arith.constant 0 : index
    %c0_7 = arith.constant 0 : index
    %10 = vector.load %arg2[%c0_5, %c0_6, %c0_7] : memref<1x128x1xi32, #tpu.memory_space<vmem>>, vector<1x128x1xi32>
    %11 = vector.shape_cast %10 : vector<1x128x1xi32> to vector<128x1xi32>
    %12 = vector.broadcast %11 : vector<128x1xi32> to vector<128x64xi32>
    %13 = arith.cmpi eq, %12, %3 : vector<128x64xi32>
    %14 = arith.extui %13 : vector<128x64xi1> to vector<128x64xi32>
    %15 = arith.sitofp %14 : vector<128x64xi32> to vector<128x64xf32>
    %cst = arith.constant dense<0.000000e+00> : vector<128x7xf32>
    %16 = tpu.matmul %9, %1, %cst {dimension_numbers = #tpu.dot_dimension_numbers<[1], [0], [0], [1], [0, 0, 1, 1], [], []>, precision = #tpu.contract_precision<fp32>} : vector<128x64xf32>, vector<64x7xf32>, vector<128x7xf32> -> vector<128x7xf32>
    %cst_8 = arith.constant dense<0.000000e+00> : vector<128x4xf32>
    %17 = tpu.matmul %15, %2, %cst_8 {dimension_numbers = #tpu.dot_dimension_numbers<[1], [0], [0], [1], [0, 0, 1, 1], [], []>, precision = #tpu.contract_precision<fp32>} : vector<128x64xf32>, vector<64x4xf32>, vector<128x4xf32> -> vector<128x4xf32>
    %18 = tpu.concatenate %16, %17 in 1 : vector<128x7xf32>, vector<128x4xf32> -> vector<128x11xf32>
    %c0_9 = arith.constant 0 : index
    %c0_10 = arith.constant 0 : index
    %c0_11 = arith.constant 0 : index
    %19 = vector.load %arg4[%c0_9, %c0_10, %c0_11] : memref<1x128x11xf32, #tpu.memory_space<vmem>>, vector<1x128x11xf32>
    %20 = vector.shape_cast %19 : vector<1x128x11xf32> to vector<128x11xf32>
    %21 = vector.shape_cast %18 : vector<128x11xf32> to vector<1x128x11xf32>
    tpu.vector_store %arg4[%c0_9, %c0_10, %c0_11], %21 {strides = array<i32>} : memref<1x128x11xf32, #tpu.memory_space<vmem>>, vector<1x128x11xf32>,
    return
  }
  func.func @transform_0(%arg0: i32) -> (i32, i32, i32) {
    %c0_i32 = arith.constant 0 : i32
    %c0_i32_0 = arith.constant 0 : i32
    %c0_i32_1 = arith.constant 0 : i32
    return %arg0, %c0_i32, %c0_i32_0 : i32, i32, i32
  }
  func.func @transform_1(%arg0: i32) -> (i32, i32, i32) {
    %c0_i32 = arith.constant 0 : i32
    %c0_i32_0 = arith.constant 0 : i32
    %c0_i32_1 = arith.constant 0 : i32
    return %arg0, %c0_i32, %c0_i32_0 : i32, i32, i32
  }
  func.func @transform_2(%arg0: i32) -> (i32, i32, i32) {
    %c0_i32 = arith.constant 0 : i32
    %c0_i32_0 = arith.constant 0 : i32
    %c0_i32_1 = arith.constant 0 : i32
    return %arg0, %c0_i32, %c0_i32_0 : i32, i32, i32
  }
  func.func @transform_3(%arg0: i32) -> (i32, i32, i32) {
    %c0_i32 = arith.constant 0 : i32
    %c0_i32_0 = arith.constant 0 : i32
    %c0_i32_1 = arith.constant 0 : i32
    return %arg0, %c0_i32, %c0_i32_0 : i32, i32, i32
  }
}

</mosaic_0001>

<llo_original>
// kernel: local_grouper.2
$region0: #{local_grouper.2}
  #allocation0 [shape = 'u32[]', space=smem, size = 0x4, offset = 0x4, fixed_abs, tag = 'smem constant byte address 0x4 - core index']
  #allocation1 [shape = 'u32[72,128]{1,0:T(1,128)}', space=vmem, size = 0x9000, scoped, tag = 'internal scratch']
  #allocation2 [shape = 's32[1]{0}', space=sflag, size = 0x4, scoped, tag = 'scoped memory for local_grouper.2']
  #allocation3 [shape = 'u8[512]{0}', space=smem, size = 0x200, scoped, tag = 'prefetched SMEM operand 0']
  %s0 = inlined_call_operand.vmem [shape: s32[2], index: 0, kind: input, shape index: {}]
  %s1 = inlined_call_operand.vmem [shape: f32[2,3,64], index: 1, kind: input, shape index: {}]
  %s2 = inlined_call_operand.vmem [shape: f32[2,16,3], index: 2, kind: output, shape index: {0}]
  %s3 = inlined_call_operand.vmem [shape: s32[2,16,1], index: 3, kind: output, shape index: {1}]
  %s4 = inlined_call_operand.vmem [shape: s32[2,16,8], index: 4, kind: output, shape index: {2}]
  %5 = xla_tuple %s2, %s3, %s4
  %s6 = sld [smem:[#allocation0]]
  $region53: #{local_grouper.2} parent=0
    _
  %s8 = ssub.s32 1, %s6
  %s9 = scalar_select 0, %s8, %s6
  %s11 = sshll.u32 %s0, 4
  %s12 = int_to_ptr.vmem [resolvable:$true] %s11
  %14 = dma.vmem_to_smem %s12, 16, [#allocation3], [#allocation2]
  %16 = dma.done [#allocation2], 16
  %17 = sfence
  loop: start=0, step=1, limit=4
  $region2: #{local_grouper.2} parent=0 // loop_pre_header
    _
  $region3: #{local_grouper.2} parent=0 // loop_header
    %s19 = sphi 0, %s23
    %p20 = scmp.ge.s32.totalorder %s19, 4
    %s29 = sphi 0, %s31
    %s32 = sphi 0, %s29
    %s33 = sphi 0, %s32
    %s49 = sphi 0, %s33
    %s55 = sphi 0, %s57
    %s58 = sphi 0, %s55
    %s59 = sphi 0, %s58
    %s75 = sphi 0, %s59
    %s81 = sphi 0, %s83
    %s84 = sphi 0, %s81
    %s85 = sphi 0, %s84
    %s101 = sphi 0, %s85
    %s107 = sphi 0, %s109
    %s110 = sphi 0, %s107
    %s111 = sphi 0, %s110
    %s127 = sphi 0, %s111
  $region4: #{local_grouper.2} parent=0 // loop_header_branch
    %22 = sbr.rel (%p20) target = $region8
  $region5: #{local_grouper.2} parent=0 // loop_body
    %s24 = ssub.s32 %s19, 1
    %s25 = ssub.s32 %s19, 2
    %s26 = sadd.s32 %s19, 1
    %s27 = ssub.s32 %s19, %s26
    %p28 = scmp.eq.s32.totalorder %s27, 0
    %s30 = sadd.s32 %s29, 1
    %s31 = scalar_select %p28, %s29, %s30
    %p34 = pneg %p28
    %p35 = scmp.eq.s32.totalorder %s19, 1
    %p36 = por %p34, %p35
    %p37 = scmp.ne.s32.totalorder %s29, %s32
    %p38 = scmp.eq.s32.totalorder %s19, 0
    %p39 = por %p37, %p38
    %p40 = scmp.ne.s32.totalorder %s29, %s32
    %p41 = scmp.eq.s32.totalorder %s24, 1
    %p42 = por %p40, %p41
    %p43 = scmp.ne.s32.totalorder %s32, %s33
    %p44 = scmp.eq.s32.totalorder %s24, 0
    %p45 = por %p43, %p44
    %p46 = scmp.ne.s32.totalorder %s32, %s33
    %p47 = scmp.eq.s32.totalorder %s25, 1
    %p48 = por %p46, %p47
    %p50 = scmp.ne.s32.totalorder %s33, %s49
    %p51 = scmp.eq.s32.totalorder %s25, 0
    %p52 = por %p50, %p51
    %s53 = ssub.s32 %s19, %s26
    %p54 = scmp.eq.s32.totalorder %s53, 0
    %s56 = sadd.s32 %s55, 1
    %s57 = scalar_select %p54, %s55, %s56
    %p60 = pneg %p54
    %p61 = scmp.eq.s32.totalorder %s19, 1
    %p62 = por %p60, %p61
    %p63 = scmp.ne.s32.totalorder %s55, %s58
    %p64 = scmp.eq.s32.totalorder %s19, 0
    %p65 = por %p63, %p64
    %p66 = scmp.ne.s32.totalorder %s55, %s58
    %p67 = scmp.eq.s32.totalorder %s24, 1
    %p68 = por %p66, %p67
    %p69 = scmp.ne.s32.totalorder %s58, %s59
    %p70 = scmp.eq.s32.totalorder %s24, 0
    %p71 = por %p69, %p70
    %p72 = scmp.ne.s32.totalorder %s58, %s59
    %p73 = scmp.eq.s32.totalorder %s25, 1
    %p74 = por %p72, %p73
    %p76 = scmp.ne.s32.totalorder %s59, %s75
    %p77 = scmp.eq.s32.totalorder %s25, 0
    %p78 = por %p76, %p77
    %s79 = ssub.s32 %s19, %s26
    %p80 = scmp.eq.s32.totalorder %s79, 0
    %s82 = sadd.s32 %s81, 1
    %s83 = scalar_select %p80, %s81, %s82
    %p86 = pneg %p80
    %p87 = scmp.eq.s32.totalorder %s19, 1
    %p88 = por %p86, %p87
    %p89 = scmp.ne.s32.totalorder %s81, %s84
    %p90 = scmp.eq.s32.totalorder %s19, 0
    %p91 = por %p89, %p90
    %p92 = scmp.ne.s32.totalorder %s81, %s84
    %p93 = scmp.eq.s32.totalorder %s24, 1
    %p94 = por %p92, %p93
    %p95 = scmp.ne.s32.totalorder %s84, %s85
    %p96 = scmp.eq.s32.totalorder %s24, 0
    %p97 = por %p95, %p96
    %p98 = scmp.ne.s32.totalorder %s84, %s85
    %p99 = scmp.eq.s32.totalorder %s25, 1
    %p100 = por %p98, %p99
    %p102 = scmp.ne.s32.totalorder %s85, %s101
    %p103 = scmp.eq.s32.totalorder %s25, 0
    %p104 = por %p102, %p103
    %s105 = ssub.s32 %s19, %s26
    %p106 = scmp.eq.s32.totalorder %s105, 0
    %s108 = sadd.s32 %s107, 1
    %s109 = scalar_select %p106, %s107, %s108
    %p112 = pneg %p106
    %p113 = scmp.eq.s32.totalorder %s19, 1
    %p114 = por %p112, %p113
    %p115 = scmp.ne.s32.totalorder %s107, %s110
    %p116 = scmp.eq.s32.totalorder %s19, 0
    %p117 = por %p115, %p116
    %p118 = scmp.ne.s32.totalorder %s107, %s110
    %p119 = scmp.eq.s32.totalorder %s24, 1
    %p120 = por %p118, %p119
    %p121 = scmp.ne.s32.totalorder %s110, %s111
    %p122 = scmp.eq.s32.totalorder %s24, 0
    %p123 = por %p121, %p122
    %p124 = scmp.ne.s32.totalorder %s110, %s111
    %p125 = scmp.eq.s32.totalorder %s25, 1
    %p126 = por %p124, %p125
    %p128 = scmp.ne.s32.totalorder %s111, %s127
    %p129 = scmp.eq.s32.totalorder %s25, 0
    %p130 = por %p128, %p129
    %p131 = scmp.le.s32.totalorder 1, %s19
    %p132 = scmp.lt.s32.totalorder %s19, 3
    %p133 = pnand %p131, %p132
    %p134 = pneg %p133
    // Predicated region
    $region9: #{local_grouper.2} parent=5 // pred_check
      _
    $region10: #{local_grouper.2} parent=5 // pred_check_branch
      %136 = sbr.rel (%p133) target = $region12
    $region11: #{local_grouper.2} parent=5 // pred_region
      %s137 = ssub.s32 %s19, 1
    $region12: #{local_grouper.2} parent=5 // pred_fallthru
      _
    %p138 = scmp.lt.s32.totalorder %s19, 2
    // Predicated region
    $region13: #{local_grouper.2} parent=5 // pred_check
      %p139 = pneg %p138
    $region14: #{local_grouper.2} parent=5 // pred_check_branch
      %141 = sbr.rel (%p139) target = $region16
    $region15: #{local_grouper.2} parent=5 // pred_region
      // Predicated region
      $region17: #{local_grouper.2} parent=15 // pred_check
        %p142 = pneg %p39
      $region18: #{local_grouper.2} parent=15 // pred_check_branch
        %144 = sbr.rel (%p142) target = $region20
      $region19: #{local_grouper.2} parent=15 // pred_region
        %p145 = scmp.lt.s32.totalorder %s19, 1
        %s146 = scalar_select %p145, %s19, 1
        %s147 = smul.addr %s146, 4
        %s148 = scalar_lea.vmem %s1, %s147
      $region20: #{local_grouper.2} parent=15 // pred_fallthru
        _
    $region16: #{local_grouper.2} parent=5 // pred_fallthru
      _
    %p149 = scmp.le.s32.totalorder 1, %s19
    %p150 = scmp.lt.s32.totalorder %s19, 3
    %p151 = pnand %p149, %p150
    %p152 = pneg %p151
    // Predicated region
    $region21: #{local_grouper.2} parent=5 // pred_check
      _
    $region22: #{local_grouper.2} parent=5 // pred_check_branch
      %154 = sbr.rel (%p151) target = $region24
    $region23: #{local_grouper.2} parent=5 // pred_region
      %s155 = ssub.s32 %s19, 1
      %p156 = scmp.lt.s32.totalorder %s24, 1
      %s157 = scalar_select %p156, %s24, 1
      %s158 = smul.addr %s157, 4
      %s159 = scalar_lea.vmem %s1, %s158
      %p160 = pneg %p45
      %p161 = pneg %p42
      %p162 = pneg %p71
      %p163 = pneg %p68
      %p164 = scmp.lt.s32.totalorder %s24, 1
      %s165 = scalar_select %p164, %s24, 1
      %s166 = smul.addr %s165, 2
      %s167 = smul.addr %s166, 8
      %s168 = scalar_lea.vmem %s2, %s167
      %p169 = pneg %p97
      %p170 = pneg %p94
      %p171 = scmp.lt.s32.totalorder %s24, 1
      %s172 = scalar_select %p171, %s24, 1
      %s173 = smul.addr %s172, 2
      %s174 = smul.addr %s173, 8
      %s175 = scalar_lea.vmem %s3, %s174
      %p176 = pneg %p123
      %p177 = pneg %p120
      %p178 = scmp.lt.s32.totalorder %s24, 1
      %s179 = scalar_select %p178, %s24, 1
      %s180 = smul.addr %s179, 2
      %s181 = smul.addr %s180, 8
      %s182 = scalar_lea.vmem %s4, %s181
      %p183 = scmp.lt.s32.totalorder %s24, 1
      %s184 = scalar_select %p183, %s24, 1
      %s185 = smul.addr %s184, 4
      %s186 = scalar_lea.vmem %s1, %s185
      %p187 = scmp.lt.s32.totalorder %s24, 1
      %s188 = scalar_select %p187, %s24, 1
      %s189 = smul.addr %s188, 2
      %s190 = smul.addr %s189, 8
      %s191 = scalar_lea.vmem %s2, %s190
      %p192 = scmp.lt.s32.totalorder %s24, 1
      %s193 = scalar_select %p192, %s24, 1
      %s194 = smul.addr %s193, 2
      %s195 = smul.addr %s194, 8
      %s196 = scalar_lea.vmem %s3, %s195
      %p197 = scmp.lt.s32.totalorder %s24, 1
      %s198 = scalar_select %p197, %s24, 1
      %s199 = smul.addr %s198, 2
      %s200 = smul.addr %s199, 8
      %s201 = scalar_lea.vmem %s4, %s200
      %v202 = vld [vmem:[%s186] sm:$0x7]
      %v203 = vlaneseq
      %v204 = vand.u32 %v203, 127
      %v205 = vlaneseq
      %v206 = vshrl.u32 %v205, 7
      %v207 = vadd.s32 %v206, 8
      %s208 = sld [smem:[#allocation3 + %s24]]
      %vm209 = vcmp.eq.s32.totalorder %v206, 0
      %vm210 = vcmp.eq.s32.totalorder %v207, 0
      %v211 = vstv %s208
      %v212 = vsel %vm209, %v211, 0
      %v213 = vsel %vm210, %v211, 0
      %vm214 = vcmp.eq.s32.totalorder %v204, %v211
      %v215 = vsel %vm214, 1, 0
      %v216 = vcvt.s32.f32 %v215
      %v217 = vmul.f32 %v202, %v216
      %vm218 = vcmask 518144
      %v219 = vsel %vm218, %v217, 0.0
      %220 = vadd.xlane.f32.xlu0 %v219
      %v221 = vpop.xlane.xlu0 %220
      %v222 = vsub.f32 %v202, %v221
      %v223 = vmul.f32 %v222, %v222
      %v224 = vsel %vm218, %v223, 0.0
      %v225 = vrot.slane %v224, 4
      %v226 = vadd.f32 %v224, %v225
      %v227 = vrot.slane %v226, 2
      %v228 = vadd.f32 %v226, %v227
      %v229 = vrot.slane %v228, 1
      %v230 = vadd.f32 %v228, %v229
      %v231 = vmin.f32 %v230, 1e+10
      %vm232 = vcmask 523264
      %v233 = vsel %vm232, %v231, -inf
      %234 = vmax.xlane.f32.xlu0 %v233
      %v235 = vpop.xlane.xlu0 %234
      %s236 = vtos %v235
      %v237 = vstv %s236
      %vm238 = vcmp.eq.f32.partialorder %v231, %v237
      %v239 = vsel %vm238, %v204, 64
      %v240 = vsel %vm232, %v239, 2147483647
      %v241 = vand.u32 %v240, 65535
      %v242 = vshra.s32 %v240, 16
      %v243 = vcvt.s32.f32 %v241
      %v244 = vcvt.s32.f32 %v242
      %245 = vmin.xlane.f32.xlu0 %v244
      %v246 = vpop.xlane.xlu0 %245
      %vm247 = vcmp.eq.f32.partialorder %v244, %v246
      %v248 = vsel %vm247, %v243, inf
      %249 = vmin.xlane.f32.xlu0 %v248
      %v250 = vpop.xlane.xlu0 %249
      %v251 = vcvt.f32.s32 %v250
      %v252 = vcvt.f32.s32 %v246
      %v253 = vshll.u32 %v252, 16
      %v254 = vadd.s32 %v253, %v251
      %s255 = vtos %v254
      %vm256 = vcmp.eq.s32.totalorder %v206, 1
      %vm257 = vcmp.eq.s32.totalorder %v207, 1
      %v258 = vstv %s255
      %v259 = vsel %vm256, %v258, %v212
      %v260 = vsel %vm257, %v258, %v213
      %vm261 = vcmp.eq.s32.totalorder %v204, %v258
      %v262 = vsel %vm261, 1, 0
      %v263 = vcvt.s32.f32 %v262
      %v264 = vmul.f32 %v202, %v263
      %v265 = vsel %vm218, %v264, 0.0
      %266 = vadd.xlane.f32.xlu0 %v265
      %v267 = vpop.xlane.xlu0 %266
      %v268 = vsub.f32 %v202, %v267
      %v269 = vmul.f32 %v268, %v268
      %v270 = vsel %vm218, %v269, 0.0
      %v271 = vrot.slane %v270, 4
      %v272 = vadd.f32 %v270, %v271
      %v273 = vrot.slane %v272, 2
      %v274 = vadd.f32 %v272, %v273
      %v275 = vrot.slane %v274, 1
      %v276 = vadd.f32 %v274, %v275
      %v277 = vmin.f32 %v231, %v276
      %v278 = vsel %vm232, %v277, -inf
      %279 = vmax.xlane.f32.xlu0 %v278
      %v280 = vpop.xlane.xlu0 %279
      %s281 = vtos %v280
      %v282 = vstv %s281
      %vm283 = vcmp.eq.f32.partialorder %v277, %v282
      %v284 = vsel %vm283, %v204, 64
      %v285 = vsel %vm232, %v284, 2147483647
      %v286 = vand.u32 %v285, 65535
      %v287 = vshra.s32 %v285, 16
      %v288 = vcvt.s32.f32 %v286
      %v289 = vcvt.s32.f32 %v287
      %290 = vmin.xlane.f32.xlu0 %v289
      %v291 = vpop.xlane.xlu0 %290
      %vm292 = vcmp.eq.f32.partialorder %v289, %v291
      %v293 = vsel %vm292, %v288, inf
      %294 = vmin.xlane.f32.xlu0 %v293
      %v295 = vpop.xlane.xlu0 %294
      %v296 = vcvt.f32.s32 %v295
      %v297 = vcvt.f32.s32 %v291
      %v298 = vshll.u32 %v297, 16
      %v299 = vadd.s32 %v298, %v296
      %s300 = vtos %v299
      %vm301 = vcmp.eq.s32.totalorder %v206, 2
      %vm302 = vcmp.eq.s32.totalorder %v207, 2
      %v303 = vstv %s300
      %v304 = vsel %vm301, %v303, %v259
      %v305 = vsel %vm302, %v303, %v260
      %vm306 = vcmp.eq.s32.totalorder %v204, %v303
      %v307 = vsel %vm306, 1, 0
      %v308 = vcvt.s32.f32 %v307
      %v309 = vmul.f32 %v202, %v308
      %v310 = vsel %vm218, %v309, 0.0
      %311 = vadd.xlane.f32.xlu0 %v310
      %v312 = vpop.xlane.xlu0 %311
      %v313 = vsub.f32 %v202, %v312
      %v314 = vmul.f32 %v313, %v313
      %v315 = vsel %vm218, %v314, 0.0
      %v316 = vrot.slane %v315, 4
      %v317 = vadd.f32 %v315, %v316
      %v318 = vrot.slane %v317, 2
      %v319 = vadd.f32 %v317, %v318
      %v320 = vrot.slane %v319, 1
      %v321 = vadd.f32 %v319, %v320
      %v322 = vmin.f32 %v277, %v321
      %v323 = vsel %vm232, %v322, -inf
      %324 = vmax.xlane.f32.xlu0 %v323
      %v325 = vpop.xlane.xlu0 %324
      %s326 = vtos %v325
      %v327 = vstv %s326
      %vm328 = vcmp.eq.f32.partialorder %v322, %v327
      %v329 = vsel %vm328, %v204, 64
      %v330 = vsel %vm232, %v329, 2147483647
      %v331 = vand.u32 %v330, 65535
      %v332 = vshra.s32 %v330, 16
      %v333 = vcvt.s32.f32 %v331
      %v334 = vcvt.s32.f32 %v332
      %335 = vmin.xlane.f32.xlu0 %v334
      %v336 = vpop.xlane.xlu0 %335
      %vm337 = vcmp.eq.f32.partialorder %v334, %v336
      %v338 = vsel %vm337, %v333, inf
      %339 = vmin.xlane.f32.xlu0 %v338
      %v340 = vpop.xlane.xlu0 %339
      %v341 = vcvt.f32.s32 %v340
      %v342 = vcvt.f32.s32 %v336
      %v343 = vshll.u32 %v342, 16
      %v344 = vadd.s32 %v343, %v341
      %s345 = vtos %v344
      %vm346 = vcmp.eq.s32.totalorder %v206, 3
      %vm347 = vcmp.eq.s32.totalorder %v207, 3
      %v348 = vstv %s345
      %v349 = vsel %vm346, %v348, %v304
      %v350 = vsel %vm347, %v348, %v305
      %vm351 = vcmp.eq.s32.totalorder %v204, %v348
      %v352 = vsel %vm351, 1, 0
      %v353 = vcvt.s32.f32 %v352
      %v354 = vmul.f32 %v202, %v353
      %v355 = vsel %vm218, %v354, 0.0
      %356 = vadd.xlane.f32.xlu0 %v355
      %v357 = vpop.xlane.xlu0 %356
      %v358 = vsub.f32 %v202, %v357
      %v359 = vmul.f32 %v358, %v358
      %v360 = vsel %vm218, %v359, 0.0
      %v361 = vrot.slane %v360, 4
      %v362 = vadd.f32 %v360, %v361
      %v363 = vrot.slane %v362, 2
      %v364 = vadd.f32 %v362, %v363
      %v365 = vrot.slane %v364, 1
      %v366 = vadd.f32 %v364, %v365
      %v367 = vmin.f32 %v322, %v366
      %v368 = vsel %vm232, %v367, -inf
      %369 = vmax.xlane.f32.xlu0 %v368
      %v370 = vpop.xlane.xlu0 %369
      %s371 = vtos %v370
      %v372 = vstv %s371
      %vm373 = vcmp.eq.f32.partialorder %v367, %v372
      %v374 = vsel %vm373, %v204, 64
      %v375 = vsel %vm232, %v374, 2147483647
      %v376 = vand.u32 %v375, 65535
      %v377 = vshra.s32 %v375, 16
      %v378 = vcvt.s32.f32 %v376
      %v379 = vcvt.s32.f32 %v377
      %380 = vmin.xlane.f32.xlu0 %v379
      %v381 = vpop.xlane.xlu0 %380
      %vm382 = vcmp.eq.f32.partialorder %v379, %v381
      %v383 = vsel %vm382, %v378, inf
      %384 = vmin.xlane.f32.xlu0 %v383
      %v385 = vpop.xlane.xlu0 %384
      %v386 = vcvt.f32.s32 %v385
      %v387 = vcvt.f32.s32 %v381
      %v388 = vshll.u32 %v387, 16
      %v389 = vadd.s32 %v388, %v386
      %s390 = vtos %v389
      %vm391 = vcmp.eq.s32.totalorder %v206, 4
      %vm392 = vcmp.eq.s32.totalorder %v207, 4
      %v393 = vstv %s390
      %v394 = vsel %vm391, %v393, %v349
      %v395 = vsel %vm392, %v393, %v350
      %vm396 = vcmp.eq.s32.totalorder %v204, %v393
      %v397 = vsel %vm396, 1, 0
      %v398 = vcvt.s32.f32 %v397
      %v399 = vmul.f32 %v202, %v398
      %v400 = vsel %vm218, %v399, 0.0
      %401 = vadd.xlane.f32.xlu0 %v400
      %v402 = vpop.xlane.xlu0 %401
      %v403 = vsub.f32 %v202, %v402
      %v404 = vmul.f32 %v403, %v403
      %v405 = vsel %vm218, %v404, 0.0
      %v406 = vrot.slane %v405, 4
      %v407 = vadd.f32 %v405, %v406
      %v408 = vrot.slane %v407, 2
      %v409 = vadd.f32 %v407, %v408
      %v410 = vrot.slane %v409, 1
      %v411 = vadd.f32 %v409, %v410
      %v412 = vmin.f32 %v367, %v411
      %v413 = vsel %vm232, %v412, -inf
      %414 = vmax.xlane.f32.xlu0 %v413
      %v415 = vpop.xlane.xlu0 %414
      %s416 = vtos %v415
      %v417 = vstv %s416
      %vm418 = vcmp.eq.f32.partialorder %v412, %v417
      %v419 = vsel %vm418, %v204, 64
      %v420 = vsel %vm232, %v419, 2147483647
      %v421 = vand.u32 %v420, 65535
      %v422 = vshra.s32 %v420, 16
      %v423 = vcvt.s32.f32 %v421
      %v424 = vcvt.s32.f32 %v422
      %425 = vmin.xlane.f32.xlu0 %v424
      %v426 = vpop.xlane.xlu0 %425
      %vm427 = vcmp.eq.f32.partialorder %v424, %v426
      %v428 = vsel %vm427, %v423, inf
      %429 = vmin.xlane.f32.xlu0 %v428
      %v430 = vpop.xlane.xlu0 %429
      %v431 = vcvt.f32.s32 %v430
      %v432 = vcvt.f32.s32 %v426
      %v433 = vshll.u32 %v432, 16
      %v434 = vadd.s32 %v433, %v431
      %s435 = vtos %v434
      %vm436 = vcmp.eq.s32.totalorder %v206, 5
      %vm437 = vcmp.eq.s32.totalorder %v207, 5
      %v438 = vstv %s435
      %v439 = vsel %vm436, %v438, %v394
      %v440 = vsel %vm437, %v438, %v395
      %vm441 = vcmp.eq.s32.totalorder %v204, %v438
      %v442 = vsel %vm441, 1, 0
      %v443 = vcvt.s32.f32 %v442
      %v444 = vmul.f32 %v202, %v443
      %v445 = vsel %vm218, %v444, 0.0
      %446 = vadd.xlane.f32.xlu0 %v445
      %v447 = vpop.xlane.xlu0 %446
      %v448 = vsub.f32 %v202, %v447
      %v449 = vmul.f32 %v448, %v448
      %v450 = vsel %vm218, %v449, 0.0
      %v451 = vrot.slane %v450, 4
      %v452 = vadd.f32 %v450, %v451
      %v453 = vrot.slane %v452, 2
      %v454 = vadd.f32 %v452, %v453
      %v455 = vrot.slane %v454, 1
      %v456 = vadd.f32 %v454, %v455
      %v457 = vmin.f32 %v412, %v456
      %v458 = vsel %vm232, %v457, -inf
      %459 = vmax.xlane.f32.xlu0 %v458
      %v460 = vpop.xlane.xlu0 %459
      %s461 = vtos %v460
      %v462 = vstv %s461
      %vm463 = vcmp.eq.f32.partialorder %v457, %v462
      %v464 = vsel %vm463, %v204, 64
      %v465 = vsel %vm232, %v464, 2147483647
      %v466 = vand.u32 %v465, 65535
      %v467 = vshra.s32 %v465, 16
      %v468 = vcvt.s32.f32 %v466
      %v469 = vcvt.s32.f32 %v467
      %470 = vmin.xlane.f32.xlu0 %v469
      %v471 = vpop.xlane.xlu0 %470
      %vm472 = vcmp.eq.f32.partialorder %v469, %v471
      %v473 = vsel %vm472, %v468, inf
      %474 = vmin.xlane.f32.xlu0 %v473
      %v475 = vpop.xlane.xlu0 %474
      %v476 = vcvt.f32.s32 %v475
      %v477 = vcvt.f32.s32 %v471
      %v478 = vshll.u32 %v477, 16
      %v479 = vadd.s32 %v478, %v476
      %s480 = vtos %v479
      %vm481 = vcmp.eq.s32.totalorder %v206, 6
      %vm482 = vcmp.eq.s32.totalorder %v207, 6
      %v483 = vstv %s480
      %v484 = vsel %vm481, %v483, %v439
      %v485 = vsel %vm482, %v483, %v440
      %vm486 = vcmp.eq.s32.totalorder %v204, %v483
      %v487 = vsel %vm486, 1, 0
      %v488 = vcvt.s32.f32 %v487
      %v489 = vmul.f32 %v202, %v488
      %v490 = vsel %vm218, %v489, 0.0
      %491 = vadd.xlane.f32.xlu0 %v490
      %v492 = vpop.xlane.xlu0 %491
      %v493 = vsub.f32 %v202, %v492
      %v494 = vmul.f32 %v493, %v493
      %v495 = vsel %vm218, %v494, 0.0
      %v496 = vrot.slane %v495, 4
      %v497 = vadd.f32 %v495, %v496
      %v498 = vrot.slane %v497, 2
      %v499 = vadd.f32 %v497, %v498
      %v500 = vrot.slane %v499, 1
      %v501 = vadd.f32 %v499, %v500
      %v502 = vmin.f32 %v457, %v501
      %v503 = vsel %vm232, %v502, -inf
      %504 = vmax.xlane.f32.xlu0 %v503
      %v505 = vpop.xlane.xlu0 %504
      %s506 = vtos %v505
      %v507 = vstv %s506
      %vm508 = vcmp.eq.f32.partialorder %v502, %v507
      %v509 = vsel %vm508, %v204, 64
      %v510 = vsel %vm232, %v509, 2147483647
      %v511 = vand.u32 %v510, 65535
      %v512 = vshra.s32 %v510, 16
      %v513 = vcvt.s32.f32 %v511
      %v514 = vcvt.s32.f32 %v512
      %515 = vmin.xlane.f32.xlu0 %v514
      %v516 = vpop.xlane.xlu0 %515
      %vm517 = vcmp.eq.f32.partialorder %v514, %v516
      %v518 = vsel %vm517, %v513, inf
      %519 = vmin.xlane.f32.xlu0 %v518
      %v520 = vpop.xlane.xlu0 %519
      %v521 = vcvt.f32.s32 %v520
      %v522 = vcvt.f32.s32 %v516
      %v523 = vshll.u32 %v522, 16
      %v524 = vadd.s32 %v523, %v521
      %s525 = vtos %v524
      %vm526 = vcmp.eq.s32.totalorder %v206, 7
      %vm527 = vcmp.eq.s32.totalorder %v207, 7
      %v528 = vstv %s525
      %v529 = vsel %vm526, %v528, %v484
      %v530 = vsel %vm527, %v528, %v485
      %vm531 = vcmp.eq.s32.totalorder %v204, %v528
      %v532 = vsel %vm531, 1, 0
      %v533 = vcvt.s32.f32 %v532
      %v534 = vmul.f32 %v202, %v533
      %v535 = vsel %vm218, %v534, 0.0
      %536 = vadd.xlane.f32.xlu0 %v535
      %v537 = vpop.xlane.xlu0 %536
      %v538 = vsub.f32 %v202, %v537
      %v539 = vmul.f32 %v538, %v538
      %v540 = vsel %vm218, %v539, 0.0
      %v541 = vrot.slane %v540, 4
      %v542 = vadd.f32 %v540, %v541
      %v543 = vrot.slane %v542, 2
      %v544 = vadd.f32 %v542, %v543
      %v545 = vrot.slane %v544, 1
      %v546 = vadd.f32 %v544, %v545
      %v547 = vmin.f32 %v502, %v546
      %v548 = vsel %vm232, %v547, -inf
      %549 = vmax.xlane.f32.xlu0 %v548
      %v550 = vpop.xlane.xlu0 %549
      %s551 = vtos %v550
      %v552 = vstv %s551
      %vm553 = vcmp.eq.f32.partialorder %v547, %v552
      %v554 = vsel %vm553, %v204, 64
      %v555 = vsel %vm232, %v554, 2147483647
      %v556 = vand.u32 %v555, 65535
      %v557 = vshra.s32 %v555, 16
      %v558 = vcvt.s32.f32 %v556
      %v559 = vcvt.s32.f32 %v557
      %560 = vmin.xlane.f32.xlu0 %v559
      %v561 = vpop.xlane.xlu0 %560
      %vm562 = vcmp.eq.f32.partialorder %v559, %v561
      %v563 = vsel %vm562, %v558, inf
      %564 = vmin.xlane.f32.xlu0 %v563
      %v565 = vpop.xlane.xlu0 %564
      %v566 = vcvt.f32.s32 %v565
      %v567 = vcvt.f32.s32 %v561
      %v568 = vshll.u32 %v567, 16
      %v569 = vadd.s32 %v568, %v566
      %s570 = vtos %v569
      %vm571 = vcmp.eq.s32.totalorder %v206, 8
      %vm572 = vcmp.eq.s32.totalorder %v207, 8
      %v573 = vstv %s570
      %v574 = vsel %vm571, %v573, %v529
      %v575 = vsel %vm572, %v573, %v530
      %vm576 = vcmp.eq.s32.totalorder %v204, %v573
      %v577 = vsel %vm576, 1, 0
      %v578 = vcvt.s32.f32 %v577
      %v579 = vmul.f32 %v202, %v578
      %v580 = vsel %vm218, %v579, 0.0
      %581 = vadd.xlane.f32.xlu0 %v580
      %v582 = vpop.xlane.xlu0 %581
      %v583 = vsub.f32 %v202, %v582
      %v584 = vmul.f32 %v583, %v583
      %v585 = vsel %vm218, %v584, 0.0
      %v586 = vrot.slane %v585, 4
      %v587 = vadd.f32 %v585, %v586
      %v588 = vrot.slane %v587, 2
      %v589 = vadd.f32 %v587, %v588
      %v590 = vrot.slane %v589, 1
      %v591 = vadd.f32 %v589, %v590
      %v592 = vmin.f32 %v547, %v591
      %v593 = vsel %vm232, %v592, -inf
      %594 = vmax.xlane.f32.xlu0 %v593
      %v595 = vpop.xlane.xlu0 %594
      %s596 = vtos %v595
      %v597 = vstv %s596
      %vm598 = vcmp.eq.f32.partialorder %v592, %v597
      %v599 = vsel %vm598, %v204, 64
      %v600 = vsel %vm232, %v599, 2147483647
      %v601 = vand.u32 %v600, 65535
      %v602 = vshra.s32 %v600, 16
      %v603 = vcvt.s32.f32 %v601
      %v604 = vcvt.s32.f32 %v602
      %605 = vmin.xlane.f32.xlu0 %v604
      %v606 = vpop.xlane.xlu0 %605
      %vm607 = vcmp.eq.f32.partialorder %v604, %v606
      %v608 = vsel %vm607, %v603, inf
      %609 = vmin.xlane.f32.xlu0 %v608
      %v610 = vpop.xlane.xlu0 %609
      %v611 = vcvt.f32.s32 %v610
      %v612 = vcvt.f32.s32 %v606
      %v613 = vshll.u32 %v612, 16
      %v614 = vadd.s32 %v613, %v611
      %s615 = vtos %v614
      %vm616 = vcmp.eq.s32.totalorder %v206, 9
      %vm617 = vcmp.eq.s32.totalorder %v207, 9
      %v618 = vstv %s615
      %v619 = vsel %vm616, %v618, %v574
      %v620 = vsel %vm617, %v618, %v575
      %vm621 = vcmp.eq.s32.totalorder %v204, %v618
      %v622 = vsel %vm621, 1, 0
      %v623 = vcvt.s32.f32 %v622
      %v624 = vmul.f32 %v202, %v623
      %v625 = vsel %vm218, %v624, 0.0
      %626 = vadd.xlane.f32.xlu0 %v625
      %v627 = vpop.xlane.xlu0 %626
      %v628 = vsub.f32 %v202, %v627
      %v629 = vmul.f32 %v628, %v628
      %v630 = vsel %vm218, %v629, 0.0
      %v631 = vrot.slane %v630, 4
      %v632 = vadd.f32 %v630, %v631
      %v633 = vrot.slane %v632, 2
      %v634 = vadd.f32 %v632, %v633
      %v635 = vrot.slane %v634, 1
      %v636 = vadd.f32 %v634, %v635
      %v637 = vmin.f32 %v592, %v636
      %v638 = vsel %vm232, %v637, -inf
      %639 = vmax.xlane.f32.xlu0 %v638
      %v640 = vpop.xlane.xlu0 %639
      %s641 = vtos %v640
      %v642 = vstv %s641
      %vm643 = vcmp.eq.f32.partialorder %v637, %v642
      %v644 = vsel %vm643, %v204, 64
      %v645 = vsel %vm232, %v644, 2147483647
      %v646 = vand.u32 %v645, 65535
      %v647 = vshra.s32 %v645, 16
      %v648 = vcvt.s32.f32 %v646
      %v649 = vcvt.s32.f32 %v647
      %650 = vmin.xlane.f32.xlu0 %v649
      %v651 = vpop.xlane.xlu0 %650
      %vm652 = vcmp.eq.f32.partialorder %v649, %v651
      %v653 = vsel %vm652, %v648, inf
      %654 = vmin.xlane.f32.xlu0 %v653
      %v655 = vpop.xlane.xlu0 %654
      %v656 = vcvt.f32.s32 %v655
      %v657 = vcvt.f32.s32 %v651
      %v658 = vshll.u32 %v657, 16
      %v659 = vadd.s32 %v658, %v656
      %s660 = vtos %v659
      %vm661 = vcmp.eq.s32.totalorder %v206, 10
      %vm662 = vcmp.eq.s32.totalorder %v207, 10
      %v663 = vstv %s660
      %v664 = vsel %vm661, %v663, %v619
      %v665 = vsel %vm662, %v663, %v620
      %vm666 = vcmp.eq.s32.totalorder %v204, %v663
      %v667 = vsel %vm666, 1, 0
      %v668 = vcvt.s32.f32 %v667
      %v669 = vmul.f32 %v202, %v668
      %v670 = vsel %vm218, %v669, 0.0
      %671 = vadd.xlane.f32.xlu0 %v670
      %v672 = vpop.xlane.xlu0 %671
      %v673 = vsub.f32 %v202, %v672
      %v674 = vmul.f32 %v673, %v673
      %v675 = vsel %vm218, %v674, 0.0
      %v676 = vrot.slane %v675, 4
      %v677 = vadd.f32 %v675, %v676
      %v678 = vrot.slane %v677, 2
      %v679 = vadd.f32 %v677, %v678
      %v680 = vrot.slane %v679, 1
      %v681 = vadd.f32 %v679, %v680
      %v682 = vmin.f32 %v637, %v681
      %v683 = vsel %vm232, %v682, -inf
      %684 = vmax.xlane.f32.xlu0 %v683
      %v685 = vpop.xlane.xlu0 %684
      %s686 = vtos %v685
      %v687 = vstv %s686
      %vm688 = vcmp.eq.f32.partialorder %v682, %v687
      %v689 = vsel %vm688, %v204, 64
      %v690 = vsel %vm232, %v689, 2147483647
      %v691 = vand.u32 %v690, 65535
      %v692 = vshra.s32 %v690, 16
      %v693 = vcvt.s32.f32 %v691
      %v694 = vcvt.s32.f32 %v692
      %695 = vmin.xlane.f32.xlu0 %v694
      %v696 = vpop.xlane.xlu0 %695
      %vm697 = vcmp.eq.f32.partialorder %v694, %v696
      %v698 = vsel %vm697, %v693, inf
      %699 = vmin.xlane.f32.xlu0 %v698
      %v700 = vpop.xlane.xlu0 %699
      %v701 = vcvt.f32.s32 %v700
      %v702 = vcvt.f32.s32 %v696
      %v703 = vshll.u32 %v702, 16
      %v704 = vadd.s32 %v703, %v701
      %s705 = vtos %v704
      %vm706 = vcmp.eq.s32.totalorder %v206, 11
      %vm707 = vcmp.eq.s32.totalorder %v207, 11
      %v708 = vstv %s705
      %v709 = vsel %vm706, %v708, %v664
      %v710 = vsel %vm707, %v708, %v665
      %vm711 = vcmp.eq.s32.totalorder %v204, %v708
      %v712 = vsel %vm711, 1, 0
      %v713 = vcvt.s32.f32 %v712
      %v714 = vmul.f32 %v202, %v713
      %v715 = vsel %vm218, %v714, 0.0
      %716 = vadd.xlane.f32.xlu0 %v715
      %v717 = vpop.xlane.xlu0 %716
      %v718 = vsub.f32 %v202, %v717
      %v719 = vmul.f32 %v718, %v718
      %v720 = vsel %vm218, %v719, 0.0
      %v721 = vrot.slane %v720, 4
      %v722 = vadd.f32 %v720, %v721
      %v723 = vrot.slane %v722, 2
      %v724 = vadd.f32 %v722, %v723
      %v725 = vrot.slane %v724, 1
      %v726 = vadd.f32 %v724, %v725
      %v727 = vmin.f32 %v682, %v726
      %v728 = vsel %vm232, %v727, -inf
      %729 = vmax.xlane.f32.xlu0 %v728
      %v730 = vpop.xlane.xlu0 %729
      %s731 = vtos %v730
      %v732 = vstv %s731
      %vm733 = vcmp.eq.f32.partialorder %v727, %v732
      %v734 = vsel %vm733, %v204, 64
      %v735 = vsel %vm232, %v734, 2147483647
      %v736 = vand.u32 %v735, 65535
      %v737 = vshra.s32 %v735, 16
      %v738 = vcvt.s32.f32 %v736
      %v739 = vcvt.s32.f32 %v737
      %740 = vmin.xlane.f32.xlu0 %v739
      %v741 = vpop.xlane.xlu0 %740
      %vm742 = vcmp.eq.f32.partialorder %v739, %v741
      %v743 = vsel %vm742, %v738, inf
      %744 = vmin.xlane.f32.xlu0 %v743
      %v745 = vpop.xlane.xlu0 %744
      %v746 = vcvt.f32.s32 %v745
      %v747 = vcvt.f32.s32 %v741
      %v748 = vshll.u32 %v747, 16
      %v749 = vadd.s32 %v748, %v746
      %s750 = vtos %v749
      %vm751 = vcmp.eq.s32.totalorder %v206, 12
      %vm752 = vcmp.eq.s32.totalorder %v207, 12
      %v753 = vstv %s750
      %v754 = vsel %vm751, %v753, %v709
      %v755 = vsel %vm752, %v753, %v710
      %vm756 = vcmp.eq.s32.totalorder %v204, %v753
      %v757 = vsel %vm756, 1, 0
      %v758 = vcvt.s32.f32 %v757
      %v759 = vmul.f32 %v202, %v758
      %v760 = vsel %vm218, %v759, 0.0
      %761 = vadd.xlane.f32.xlu0 %v760
      %v762 = vpop.xlane.xlu0 %761
      %v763 = vsub.f32 %v202, %v762
      %v764 = vmul.f32 %v763, %v763
      %v765 = vsel %vm218, %v764, 0.0
      %v766 = vrot.slane %v765, 4
      %v767 = vadd.f32 %v765, %v766
      %v768 = vrot.slane %v767, 2
      %v769 = vadd.f32 %v767, %v768
      %v770 = vrot.slane %v769, 1
      %v771 = vadd.f32 %v769, %v770
      %v772 = vmin.f32 %v727, %v771
      %v773 = vsel %vm232, %v772, -inf
      %774 = vmax.xlane.f32.xlu0 %v773
      %v775 = vpop.xlane.xlu0 %774
      %s776 = vtos %v775
      %v777 = vstv %s776
      %vm778 = vcmp.eq.f32.partialorder %v772, %v777
      %v779 = vsel %vm778, %v204, 64
      %v780 = vsel %vm232, %v779, 2147483647
      %v781 = vand.u32 %v780, 65535
      %v782 = vshra.s32 %v780, 16
      %v783 = vcvt.s32.f32 %v781
      %v784 = vcvt.s32.f32 %v782
      %785 = vmin.xlane.f32.xlu0 %v784
      %v786 = vpop.xlane.xlu0 %785
      %vm787 = vcmp.eq.f32.partialorder %v784, %v786
      %v788 = vsel %vm787, %v783, inf
      %789 = vmin.xlane.f32.xlu0 %v788
      %v790 = vpop.xlane.xlu0 %789
      %v791 = vcvt.f32.s32 %v790
      %v792 = vcvt.f32.s32 %v786
      %v793 = vshll.u32 %v792, 16
      %v794 = vadd.s32 %v793, %v791
      %s795 = vtos %v794
      %vm796 = vcmp.eq.s32.totalorder %v206, 13
      %vm797 = vcmp.eq.s32.totalorder %v207, 13
      %v798 = vstv %s795
      %v799 = vsel %vm796, %v798, %v754
      %v800 = vsel %vm797, %v798, %v755
      %vm801 = vcmp.eq.s32.totalorder %v204, %v798
      %v802 = vsel %vm801, 1, 0
      %v803 = vcvt.s32.f32 %v802
      %v804 = vmul.f32 %v202, %v803
      %v805 = vsel %vm218, %v804, 0.0
      %806 = vadd.xlane.f32.xlu0 %v805
      %v807 = vpop.xlane.xlu0 %806
      %v808 = vsub.f32 %v202, %v807
      %v809 = vmul.f32 %v808, %v808
      %v810 = vsel %vm218, %v809, 0.0
      %v811 = vrot.slane %v810, 4
      %v812 = vadd.f32 %v810, %v811
      %v813 = vrot.slane %v812, 2
      %v814 = vadd.f32 %v812, %v813
      %v815 = vrot.slane %v814, 1
      %v816 = vadd.f32 %v814, %v815
      %v817 = vmin.f32 %v772, %v816
      %v818 = vsel %vm232, %v817, -inf
      %819 = vmax.xlane.f32.xlu0 %v818
      %v820 = vpop.xlane.xlu0 %819
      %s821 = vtos %v820
      %v822 = vstv %s821
      %vm823 = vcmp.eq.f32.partialorder %v817, %v822
      %v824 = vsel %vm823, %v204, 64
      %v825 = vsel %vm232, %v824, 2147483647
      %v826 = vand.u32 %v825, 65535
      %v827 = vshra.s32 %v825, 16
      %v828 = vcvt.s32.f32 %v826
      %v829 = vcvt.s32.f32 %v827
      %830 = vmin.xlane.f32.xlu0 %v829
      %v831 = vpop.xlane.xlu0 %830
      %vm832 = vcmp.eq.f32.partialorder %v829, %v831
      %v833 = vsel %vm832, %v828, inf
      %834 = vmin.xlane.f32.xlu0 %v833
      %v835 = vpop.xlane.xlu0 %834
      %v836 = vcvt.f32.s32 %v835
      %v837 = vcvt.f32.s32 %v831
      %v838 = vshll.u32 %v837, 16
      %v839 = vadd.s32 %v838, %v836
      %s840 = vtos %v839
      %vm841 = vcmp.eq.s32.totalorder %v206, 14
      %vm842 = vcmp.eq.s32.totalorder %v207, 14
      %v843 = vstv %s840
      %v844 = vsel %vm841, %v843, %v799
      %v845 = vsel %vm842, %v843, %v800
      %vm846 = vcmp.eq.s32.totalorder %v204, %v843
      %v847 = vsel %vm846, 1, 0
      %v848 = vcvt.s32.f32 %v847
      %v849 = vmul.f32 %v202, %v848
      %v850 = vsel %vm218, %v849, 0.0
      %851 = vadd.xlane.f32.xlu0 %v850
      %v852 = vpop.xlane.xlu0 %851
      %v853 = vsub.f32 %v202, %v852
      %v854 = vmul.f32 %v853, %v853
      %v855 = vsel %vm218, %v854, 0.0
      %v856 = vrot.slane %v855, 4
      %v857 = vadd.f32 %v855, %v856
      %v858 = vrot.slane %v857, 2
      %v859 = vadd.f32 %v857, %v858
      %v860 = vrot.slane %v859, 1
      %v861 = vadd.f32 %v859, %v860
      %v862 = vmin.f32 %v817, %v861
      %v863 = vsel %vm232, %v862, -inf
      %864 = vmax.xlane.f32.xlu0 %v863
      %v865 = vpop.xlane.xlu0 %864
      %s866 = vtos %v865
      %v867 = vstv %s866
      %vm868 = vcmp.eq.f32.partialorder %v862, %v867
      %v869 = vsel %vm868, %v204, 64
      %v870 = vsel %vm232, %v869, 2147483647
      %v871 = vand.u32 %v870, 65535
      %v872 = vshra.s32 %v870, 16
      %v873 = vcvt.s32.f32 %v871
      %v874 = vcvt.s32.f32 %v872
      %875 = vmin.xlane.f32.xlu0 %v874
      %v876 = vpop.xlane.xlu0 %875
      %vm877 = vcmp.eq.f32.partialorder %v874, %v876
      %v878 = vsel %vm877, %v873, inf
      %879 = vmin.xlane.f32.xlu0 %v878
      %v880 = vpop.xlane.xlu0 %879
      %v881 = vcvt.f32.s32 %v880
      %v882 = vcvt.f32.s32 %v876
      %v883 = vshll.u32 %v882, 16
      %v884 = vadd.s32 %v883, %v881
      %s885 = vtos %v884
      %vm886 = vcmp.eq.s32.totalorder %v206, 15
      %vm887 = vcmp.eq.s32.totalorder %v207, 15
      %v888 = vstv %s885
      %v889 = vsel %vm886, %v888, %v844
      %v890 = vsel %vm887, %v888, %v845
      %vm891 = vcmask 7168
      %892 = vst.msk [vmem:[%s196] sm:$0xff] %vm891, %v889
      %893 = vst.msk [vmem:[%s196 + $0x8] sm:$0xff] %vm891, %v890
      %vm894 = vcmp.eq.s32.totalorder %v889, %v204
      %vm895 = vcmp.eq.s32.totalorder %v890, %v204
      %v896 = vsel %vm894, 1, 0
      %v897 = vsel %vm895, 1, 0
      %v898 = vcvt.s32.f32 %v896
      %v899 = vcvt.s32.f32 %v897
      %v901 = vsel %vm232, %v898, 0
      %v904 = vsel %vm232, %v899, 0
      %v907 = vsel %vm232, %v202, 0
      %909 = vmatpush.xpose.msra.mxu0 0.0
      %910 = vmatpush.xpose.msra.mxu0 0.0
      %911 = vmatpush.xpose.msra.mxu0 0.0
      %912 = vmatpush.xpose.msra.mxu0 0.0
      %913 = vmatpush.xpose.msra.mxu0 0.0
      %914 = vmatpush.xpose.msra.mxu0 0.0
      %915 = vmatpush.xpose.msra.mxu0 0.0
      %916 = vmatpush.xpose.msra.mxu0 0.0
      %917 = vmatpush.xpose.msra.mxu0 0.0
      %918 = vmatpush.xpose.msra.mxu0 0.0
      %919 = vmatpush.xpose.msra.mxu0 0.0
      %920 = vmatpush.xpose.msra.mxu0 0.0
      %921 = vmatpush.xpose.msra.mxu0 0.0
      %922 = vmatpush.xpose.msra.mxu0 0.0
      %923 = vmatpush.xpose.msra.mxu0 0.0
      %v924 = vand.u32 %v907, 4294901760
      %925 = vmatpush.xpose.msra.mxu0 %v924
      %v926 = vand.u32 %v901, 4294901760
      %v927 = vsub.f32 %v901, %v926
      %v928 = vand.u32 %v927, 4294901760
      %v929 = vsub.f32 %v927, %v928
      %v930 = vand.u32 %v929, 4294901760
      %931 = vmatmul.f32.gmra.mxu0 %v930
      %v932 = vpop.f32.mrf.mxu0
      %v933 = vadd.f32 0.0, %v932
      %v934 = vand.u32 %v904, 4294901760
      %v935 = vsub.f32 %v904, %v934
      %v936 = vand.u32 %v935, 4294901760
      %v937 = vsub.f32 %v935, %v936
      %v938 = vand.u32 %v937, 4294901760
      %939 = vmatmul.f32.gmra.mxu0 %v938
      %v940 = vpop.f32.mrf.mxu0
      %v941 = vadd.f32 0.0, %v940
      %942 = vdwg.mxu0
      %943 = vmatpush.xpose.msra.mxu0 0.0
      %944 = vmatpush.xpose.msra.mxu0 0.0
      %945 = vmatpush.xpose.msra.mxu0 0.0
      %946 = vmatpush.xpose.msra.mxu0 0.0
      %947 = vmatpush.xpose.msra.mxu0 0.0
      %948 = vmatpush.xpose.msra.mxu0 0.0
      %949 = vmatpush.xpose.msra.mxu0 0.0
      %950 = vmatpush.xpose.msra.mxu0 0.0
      %951 = vmatpush.xpose.msra.mxu0 0.0
      %952 = vmatpush.xpose.msra.mxu0 0.0
      %953 = vmatpush.xpose.msra.mxu0 0.0
      %954 = vmatpush.xpose.msra.mxu0 0.0
      %955 = vmatpush.xpose.msra.mxu0 0.0
      %956 = vmatpush.xpose.msra.mxu0 0.0
      %957 = vmatpush.xpose.msra.mxu0 0.0
      %v958 = vand.u32 %v907, 4294901760
      %v959 = vsub.f32 %v907, %v958
      %v960 = vand.u32 %v959, 4294901760
      %v961 = vsub.f32 %v959, %v960
      %v962 = vand.u32 %v961, 4294901760
      %963 = vmatpush.xpose.msra.mxu0 %v962
      %v964 = vand.u32 %v901, 4294901760
      %965 = vmatmul.f32.gmra.mxu0 %v964
      %v966 = vpop.f32.mrf.mxu0
      %v967 = vadd.f32 %v933, %v966
      %v968 = vand.u32 %v904, 4294901760
      %969 = vmatmul.f32.gmra.mxu0 %v968
      %v970 = vpop.f32.mrf.mxu0
      %v971 = vadd.f32 %v941, %v970
      %972 = vdwg.mxu0
      %973 = vmatpush.xpose.msra.mxu0 0.0
      %974 = vmatpush.xpose.msra.mxu0 0.0
      %975 = vmatpush.xpose.msra.mxu0 0.0
      %976 = vmatpush.xpose.msra.mxu0 0.0
      %977 = vmatpush.xpose.msra.mxu0 0.0
      %978 = vmatpush.xpose.msra.mxu0 0.0
      %979 = vmatpush.xpose.msra.mxu0 0.0
      %980 = vmatpush.xpose.msra.mxu0 0.0
      %981 = vmatpush.xpose.msra.mxu0 0.0
      %982 = vmatpush.xpose.msra.mxu0 0.0
      %983 = vmatpush.xpose.msra.mxu0 0.0
      %984 = vmatpush.xpose.msra.mxu0 0.0
      %985 = vmatpush.xpose.msra.mxu0 0.0
      %986 = vmatpush.xpose.msra.mxu0 0.0
      %987 = vmatpush.xpose.msra.mxu0 0.0
      %v988 = vand.u32 %v907, 4294901760
      %v989 = vsub.f32 %v907, %v988
      %990 = vmatpush.xpose.msra.mxu0 %v989
      %v991 = vand.u32 %v901, 4294901760
      %v992 = vsub.f32 %v901, %v991
      %993 = vmatmul.f32.gmra.mxu0 %v992
      %v994 = vpop.f32.mrf.mxu0
      %v995 = vadd.f32 %v967, %v994
      %v996 = vand.u32 %v904, 4294901760
      %v997 = vsub.f32 %v904, %v996
      %998 = vmatmul.f32.gmra.mxu0 %v997
      %v999 = vpop.f32.mrf.mxu0
      %v1000 = vadd.f32 %v971, %v999
      %1001 = vdwg.mxu0
      %1002 = vmatpush.xpose.msra.mxu0 0.0
      %1003 = vmatpush.xpose.msra.mxu0 0.0
      %1004 = vmatpush.xpose.msra.mxu0 0.0
      %1005 = vmatpush.xpose.msra.mxu0 0.0
      %1006 = vmatpush.xpose.msra.mxu0 0.0
      %1007 = vmatpush.xpose.msra.mxu0 0.0
      %1008 = vmatpush.xpose.msra.mxu0 0.0
      %1009 = vmatpush.xpose.msra.mxu0 0.0
      %1010 = vmatpush.xpose.msra.mxu0 0.0
      %1011 = vmatpush.xpose.msra.mxu0 0.0
      %1012 = vmatpush.xpose.msra.mxu0 0.0
      %1013 = vmatpush.xpose.msra.mxu0 0.0
      %1014 = vmatpush.xpose.msra.mxu0 0.0
      %1015 = vmatpush.xpose.msra.mxu0 0.0
      %1016 = vmatpush.xpose.msra.mxu0 0.0
      %v1017 = vand.u32 %v907, 4294901760
      %1018 = vmatpush.xpose.msra.mxu0 %v1017
      %v1019 = vand.u32 %v901, 4294901760
      %v1020 = vsub.f32 %v901, %v1019
      %v1021 = vand.u32 %v1020, 4294901760
      %1022 = vmatmul.f32.gmra.mxu0 %v1021
      %v1023 = vpop.f32.mrf.mxu0
      %v1024 = vadd.f32 %v995, %v1023
      %v1025 = vand.u32 %v904, 4294901760
      %v1026 = vsub.f32 %v904, %v1025
      %v1027 = vand.u32 %v1026, 4294901760
      %1028 = vmatmul.f32.gmra.mxu0 %v1027
      %v1029 = vpop.f32.mrf.mxu0
      %v1030 = vadd.f32 %v1000, %v1029
      %1031 = vdwg.mxu0
      %1032 = vmatpush.xpose.msra.mxu0 0.0
      %1033 = vmatpush.xpose.msra.mxu0 0.0
      %1034 = vmatpush.xpose.msra.mxu0 0.0
      %1035 = vmatpush.xpose.msra.mxu0 0.0
      %1036 = vmatpush.xpose.msra.mxu0 0.0
      %1037 = vmatpush.xpose.msra.mxu0 0.0
      %1038 = vmatpush.xpose.msra.mxu0 0.0
      %1039 = vmatpush.xpose.msra.mxu0 0.0
      %1040 = vmatpush.xpose.msra.mxu0 0.0
      %1041 = vmatpush.xpose.msra.mxu0 0.0
      %1042 = vmatpush.xpose.msra.mxu0 0.0
      %1043 = vmatpush.xpose.msra.mxu0 0.0
      %1044 = vmatpush.xpose.msra.mxu0 0.0
      %1045 = vmatpush.xpose.msra.mxu0 0.0
      %1046 = vmatpush.xpose.msra.mxu0 0.0
      %v1047 = vand.u32 %v907, 4294901760
      %v1048 = vsub.f32 %v907, %v1047
      %v1049 = vand.u32 %v1048, 4294901760
      %1050 = vmatpush.xpose.msra.mxu0 %v1049
      %v1051 = vand.u32 %v901, 4294901760
      %1052 = vmatmul.f32.gmra.mxu0 %v1051
      %v1053 = vpop.f32.mrf.mxu0
      %v1054 = vadd.f32 %v1024, %v1053
      %v1055 = vand.u32 %v904, 4294901760
      %1056 = vmatmul.f32.gmra.mxu0 %v1055
      %v1057 = vpop.f32.mrf.mxu0
      %v1058 = vadd.f32 %v1030, %v1057
      %1059 = vdwg.mxu0
      %1060 = vmatpush.xpose.msra.mxu0 0.0
      %1061 = vmatpush.xpose.msra.mxu0 0.0
      %1062 = vmatpush.xpose.msra.mxu0 0.0
      %1063 = vmatpush.xpose.msra.mxu0 0.0
      %1064 = vmatpush.xpose.msra.mxu0 0.0
      %1065 = vmatpush.xpose.msra.mxu0 0.0
      %1066 = vmatpush.xpose.msra.mxu0 0.0
      %1067 = vmatpush.xpose.msra.mxu0 0.0
      %1068 = vmatpush.xpose.msra.mxu0 0.0
      %1069 = vmatpush.xpose.msra.mxu0 0.0
      %1070 = vmatpush.xpose.msra.mxu0 0.0
      %1071 = vmatpush.xpose.msra.mxu0 0.0
      %1072 = vmatpush.xpose.msra.mxu0 0.0
      %1073 = vmatpush.xpose.msra.mxu0 0.0
      %1074 = vmatpush.xpose.msra.mxu0 0.0
      %v1075 = vand.u32 %v907, 4294901760
      %1076 = vmatpush.xpose.msra.mxu0 %v1075
      %v1077 = vand.u32 %v901, 4294901760
      %1078 = vmatmul.f32.gmra.mxu0 %v1077
      %v1079 = vpop.f32.mrf.mxu0
      %v1080 = vadd.f32 %v1054, %v1079
      %v1081 = vand.u32 %v904, 4294901760
      %1082 = vmatmul.f32.gmra.mxu0 %v1081
      %v1083 = vpop.f32.mrf.mxu0
      %v1084 = vadd.f32 %v1058, %v1083
      %1085 = vdwg.mxu0
      %vm1086 = vcmask 23552
      %1087 = vst.msk [vmem:[%s191] sm:$0xff] %vm1086, %v1080
      %1088 = vst.msk [vmem:[%s191 + $0x8] sm:$0xff] %vm1086, %v1084
      %v1090 = vsel %vm1086, %v1080, 0
      %v1093 = vsel %vm1086, %v1084, 0
      %vm1095 = vcmask 1042432
      %v1096 = vsel %vm1095, %v202, 0
      %1098 = vmatpush.msra.mxu0 0.0
      %1099 = vmatpush.msra.mxu0 0.0
      %1100 = vmatpush.msra.mxu0 0.0
      %1101 = vmatpush.msra.mxu0 0.0
      %1102 = vmatpush.msra.mxu0 0.0
      %1103 = vmatpush.msra.mxu0 0.0
      %1104 = vmatpush.msra.mxu0 0.0
      %1105 = vmatpush.msra.mxu0 0.0
      %1106 = vmatpush.msra.mxu0 0.0
      %1107 = vmatpush.msra.mxu0 0.0
      %1108 = vmatpush.msra.mxu0 0.0
      %1109 = vmatpush.msra.mxu0 0.0
      %1110 = vmatpush.msra.mxu0 0.0
      %1111 = vmatpush.msra.mxu0 0.0
      %1112 = vmatpush.msra.mxu0 0.0
      %v1113 = vand.u32 %v1096, 4294901760
      %1114 = vmatpush.msra.mxu0 %v1113
      %v1115 = vand.u32 %v1090, 4294901760
      %v1116 = vsub.f32 %v1090, %v1115
      %v1117 = vand.u32 %v1116, 4294901760
      %v1118 = vsub.f32 %v1116, %v1117
      %v1119 = vand.u32 %v1118, 4294901760
      %1120 = vmatmul.f32.gmra.mxu0 %v1119
      %v1121 = vpop.f32.mrf.mxu0
      %v1122 = vadd.f32 0.0, %v1121
      %v1123 = vand.u32 %v1093, 4294901760
      %v1124 = vsub.f32 %v1093, %v1123
      %v1125 = vand.u32 %v1124, 4294901760
      %v1126 = vsub.f32 %v1124, %v1125
      %v1127 = vand.u32 %v1126, 4294901760
      %1128 = vmatmul.f32.gmra.mxu0 %v1127
      %v1129 = vpop.f32.mrf.mxu0
      %v1130 = vadd.f32 0.0, %v1129
      %1131 = vdwg.mxu0
      %1132 = vmatpush.msra.mxu0 0.0
      %1133 = vmatpush.msra.mxu0 0.0
      %1134 = vmatpush.msra.mxu0 0.0
      %1135 = vmatpush.msra.mxu0 0.0
      %1136 = vmatpush.msra.mxu0 0.0
      %1137 = vmatpush.msra.mxu0 0.0
      %1138 = vmatpush.msra.mxu0 0.0
      %1139 = vmatpush.msra.mxu0 0.0
      %1140 = vmatpush.msra.mxu0 0.0
      %1141 = vmatpush.msra.mxu0 0.0
      %1142 = vmatpush.msra.mxu0 0.0
      %1143 = vmatpush.msra.mxu0 0.0
      %1144 = vmatpush.msra.mxu0 0.0
      %1145 = vmatpush.msra.mxu0 0.0
      %1146 = vmatpush.msra.mxu0 0.0
      %v1147 = vand.u32 %v1096, 4294901760
      %v1148 = vsub.f32 %v1096, %v1147
      %v1149 = vand.u32 %v1148, 4294901760
      %v1150 = vsub.f32 %v1148, %v1149
      %v1151 = vand.u32 %v1150, 4294901760
      %1152 = vmatpush.msra.mxu0 %v1151
      %v1153 = vand.u32 %v1090, 4294901760
      %1154 = vmatmul.f32.gmra.mxu0 %v1153
      %v1155 = vpop.f32.mrf.mxu0
      %v1156 = vadd.f32 %v1122, %v1155
      %v1157 = vand.u32 %v1093, 4294901760
      %1158 = vmatmul.f32.gmra.mxu0 %v1157
      %v1159 = vpop.f32.mrf.mxu0
      %v1160 = vadd.f32 %v1130, %v1159
      %1161 = vdwg.mxu0
      %1162 = vmatpush.msra.mxu0 0.0
      %1163 = vmatpush.msra.mxu0 0.0
      %1164 = vmatpush.msra.mxu0 0.0
      %1165 = vmatpush.msra.mxu0 0.0
      %1166 = vmatpush.msra.mxu0 0.0
      %1167 = vmatpush.msra.mxu0 0.0
      %1168 = vmatpush.msra.mxu0 0.0
      %1169 = vmatpush.msra.mxu0 0.0
      %1170 = vmatpush.msra.mxu0 0.0
      %1171 = vmatpush.msra.mxu0 0.0
      %1172 = vmatpush.msra.mxu0 0.0
      %1173 = vmatpush.msra.mxu0 0.0
      %1174 = vmatpush.msra.mxu0 0.0
      %1175 = vmatpush.msra.mxu0 0.0
      %1176 = vmatpush.msra.mxu0 0.0
      %v1177 = vand.u32 %v1096, 4294901760
      %v1178 = vsub.f32 %v1096, %v1177
      %1179 = vmatpush.msra.mxu0 %v1178
      %v1180 = vand.u32 %v1090, 4294901760
      %v1181 = vsub.f32 %v1090, %v1180
      %1182 = vmatmul.f32.gmra.mxu0 %v1181
      %v1183 = vpop.f32.mrf.mxu0
      %v1184 = vadd.f32 %v1156, %v1183
      %v1185 = vand.u32 %v1093, 4294901760
      %v1186 = vsub.f32 %v1093, %v1185
      %1187 = vmatmul.f32.gmra.mxu0 %v1186
      %v1188 = vpop.f32.mrf.mxu0
      %v1189 = vadd.f32 %v1160, %v1188
      %1190 = vdwg.mxu0
      %1191 = vmatpush.msra.mxu0 0.0
      %1192 = vmatpush.msra.mxu0 0.0
      %1193 = vmatpush.msra.mxu0 0.0
      %1194 = vmatpush.msra.mxu0 0.0
      %1195 = vmatpush.msra.mxu0 0.0
      %1196 = vmatpush.msra.mxu0 0.0
      %1197 = vmatpush.msra.mxu0 0.0
      %1198 = vmatpush.msra.mxu0 0.0
      %1199 = vmatpush.msra.mxu0 0.0
      %1200 = vmatpush.msra.mxu0 0.0
      %1201 = vmatpush.msra.mxu0 0.0
      %1202 = vmatpush.msra.mxu0 0.0
      %1203 = vmatpush.msra.mxu0 0.0
      %1204 = vmatpush.msra.mxu0 0.0
      %1205 = vmatpush.msra.mxu0 0.0
      %v1206 = vand.u32 %v1096, 4294901760
      %1207 = vmatpush.msra.mxu0 %v1206
      %v1208 = vand.u32 %v1090, 4294901760
      %v1209 = vsub.f32 %v1090, %v1208
      %v1210 = vand.u32 %v1209, 4294901760
      %1211 = vmatmul.f32.gmra.mxu0 %v1210
      %v1212 = vpop.f32.mrf.mxu0
      %v1213 = vadd.f32 %v1184, %v1212
      %v1214 = vand.u32 %v1093, 4294901760
      %v1215 = vsub.f32 %v1093, %v1214
      %v1216 = vand.u32 %v1215, 4294901760
      %1217 = vmatmul.f32.gmra.mxu0 %v1216
      %v1218 = vpop.f32.mrf.mxu0
      %v1219 = vadd.f32 %v1189, %v1218
      %1220 = vdwg.mxu0
      %1221 = vmatpush.msra.mxu0 0.0
      %1222 = vmatpush.msra.mxu0 0.0
      %1223 = vmatpush.msra.mxu0 0.0
      %1224 = vmatpush.msra.mxu0 0.0
      %1225 = vmatpush.msra.mxu0 0.0
      %1226 = vmatpush.msra.mxu0 0.0
      %1227 = vmatpush.msra.mxu0 0.0
      %1228 = vmatpush.msra.mxu0 0.0
      %1229 = vmatpush.msra.mxu0 0.0
      %1230 = vmatpush.msra.mxu0 0.0
      %1231 = vmatpush.msra.mxu0 0.0
      %1232 = vmatpush.msra.mxu0 0.0
      %1233 = vmatpush.msra.mxu0 0.0
      %1234 = vmatpush.msra.mxu0 0.0
      %1235 = vmatpush.msra.mxu0 0.0
      %v1236 = vand.u32 %v1096, 4294901760
      %v1237 = vsub.f32 %v1096, %v1236
      %v1238 = vand.u32 %v1237, 4294901760
      %1239 = vmatpush.msra.mxu0 %v1238
      %v1240 = vand.u32 %v1090, 4294901760
      %1241 = vmatmul.f32.gmra.mxu0 %v1240
      %v1242 = vpop.f32.mrf.mxu0
      %v1243 = vadd.f32 %v1213, %v1242
      %v1244 = vand.u32 %v1093, 4294901760
      %1245 = vmatmul.f32.gmra.mxu0 %v1244
      %v1246 = vpop.f32.mrf.mxu0
      %v1247 = vadd.f32 %v1219, %v1246
      %1248 = vdwg.mxu0
      %1249 = vmatpush.msra.mxu0 0.0
      %1250 = vmatpush.msra.mxu0 0.0
      %1251 = vmatpush.msra.mxu0 0.0
      %1252 = vmatpush.msra.mxu0 0.0
      %1253 = vmatpush.msra.mxu0 0.0
      %1254 = vmatpush.msra.mxu0 0.0
      %1255 = vmatpush.msra.mxu0 0.0
      %1256 = vmatpush.msra.mxu0 0.0
      %1257 = vmatpush.msra.mxu0 0.0
      %1258 = vmatpush.msra.mxu0 0.0
      %1259 = vmatpush.msra.mxu0 0.0
      %1260 = vmatpush.msra.mxu0 0.0
      %1261 = vmatpush.msra.mxu0 0.0
      %1262 = vmatpush.msra.mxu0 0.0
      %1263 = vmatpush.msra.mxu0 0.0
      %v1264 = vand.u32 %v1096, 4294901760
      %1265 = vmatpush.msra.mxu0 %v1264
      %v1266 = vand.u32 %v1090, 4294901760
      %1267 = vmatmul.f32.gmra.mxu0 %v1266
      %v1268 = vpop.f32.mrf.mxu0
      %v1269 = vadd.f32 %v1243, %v1268
      %v1270 = vand.u32 %v1093, 4294901760
      %1271 = vmatmul.f32.gmra.mxu0 %v1270
      %v1272 = vpop.f32.mrf.mxu0
      %v1273 = vadd.f32 %v1247, %v1272
      %1274 = vdwg.mxu0
      %v1275 = vmul.f32 %v1080, %v1080
      %v1276 = vmul.f32 %v1084, %v1084
      %v1277 = vsel %vm1086, %v1275, 0.0
      %1278 = vadd.xlane.f32.xlu0 %v1277
      %v1279 = vpop.xlane.xlu0 %1278
      %v1280 = vsel %vm1086, %v1276, 0.0
      %1281 = vadd.xlane.f32.xlu0 %v1280
      %v1282 = vpop.xlane.xlu0 %1281
      %v1283 = vmul.f32 %v202, %v202
      %v1284 = vsel %vm218, %v1283, 0.0
      %v1285 = vrot.slane %v1284, 4
      %v1286 = vadd.f32 %v1284, %v1285
      %v1287 = vrot.slane %v1286, 2
      %v1288 = vadd.f32 %v1286, %v1287
      %v1289 = vrot.slane %v1288, 1
      %v1290 = vadd.f32 %v1288, %v1289
      %v1291 = vadd.f32 %v1279, %v1290
      %v1292 = vadd.f32 %v1282, %v1290
      %v1293 = vmul.f32 %v1269, 2.0
      %v1294 = vmul.f32 %v1273, 2.0
      %v1295 = vsub.f32 %v1291, %v1293
      %v1296 = vsub.f32 %v1292, %v1294
      %vm1297 = vcmp.le.f32.partialorder %v1295, 0.09
      %vm1298 = vcmp.le.f32.partialorder %v1296, 0.09
      %v1299 = vsel %vm1297, %v204, 64
      %v1300 = vsel %vm1298, %v204, 64
      %v1301 = vsel %vm232, %v1299, 2147483647
      %v1302 = vand.u32 %v1301, 65535
      %v1303 = vshra.s32 %v1301, 16
      %v1304 = vcvt.s32.f32 %v1302
      %v1305 = vcvt.s32.f32 %v1303
      %1306 = vmin.xlane.f32.xlu0 %v1305
      %v1307 = vpop.xlane.xlu0 %1306
      %vm1308 = vcmp.eq.f32.partialorder %v1305, %v1307
      %v1309 = vsel %vm1308, %v1304, inf
      %1310 = vmin.xlane.f32.xlu0 %v1309
      %v1311 = vpop.xlane.xlu0 %1310
      %v1312 = vcvt.f32.s32 %v1311
      %v1313 = vcvt.f32.s32 %v1307
      %v1314 = vshll.u32 %v1313, 16
      %v1315 = vadd.s32 %v1314, %v1312
      %v1316 = vsel %vm232, %v1300, 2147483647
      %v1317 = vand.u32 %v1316, 65535
      %v1318 = vshra.s32 %v1316, 16
      %v1319 = vcvt.s32.f32 %v1317
      %v1320 = vcvt.s32.f32 %v1318
      %1321 = vmin.xlane.f32.xlu0 %v1320
      %v1322 = vpop.xlane.xlu0 %1321
      %vm1323 = vcmp.eq.f32.partialorder %v1320, %v1322
      %v1324 = vsel %vm1323, %v1319, inf
      %1325 = vmin.xlane.f32.xlu0 %v1324
      %v1326 = vpop.xlane.xlu0 %1325
      %v1327 = vcvt.f32.s32 %v1326
      %v1328 = vcvt.f32.s32 %v1322
      %v1329 = vshll.u32 %v1328, 16
      %v1330 = vadd.s32 %v1329, %v1327
      %vm1331 = vcmp.eq.s32.totalorder %v1299, %v1315
      %vm1332 = vcmp.eq.s32.totalorder %v1300, %v1330
      %v1333 = vsel %vm1331, 64, %v1299
      %v1334 = vsel %vm1332, 64, %v1300
      %v1335 = vsel %vm232, %v1333, 2147483647
      %v1336 = vand.u32 %v1335, 65535
      %v1337 = vshra.s32 %v1335, 16
      %v1338 = vcvt.s32.f32 %v1336
      %v1339 = vcvt.s32.f32 %v1337
      %1340 = vmin.xlane.f32.xlu0 %v1339
      %v1341 = vpop.xlane.xlu0 %1340
      %vm1342 = vcmp.eq.f32.partialorder %v1339, %v1341
      %v1343 = vsel %vm1342, %v1338, inf
      %1344 = vmin.xlane.f32.xlu0 %v1343
      %v1345 = vpop.xlane.xlu0 %1344
      %v1346 = vcvt.f32.s32 %v1345
      %v1347 = vcvt.f32.s32 %v1341
      %v1348 = vshll.u32 %v1347, 16
      %v1349 = vadd.s32 %v1348, %v1346
      %v1350 = vsel %vm232, %v1334, 2147483647
      %v1351 = vand.u32 %v1350, 65535
      %v1352 = vshra.s32 %v1350, 16
      %v1353 = vcvt.s32.f32 %v1351
      %v1354 = vcvt.s32.f32 %v1352
      %1355 = vmin.xlane.f32.xlu0 %v1354
      %v1356 = vpop.xlane.xlu0 %1355
      %vm1357 = vcmp.eq.f32.partialorder %v1354, %v1356
      %v1358 = vsel %vm1357, %v1353, inf
      %1359 = vmin.xlane.f32.xlu0 %v1358
      %v1360 = vpop.xlane.xlu0 %1359
      %v1361 = vcvt.f32.s32 %v1360
      %v1362 = vcvt.f32.s32 %v1356
      %v1363 = vshll.u32 %v1362, 16
      %v1364 = vadd.s32 %v1363, %v1361
      %vm1365 = vcmp.eq.s32.totalorder %v1333, %v1349
      %vm1366 = vcmp.eq.s32.totalorder %v1334, %v1364
      %v1367 = vsel %vm1365, 64, %v1333
      %v1368 = vsel %vm1366, 64, %v1334
      %v1369 = vsel %vm232, %v1367, 2147483647
      %v1370 = vand.u32 %v1369, 65535
      %v1371 = vshra.s32 %v1369, 16
      %v1372 = vcvt.s32.f32 %v1370
      %v1373 = vcvt.s32.f32 %v1371
      %1374 = vmin.xlane.f32.xlu0 %v1373
      %v1375 = vpop.xlane.xlu0 %1374
      %vm1376 = vcmp.eq.f32.partialorder %v1373, %v1375
      %v1377 = vsel %vm1376, %v1372, inf
      %1378 = vmin.xlane.f32.xlu0 %v1377
      %v1379 = vpop.xlane.xlu0 %1378
      %v1380 = vcvt.f32.s32 %v1379
      %v1381 = vcvt.f32.s32 %v1375
      %v1382 = vshll.u32 %v1381, 16
      %v1383 = vadd.s32 %v1382, %v1380
      %v1384 = vsel %vm232, %v1368, 2147483647
      %v1385 = vand.u32 %v1384, 65535
      %v1386 = vshra.s32 %v1384, 16
      %v1387 = vcvt.s32.f32 %v1385
      %v1388 = vcvt.s32.f32 %v1386
      %1389 = vmin.xlane.f32.xlu0 %v1388
      %v1390 = vpop.xlane.xlu0 %1389
      %vm1391 = vcmp.eq.f32.partialorder %v1388, %v1390
      %v1392 = vsel %vm1391, %v1387, inf
      %1393 = vmin.xlane.f32.xlu0 %v1392
      %v1394 = vpop.xlane.xlu0 %1393
      %v1395 = vcvt.f32.s32 %v1394
      %v1396 = vcvt.f32.s32 %v1390
      %v1397 = vshll.u32 %v1396, 16
      %v1398 = vadd.s32 %v1397, %v1395
      %vm1399 = vcmp.eq.s32.totalorder %v1367, %v1383
      %vm1400 = vcmp.eq.s32.totalorder %v1368, %v1398
      %v1401 = vsel %vm1399, 64, %v1367
      %v1402 = vsel %vm1400, 64, %v1368
      %v1403 = vsel %vm232, %v1401, 2147483647
      %v1404 = vand.u32 %v1403, 65535
      %v1405 = vshra.s32 %v1403, 16
      %v1406 = vcvt.s32.f32 %v1404
      %v1407 = vcvt.s32.f32 %v1405
      %1408 = vmin.xlane.f32.xlu0 %v1407
      %v1409 = vpop.xlane.xlu0 %1408
      %vm1410 = vcmp.eq.f32.partialorder %v1407, %v1409
      %v1411 = vsel %vm1410, %v1406, inf
      %1412 = vmin.xlane.f32.xlu0 %v1411
      %v1413 = vpop.xlane.xlu0 %1412
      %v1414 = vcvt.f32.s32 %v1413
      %v1415 = vcvt.f32.s32 %v1409
      %v1416 = vshll.u32 %v1415, 16
      %v1417 = vadd.s32 %v1416, %v1414
      %v1418 = vsel %vm232, %v1402, 2147483647
      %v1419 = vand.u32 %v1418, 65535
      %v1420 = vshra.s32 %v1418, 16
      %v1421 = vcvt.s32.f32 %v1419
      %v1422 = vcvt.s32.f32 %v1420
      %1423 = vmin.xlane.f32.xlu0 %v1422
      %v1424 = vpop.xlane.xlu0 %1423
      %vm1425 = vcmp.eq.f32.partialorder %v1422, %v1424
      %v1426 = vsel %vm1425, %v1421, inf
      %1427 = vmin.xlane.f32.xlu0 %v1426
      %v1428 = vpop.xlane.xlu0 %1427
      %v1429 = vcvt.f32.s32 %v1428
      %v1430 = vcvt.f32.s32 %v1424
      %v1431 = vshll.u32 %v1430, 16
      %v1432 = vadd.s32 %v1431, %v1429
      %vm1433 = vcmp.eq.s32.totalorder %v1401, %v1417
      %vm1434 = vcmp.eq.s32.totalorder %v1402, %v1432
      %v1435 = vsel %vm1433, 64, %v1401
      %v1436 = vsel %vm1434, 64, %v1402
      %v1437 = vsel %vm232, %v1435, 2147483647
      %v1438 = vand.u32 %v1437, 65535
      %v1439 = vshra.s32 %v1437, 16
      %v1440 = vcvt.s32.f32 %v1438
      %v1441 = vcvt.s32.f32 %v1439
      %1442 = vmin.xlane.f32.xlu0 %v1441
      %v1443 = vpop.xlane.xlu0 %1442
      %vm1444 = vcmp.eq.f32.partialorder %v1441, %v1443
      %v1445 = vsel %vm1444, %v1440, inf
      %1446 = vmin.xlane.f32.xlu0 %v1445
      %v1447 = vpop.xlane.xlu0 %1446
      %v1448 = vcvt.f32.s32 %v1447
      %v1449 = vcvt.f32.s32 %v1443
      %v1450 = vshll.u32 %v1449, 16
      %v1451 = vadd.s32 %v1450, %v1448
      %v1452 = vsel %vm232, %v1436, 2147483647
      %v1453 = vand.u32 %v1452, 65535
      %v1454 = vshra.s32 %v1452, 16
      %v1455 = vcvt.s32.f32 %v1453
      %v1456 = vcvt.s32.f32 %v1454
      %1457 = vmin.xlane.f32.xlu0 %v1456
      %v1458 = vpop.xlane.xlu0 %1457
      %vm1459 = vcmp.eq.f32.partialorder %v1456, %v1458
      %v1460 = vsel %vm1459, %v1455, inf
      %1461 = vmin.xlane.f32.xlu0 %v1460
      %v1462 = vpop.xlane.xlu0 %1461
      %v1463 = vcvt.f32.s32 %v1462
      %v1464 = vcvt.f32.s32 %v1458
      %v1465 = vshll.u32 %v1464, 16
      %v1466 = vadd.s32 %v1465, %v1463
      %vm1467 = vcmp.eq.s32.totalorder %v1435, %v1451
      %vm1468 = vcmp.eq.s32.totalorder %v1436, %v1466
      %v1469 = vsel %vm1467, 64, %v1435
      %v1470 = vsel %vm1468, 64, %v1436
      %v1471 = vsel %vm232, %v1469, 2147483647
      %v1472 = vand.u32 %v1471, 65535
      %v1473 = vshra.s32 %v1471, 16
      %v1474 = vcvt.s32.f32 %v1472
      %v1475 = vcvt.s32.f32 %v1473
      %1476 = vmin.xlane.f32.xlu0 %v1475
      %v1477 = vpop.xlane.xlu0 %1476
      %vm1478 = vcmp.eq.f32.partialorder %v1475, %v1477
      %v1479 = vsel %vm1478, %v1474, inf
      %1480 = vmin.xlane.f32.xlu0 %v1479
      %v1481 = vpop.xlane.xlu0 %1480
      %v1482 = vcvt.f32.s32 %v1481
      %v1483 = vcvt.f32.s32 %v1477
      %v1484 = vshll.u32 %v1483, 16
      %v1485 = vadd.s32 %v1484, %v1482
      %v1486 = vsel %vm232, %v1470, 2147483647
      %v1487 = vand.u32 %v1486, 65535
      %v1488 = vshra.s32 %v1486, 16
      %v1489 = vcvt.s32.f32 %v1487
      %v1490 = vcvt.s32.f32 %v1488
      %1491 = vmin.xlane.f32.xlu0 %v1490
      %v1492 = vpop.xlane.xlu0 %1491
      %vm1493 = vcmp.eq.f32.partialorder %v1490, %v1492
      %v1494 = vsel %vm1493, %v1489, inf
      %1495 = vmin.xlane.f32.xlu0 %v1494
      %v1496 = vpop.xlane.xlu0 %1495
      %v1497 = vcvt.f32.s32 %v1496
      %v1498 = vcvt.f32.s32 %v1492
      %v1499 = vshll.u32 %v1498, 16
      %v1500 = vadd.s32 %v1499, %v1497
      %vm1501 = vcmp.eq.s32.totalorder %v1469, %v1485
      %vm1502 = vcmp.eq.s32.totalorder %v1470, %v1500
      %v1503 = vsel %vm1501, 64, %v1469
      %v1504 = vsel %vm1502, 64, %v1470
      %v1505 = vsel %vm232, %v1503, 2147483647
      %v1506 = vand.u32 %v1505, 65535
      %v1507 = vshra.s32 %v1505, 16
      %v1508 = vcvt.s32.f32 %v1506
      %v1509 = vcvt.s32.f32 %v1507
      %1510 = vmin.xlane.f32.xlu0 %v1509
      %v1511 = vpop.xlane.xlu0 %1510
      %vm1512 = vcmp.eq.f32.partialorder %v1509, %v1511
      %v1513 = vsel %vm1512, %v1508, inf
      %1514 = vmin.xlane.f32.xlu0 %v1513
      %v1515 = vpop.xlane.xlu0 %1514
      %v1516 = vcvt.f32.s32 %v1515
      %v1517 = vcvt.f32.s32 %v1511
      %v1518 = vshll.u32 %v1517, 16
      %v1519 = vadd.s32 %v1518, %v1516
      %v1520 = vsel %vm232, %v1504, 2147483647
      %v1521 = vand.u32 %v1520, 65535
      %v1522 = vshra.s32 %v1520, 16
      %v1523 = vcvt.s32.f32 %v1521
      %v1524 = vcvt.s32.f32 %v1522
      %1525 = vmin.xlane.f32.xlu0 %v1524
      %v1526 = vpop.xlane.xlu0 %1525
      %vm1527 = vcmp.eq.f32.partialorder %v1524, %v1526
      %v1528 = vsel %vm1527, %v1523, inf
      %1529 = vmin.xlane.f32.xlu0 %v1528
      %v1530 = vpop.xlane.xlu0 %1529
      %v1531 = vcvt.f32.s32 %v1530
      %v1532 = vcvt.f32.s32 %v1526
      %v1533 = vshll.u32 %v1532, 16
      %v1534 = vadd.s32 %v1533, %v1531
      %vm1535 = vcmp.eq.s32.totalorder %v1503, %v1519
      %vm1536 = vcmp.eq.s32.totalorder %v1504, %v1534
      %v1537 = vsel %vm1535, 64, %v1503
      %v1538 = vsel %vm1536, 64, %v1504
      %v1539 = vsel %vm232, %v1537, 2147483647
      %v1540 = vand.u32 %v1539, 65535
      %v1541 = vshra.s32 %v1539, 16
      %v1542 = vcvt.s32.f32 %v1540
      %v1543 = vcvt.s32.f32 %v1541
      %1544 = vmin.xlane.f32.xlu0 %v1543
      %v1545 = vpop.xlane.xlu0 %1544
      %vm1546 = vcmp.eq.f32.partialorder %v1543, %v1545
      %v1547 = vsel %vm1546, %v1542, inf
      %1548 = vmin.xlane.f32.xlu0 %v1547
      %v1549 = vpop.xlane.xlu0 %1548
      %v1550 = vcvt.f32.s32 %v1549
      %v1551 = vcvt.f32.s32 %v1545
      %v1552 = vshll.u32 %v1551, 16
      %v1553 = vadd.s32 %v1552, %v1550
      %v1554 = vsel %vm232, %v1538, 2147483647
      %v1555 = vand.u32 %v1554, 65535
      %v1556 = vshra.s32 %v1554, 16
      %v1557 = vcvt.s32.f32 %v1555
      %v1558 = vcvt.s32.f32 %v1556
      %1559 = vmin.xlane.f32.xlu0 %v1558
      %v1560 = vpop.xlane.xlu0 %1559
      %vm1561 = vcmp.eq.f32.partialorder %v1558, %v1560
      %v1562 = vsel %vm1561, %v1557, inf
      %1563 = vmin.xlane.f32.xlu0 %v1562
      %v1564 = vpop.xlane.xlu0 %1563
      %v1565 = vcvt.f32.s32 %v1564
      %v1566 = vcvt.f32.s32 %v1560
      %v1567 = vshll.u32 %v1566, 16
      %v1568 = vadd.s32 %v1567, %v1565
      %v1569 = vsel %vm891, %v1315, %v1349
      %v1570 = vsel %vm891, %v1330, %v1364
      %vm1571 = vcmask 15360
      %v1572 = vsel %vm1571, %v1569, %v1383
      %v1573 = vsel %vm1571, %v1570, %v1398
      %v1574 = vsel %vm1086, %v1572, %v1417
      %v1575 = vsel %vm1086, %v1573, %v1432
      %vm1576 = vcmask 31744
      %v1577 = vsel %vm1576, %v1574, %v1451
      %v1578 = vsel %vm1576, %v1575, %v1466
      %vm1579 = vcmask 39936
      %v1580 = vsel %vm1579, %v1577, %v1485
      %v1581 = vsel %vm1579, %v1578, %v1500
      %vm1582 = vcmask 48128
      %v1583 = vsel %vm1582, %v1580, %v1519
      %v1584 = vsel %vm1582, %v1581, %v1534
      %vm1585 = vcmask 56320
      %v1586 = vsel %vm1585, %v1583, %v1553
      %v1587 = vsel %vm1585, %v1584, %v1568
      %vm1588 = vcmp.eq.s32.totalorder %v1586, 64
      %vm1589 = vcmp.eq.s32.totalorder %v1587, 64
      %v1590 = vsel %vm1588, %v1315, %v1586
      %v1591 = vsel %vm1589, %v1330, %v1587
      %vm1592 = vcmask 64512
      %1593 = vst.msk [vmem:[%s201] sm:$0xff] %vm1592, %v1590
      %1594 = vst.msk [vmem:[%s201 + $0x8] sm:$0xff] %vm1592, %v1591
      %p1595 = scmp.lt.s32.totalorder %s24, 1
      %s1596 = scalar_select %p1595, %s24, 1
      %s1597 = smul.addr %s1596, 2
      %s1598 = smul.addr %s1597, 8
      %s1599 = scalar_lea.vmem %s2, %s1598
      %p1600 = scmp.lt.s32.totalorder %s24, 1
      %s1601 = scalar_select %p1600, %s24, 1
      %s1602 = smul.addr %s1601, 2
      %s1603 = smul.addr %s1602, 8
      %s1604 = scalar_lea.vmem %s3, %s1603
      %p1605 = scmp.lt.s32.totalorder %s24, 1
      %s1606 = scalar_select %p1605, %s24, 1
      %s1607 = smul.addr %s1606, 2
      %s1608 = smul.addr %s1607, 8
      %s1609 = scalar_lea.vmem %s4, %s1608
      // Predicated region
      $region25: #{local_grouper.2} parent=23 // pred_check
        %p1610 = pneg %p68
      $region26: #{local_grouper.2} parent=23 // pred_check_branch
        %1612 = sbr.rel (%p1610) target = $region28
      $region27: #{local_grouper.2} parent=23 // pred_region
        _
      $region28: #{local_grouper.2} parent=23 // pred_fallthru
        _
      // Predicated region
      $region29: #{local_grouper.2} parent=23 // pred_check
        %p1613 = pneg %p94
      $region30: #{local_grouper.2} parent=23 // pred_check_branch
        %1615 = sbr.rel (%p1613) target = $region32
      $region31: #{local_grouper.2} parent=23 // pred_region
        _
      $region32: #{local_grouper.2} parent=23 // pred_fallthru
        _
      // Predicated region
      $region33: #{local_grouper.2} parent=23 // pred_check
        %p1616 = pneg %p120
      $region34: #{local_grouper.2} parent=23 // pred_check_branch
        %1618 = sbr.rel (%p1616) target = $region36
      $region35: #{local_grouper.2} parent=23 // pred_region
        _
      $region36: #{local_grouper.2} parent=23 // pred_fallthru
        _
    $region24: #{local_grouper.2} parent=5 // pred_fallthru
      _
    %p1619 = scmp.le.s32.totalorder 2, %s19
    // Predicated region
    $region37: #{local_grouper.2} parent=5 // pred_check
      %p1620 = pneg %p1619
    $region38: #{local_grouper.2} parent=5 // pred_check_branch
      %1622 = sbr.rel (%p1620) target = $region40
    $region39: #{local_grouper.2} parent=5 // pred_region
      %s1623 = ssub.s32 %s19, 2
      // Predicated region
      $region41: #{local_grouper.2} parent=39 // pred_check
        %p1624 = pneg %p74
      $region42: #{local_grouper.2} parent=39 // pred_check_branch
        %1626 = sbr.rel (%p1624) target = $region44
      $region43: #{local_grouper.2} parent=39 // pred_region
        %p1627 = scmp.lt.s32.totalorder %s25, 1
        %s1628 = scalar_select %p1627, %s25, 1
        %s1629 = smul.addr %s1628, 2
        %s1630 = smul.addr %s1629, 8
        %s1631 = scalar_lea.vmem %s2, %s1630
      $region44: #{local_grouper.2} parent=39 // pred_fallthru
        _
      // Predicated region
      $region45: #{local_grouper.2} parent=39 // pred_check
        %p1632 = pneg %p100
      $region46: #{local_grouper.2} parent=39 // pred_check_branch
        %1634 = sbr.rel (%p1632) target = $region48
      $region47: #{local_grouper.2} parent=39 // pred_region
        %p1635 = scmp.lt.s32.totalorder %s25, 1
        %s1636 = scalar_select %p1635, %s25, 1
        %s1637 = smul.addr %s1636, 2
        %s1638 = smul.addr %s1637, 8
        %s1639 = scalar_lea.vmem %s3, %s1638
      $region48: #{local_grouper.2} parent=39 // pred_fallthru
        _
      // Predicated region
      $region49: #{local_grouper.2} parent=39 // pred_check
        %p1640 = pneg %p126
      $region50: #{local_grouper.2} parent=39 // pred_check_branch
        %1642 = sbr.rel (%p1640) target = $region52
      $region51: #{local_grouper.2} parent=39 // pred_region
        %p1643 = scmp.lt.s32.totalorder %s25, 1
        %s1644 = scalar_select %p1643, %s25, 1
        %s1645 = smul.addr %s1644, 2
        %s1646 = smul.addr %s1645, 8
        %s1647 = scalar_lea.vmem %s4, %s1646
      $region52: #{local_grouper.2} parent=39 // pred_fallthru
        _
    $region40: #{local_grouper.2} parent=5 // pred_fallthru
      _
  $region6: #{local_grouper.2} parent=0 // loop_footer
    %s23 = sadd.s32 1, %s19
  $region7: #{local_grouper.2} parent=0 // loop_footer_branch
    %18 = sbr.rel target = $region3
  $region8: #{local_grouper.2} parent=0 // loop_exit
    _

// kernel: local_grouper.3
$region0: #{local_grouper.3}
  #allocation0 [shape = 'u32[]', space=smem, size = 0x4, offset = 0x4, fixed_abs, tag = 'smem constant byte address 0x4 - core index']
  #allocation1 [shape = 'u32[72,128]{1,0:T(1,128)}', space=vmem, size = 0x9000, scoped, tag = 'internal scratch']
  %s0 = inlined_call_operand.vmem [shape: s32[2,128,1], index: 0, kind: input, shape index: {}]
  %s1 = inlined_call_operand.vmem [shape: s32[2,128,1], index: 1, kind: input, shape index: {}]
  %s2 = inlined_call_operand.vmem [shape: f32[2,64,7], index: 2, kind: input, shape index: {}]
  %s3 = inlined_call_operand.vmem [shape: f32[2,128,11], index: 3, kind: output, shape index: {}]
  %s4 = sld [smem:[#allocation0]]
  $region45: #{local_grouper.3} parent=0
    _
  %s6 = ssub.s32 1, %s4
  %s7 = scalar_select 0, %s6, %s4
  loop: start=0, step=1, limit=4
  $region2: #{local_grouper.3} parent=0 // loop_pre_header
    _
  $region3: #{local_grouper.3} parent=0 // loop_header
    %s9 = sphi 0, %s13
    %p10 = scmp.ge.s32.totalorder %s9, 4
    %s19 = sphi 0, %s21
    %s22 = sphi 0, %s19
    %s23 = sphi 0, %s22
    %s39 = sphi 0, %s23
    %s45 = sphi 0, %s47
    %s48 = sphi 0, %s45
    %s49 = sphi 0, %s48
    %s65 = sphi 0, %s49
    %s71 = sphi 0, %s73
    %s74 = sphi 0, %s71
    %s75 = sphi 0, %s74
    %s91 = sphi 0, %s75
    %s97 = sphi 0, %s99
    %s100 = sphi 0, %s97
    %s101 = sphi 0, %s100
    %s117 = sphi 0, %s101
  $region4: #{local_grouper.3} parent=0 // loop_header_branch
    %12 = sbr.rel (%p10) target = $region8
  $region5: #{local_grouper.3} parent=0 // loop_body
    %s14 = ssub.s32 %s9, 1
    %s15 = ssub.s32 %s9, 2
    %s16 = sadd.s32 %s9, 1
    %s17 = ssub.s32 %s9, %s16
    %p18 = scmp.eq.s32.totalorder %s17, 0
    %s20 = sadd.s32 %s19, 1
    %s21 = scalar_select %p18, %s19, %s20
    %p24 = pneg %p18
    %p25 = scmp.eq.s32.totalorder %s9, 1
    %p26 = por %p24, %p25
    %p27 = scmp.ne.s32.totalorder %s19, %s22
    %p28 = scmp.eq.s32.totalorder %s9, 0
    %p29 = por %p27, %p28
    %p30 = scmp.ne.s32.totalorder %s19, %s22
    %p31 = scmp.eq.s32.totalorder %s14, 1
    %p32 = por %p30, %p31
    %p33 = scmp.ne.s32.totalorder %s22, %s23
    %p34 = scmp.eq.s32.totalorder %s14, 0
    %p35 = por %p33, %p34
    %p36 = scmp.ne.s32.totalorder %s22, %s23
    %p37 = scmp.eq.s32.totalorder %s15, 1
    %p38 = por %p36, %p37
    %p40 = scmp.ne.s32.totalorder %s23, %s39
    %p41 = scmp.eq.s32.totalorder %s15, 0
    %p42 = por %p40, %p41
    %s43 = ssub.s32 %s9, %s16
    %p44 = scmp.eq.s32.totalorder %s43, 0
    %s46 = sadd.s32 %s45, 1
    %s47 = scalar_select %p44, %s45, %s46
    %p50 = pneg %p44
    %p51 = scmp.eq.s32.totalorder %s9, 1
    %p52 = por %p50, %p51
    %p53 = scmp.ne.s32.totalorder %s45, %s48
    %p54 = scmp.eq.s32.totalorder %s9, 0
    %p55 = por %p53, %p54
    %p56 = scmp.ne.s32.totalorder %s45, %s48
    %p57 = scmp.eq.s32.totalorder %s14, 1
    %p58 = por %p56, %p57
    %p59 = scmp.ne.s32.totalorder %s48, %s49
    %p60 = scmp.eq.s32.totalorder %s14, 0
    %p61 = por %p59, %p60
    %p62 = scmp.ne.s32.totalorder %s48, %s49
    %p63 = scmp.eq.s32.totalorder %s15, 1
    %p64 = por %p62, %p63
    %p66 = scmp.ne.s32.totalorder %s49, %s65
    %p67 = scmp.eq.s32.totalorder %s15, 0
    %p68 = por %p66, %p67
    %s69 = ssub.s32 %s9, %s16
    %p70 = scmp.eq.s32.totalorder %s69, 0
    %s72 = sadd.s32 %s71, 1
    %s73 = scalar_select %p70, %s71, %s72
    %p76 = pneg %p70
    %p77 = scmp.eq.s32.totalorder %s9, 1
    %p78 = por %p76, %p77
    %p79 = scmp.ne.s32.totalorder %s71, %s74
    %p80 = scmp.eq.s32.totalorder %s9, 0
    %p81 = por %p79, %p80
    %p82 = scmp.ne.s32.totalorder %s71, %s74
    %p83 = scmp.eq.s32.totalorder %s14, 1
    %p84 = por %p82, %p83
    %p85 = scmp.ne.s32.totalorder %s74, %s75
    %p86 = scmp.eq.s32.totalorder %s14, 0
    %p87 = por %p85, %p86
    %p88 = scmp.ne.s32.totalorder %s74, %s75
    %p89 = scmp.eq.s32.totalorder %s15, 1
    %p90 = por %p88, %p89
    %p92 = scmp.ne.s32.totalorder %s75, %s91
    %p93 = scmp.eq.s32.totalorder %s15, 0
    %p94 = por %p92, %p93
    %s95 = ssub.s32 %s9, %s16
    %p96 = scmp.eq.s32.totalorder %s95, 0
    %s98 = sadd.s32 %s97, 1
    %s99 = scalar_select %p96, %s97, %s98
    %p102 = pneg %p96
    %p103 = scmp.eq.s32.totalorder %s9, 1
    %p104 = por %p102, %p103
    %p105 = scmp.ne.s32.totalorder %s97, %s100
    %p106 = scmp.eq.s32.totalorder %s9, 0
    %p107 = por %p105, %p106
    %p108 = scmp.ne.s32.totalorder %s97, %s100
    %p109 = scmp.eq.s32.totalorder %s14, 1
    %p110 = por %p108, %p109
    %p111 = scmp.ne.s32.totalorder %s100, %s101
    %p112 = scmp.eq.s32.totalorder %s14, 0
    %p113 = por %p111, %p112
    %p114 = scmp.ne.s32.totalorder %s100, %s101
    %p115 = scmp.eq.s32.totalorder %s15, 1
    %p116 = por %p114, %p115
    %p118 = scmp.ne.s32.totalorder %s101, %s117
    %p119 = scmp.eq.s32.totalorder %s15, 0
    %p120 = por %p118, %p119
    %p121 = scmp.le.s32.totalorder 1, %s9
    %p122 = scmp.lt.s32.totalorder %s9, 3
    %p123 = pnand %p121, %p122
    %p124 = pneg %p123
    // Predicated region
    $region9: #{local_grouper.3} parent=5 // pred_check
      _
    $region10: #{local_grouper.3} parent=5 // pred_check_branch
      %126 = sbr.rel (%p123) target = $region12
    $region11: #{local_grouper.3} parent=5 // pred_region
      %s127 = ssub.s32 %s9, 1
    $region12: #{local_grouper.3} parent=5 // pred_fallthru
      _
    %p128 = scmp.lt.s32.totalorder %s9, 2
    // Predicated region
    $region13: #{local_grouper.3} parent=5 // pred_check
      %p129 = pneg %p128
    $region14: #{local_grouper.3} parent=5 // pred_check_branch
      %131 = sbr.rel (%p129) target = $region16
    $region15: #{local_grouper.3} parent=5 // pred_region
      // Predicated region
      $region17: #{local_grouper.3} parent=15 // pred_check
        %p132 = pneg %p29
      $region18: #{local_grouper.3} parent=15 // pred_check_branch
        %134 = sbr.rel (%p132) target = $region20
      $region19: #{local_grouper.3} parent=15 // pred_region
        %p135 = scmp.lt.s32.totalorder %s9, 1
        %s136 = scalar_select %p135, %s9, 1
        %s137 = smul.addr %s136, 16
        %s138 = smul.addr %s137, 8
        %s139 = scalar_lea.vmem %s0, %s138
      $region20: #{local_grouper.3} parent=15 // pred_fallthru
        _
      // Predicated region
      $region21: #{local_grouper.3} parent=15 // pred_check
        %p140 = pneg %p55
      $region22: #{local_grouper.3} parent=15 // pred_check_branch
        %142 = sbr.rel (%p140) target = $region24
      $region23: #{local_grouper.3} parent=15 // pred_region
        %p143 = scmp.lt.s32.totalorder %s9, 1
        %s144 = scalar_select %p143, %s9, 1
        %s145 = smul.addr %s144, 16
        %s146 = smul.addr %s145, 8
        %s147 = scalar_lea.vmem %s1, %s146
      $region24: #{local_grouper.3} parent=15 // pred_fallthru
        _
      // Predicated region
      $region25: #{local_grouper.3} parent=15 // pred_check
        %p148 = pneg %p81
      $region26: #{local_grouper.3} parent=15 // pred_check_branch
        %150 = sbr.rel (%p148) target = $region28
      $region27: #{local_grouper.3} parent=15 // pred_region
        %p151 = scmp.lt.s32.totalorder %s9, 1
        %s152 = scalar_select %p151, %s9, 1
        %s153 = smul.addr %s152, 8
        %s154 = smul.addr %s153, 8
        %s155 = scalar_lea.vmem %s2, %s154
      $region28: #{local_grouper.3} parent=15 // pred_fallthru
        _
    $region16: #{local_grouper.3} parent=5 // pred_fallthru
      _
    %p156 = scmp.le.s32.totalorder 1, %s9
    %p157 = scmp.lt.s32.totalorder %s9, 3
    %p158 = pnand %p156, %p157
    %p159 = pneg %p158
    // Predicated region
    $region29: #{local_grouper.3} parent=5 // pred_check
      _
    $region30: #{local_grouper.3} parent=5 // pred_check_branch
      %161 = sbr.rel (%p158) target = $region32
    $region31: #{local_grouper.3} parent=5 // pred_region
      %s162 = ssub.s32 %s9, 1
      %p163 = scmp.lt.s32.totalorder %s14, 1
      %s164 = scalar_select %p163, %s14, 1
      %s165 = smul.addr %s164, 16
      %s166 = smul.addr %s165, 8
      %s167 = scalar_lea.vmem %s0, %s166
      %p168 = pneg %p35
      %p169 = pneg %p32
      %p170 = scmp.lt.s32.totalorder %s14, 1
      %s171 = scalar_select %p170, %s14, 1
      %s172 = smul.addr %s171, 16
      %s173 = smul.addr %s172, 8
      %s174 = scalar_lea.vmem %s1, %s173
      %p175 = pneg %p61
      %p176 = pneg %p58
      %p177 = scmp.lt.s32.totalorder %s14, 1
      %s178 = scalar_select %p177, %s14, 1
      %s179 = smul.addr %s178, 8
      %s180 = smul.addr %s179, 8
      %s181 = scalar_lea.vmem %s2, %s180
      %p182 = pneg %p87
      %p183 = pneg %p84
      %p184 = pneg %p113
      %p185 = pneg %p110
      %p186 = scmp.lt.s32.totalorder %s14, 1
      %s187 = scalar_select %p186, %s14, 1
      %s188 = smul.addr %s187, 16
      %s189 = smul.addr %s188, 8
      %s190 = scalar_lea.vmem %s3, %s189
      %p191 = scmp.lt.s32.totalorder %s14, 1
      %s192 = scalar_select %p191, %s14, 1
      %s193 = smul.addr %s192, 16
      %s194 = smul.addr %s193, 8
      %s195 = scalar_lea.vmem %s0, %s194
      %p196 = scmp.lt.s32.totalorder %s14, 1
      %s197 = scalar_select %p196, %s14, 1
      %s198 = smul.addr %s197, 16
      %s199 = smul.addr %s198, 8
      %s200 = scalar_lea.vmem %s1, %s199
      %p201 = scmp.lt.s32.totalorder %s14, 1
      %s202 = scalar_select %p201, %s14, 1
      %s203 = smul.addr %s202, 8
      %s204 = smul.addr %s203, 8
      %s205 = scalar_lea.vmem %s2, %s204
      %p206 = scmp.lt.s32.totalorder %s14, 1
      %s207 = scalar_select %p206, %s14, 1
      %s208 = smul.addr %s207, 16
      %s209 = smul.addr %s208, 8
      %s210 = scalar_lea.vmem %s3, %s209
      %v211 = vld [vmem:[%s205] sm:$0xff]
      %v212 = vld [vmem:[%s205 + $0x8] sm:$0xff]
      %v213 = vld [vmem:[%s205 + $0x10] sm:$0xff]
      %v214 = vld [vmem:[%s205 + $0x18] sm:$0xff]
      %v215 = vld [vmem:[%s205 + $0x20] sm:$0xff]
      %v216 = vld [vmem:[%s205 + $0x28] sm:$0xff]
      %v217 = vld [vmem:[%s205 + $0x30] sm:$0xff]
      %v218 = vld [vmem:[%s205 + $0x38] sm:$0xff]
      %v219 = vlaneseq
      %v220 = vand.u32 %v219, 127
      %v221 = vld [vmem:[%s195] sm:$0xff]
      %v222 = vld [vmem:[%s195 + $0x8] sm:$0xff]
      %v223 = vld [vmem:[%s195 + $0x10] sm:$0xff]
      %v224 = vld [vmem:[%s195 + $0x18] sm:$0xff]
      %v225 = vld [vmem:[%s195 + $0x20] sm:$0xff]
      %v226 = vld [vmem:[%s195 + $0x28] sm:$0xff]
      %v227 = vld [vmem:[%s195 + $0x30] sm:$0xff]
      %v228 = vld [vmem:[%s195 + $0x38] sm:$0xff]
      %v229 = vld [vmem:[%s195 + $0x40] sm:$0xff]
      %v230 = vld [vmem:[%s195 + $0x48] sm:$0xff]
      %v231 = vld [vmem:[%s195 + $0x50] sm:$0xff]
      %v232 = vld [vmem:[%s195 + $0x58] sm:$0xff]
      %v233 = vld [vmem:[%s195 + $0x60] sm:$0xff]
      %v234 = vld [vmem:[%s195 + $0x68] sm:$0xff]
      %v235 = vld [vmem:[%s195 + $0x70] sm:$0xff]
      %v236 = vld [vmem:[%s195 + $0x78] sm:$0xff]
      %237 = vset.pattern.permute.xlu0 0
      %238 = vperm.xlu0 %237, %v221
      %v239 = vpop.permute.xlu0 %238
      %240 = vset.pattern.permute.xlu0 0
      %241 = vperm.xlu0 %240, %v222
      %v242 = vpop.permute.xlu0 %241
      %243 = vset.pattern.permute.xlu0 0
      %244 = vperm.xlu0 %243, %v223
      %v245 = vpop.permute.xlu0 %244
      %246 = vset.pattern.permute.xlu0 0
      %247 = vperm.xlu0 %246, %v224
      %v248 = vpop.permute.xlu0 %247
      %249 = vset.pattern.permute.xlu0 0
      %250 = vperm.xlu0 %249, %v225
      %v251 = vpop.permute.xlu0 %250
      %252 = vset.pattern.permute.xlu0 0
      %253 = vperm.xlu0 %252, %v226
      %v254 = vpop.permute.xlu0 %253
      %255 = vset.pattern.permute.xlu0 0
      %256 = vperm.xlu0 %255, %v227
      %v257 = vpop.permute.xlu0 %256
      %258 = vset.pattern.permute.xlu0 0
      %259 = vperm.xlu0 %258, %v228
      %v260 = vpop.permute.xlu0 %259
      %261 = vset.pattern.permute.xlu0 0
      %262 = vperm.xlu0 %261, %v229
      %v263 = vpop.permute.xlu0 %262
      %264 = vset.pattern.permute.xlu0 0
      %265 = vperm.xlu0 %264, %v230
      %v266 = vpop.permute.xlu0 %265
      %267 = vset.pattern.permute.xlu0 0
      %268 = vperm.xlu0 %267, %v231
      %v269 = vpop.permute.xlu0 %268
      %270 = vset.pattern.permute.xlu0 0
      %271 = vperm.xlu0 %270, %v232
      %v272 = vpop.permute.xlu0 %271
      %273 = vset.pattern.permute.xlu0 0
      %274 = vperm.xlu0 %273, %v233
      %v275 = vpop.permute.xlu0 %274
      %276 = vset.pattern.permute.xlu0 0
      %277 = vperm.xlu0 %276, %v234
      %v278 = vpop.permute.xlu0 %277
      %279 = vset.pattern.permute.xlu0 0
      %280 = vperm.xlu0 %279, %v235
      %v281 = vpop.permute.xlu0 %280
      %282 = vset.pattern.permute.xlu0 0
      %283 = vperm.xlu0 %282, %v236
      %v284 = vpop.permute.xlu0 %283
      %vm285 = vcmp.eq.s32.totalorder %v239, %v220
      %vm286 = vcmp.eq.s32.totalorder %v242, %v220
      %vm287 = vcmp.eq.s32.totalorder %v245, %v220
      %vm288 = vcmp.eq.s32.totalorder %v248, %v220
      %vm289 = vcmp.eq.s32.totalorder %v251, %v220
      %vm290 = vcmp.eq.s32.totalorder %v254, %v220
      %vm291 = vcmp.eq.s32.totalorder %v257, %v220
      %vm292 = vcmp.eq.s32.totalorder %v260, %v220
      %vm293 = vcmp.eq.s32.totalorder %v263, %v220
      %vm294 = vcmp.eq.s32.totalorder %v266, %v220
      %vm295 = vcmp.eq.s32.totalorder %v269, %v220
      %vm296 = vcmp.eq.s32.totalorder %v272, %v220
      %vm297 = vcmp.eq.s32.totalorder %v275, %v220
      %vm298 = vcmp.eq.s32.totalorder %v278, %v220
      %vm299 = vcmp.eq.s32.totalorder %v281, %v220
      %vm300 = vcmp.eq.s32.totalorder %v284, %v220
      %v301 = vsel %vm285, 1, 0
      %v302 = vsel %vm286, 1, 0
      %v303 = vsel %vm287, 1, 0
      %v304 = vsel %vm288, 1, 0
      %v305 = vsel %vm289, 1, 0
      %v306 = vsel %vm290, 1, 0
      %v307 = vsel %vm291, 1, 0
      %v308 = vsel %vm292, 1, 0
      %v309 = vsel %vm293, 1, 0
      %v310 = vsel %vm294, 1, 0
      %v311 = vsel %vm295, 1, 0
      %v312 = vsel %vm296, 1, 0
      %v313 = vsel %vm297, 1, 0
      %v314 = vsel %vm298, 1, 0
      %v315 = vsel %vm299, 1, 0
      %v316 = vsel %vm300, 1, 0
      %v317 = vcvt.s32.f32 %v301
      %v318 = vcvt.s32.f32 %v302
      %v319 = vcvt.s32.f32 %v303
      %v320 = vcvt.s32.f32 %v304
      %v321 = vcvt.s32.f32 %v305
      %v322 = vcvt.s32.f32 %v306
      %v323 = vcvt.s32.f32 %v307
      %v324 = vcvt.s32.f32 %v308
      %v325 = vcvt.s32.f32 %v309
      %v326 = vcvt.s32.f32 %v310
      %v327 = vcvt.s32.f32 %v311
      %v328 = vcvt.s32.f32 %v312
      %v329 = vcvt.s32.f32 %v313
      %v330 = vcvt.s32.f32 %v314
      %v331 = vcvt.s32.f32 %v315
      %v332 = vcvt.s32.f32 %v316
      %v333 = vld [vmem:[%s200] sm:$0xff]
      %v334 = vld [vmem:[%s200 + $0x8] sm:$0xff]
      %v335 = vld [vmem:[%s200 + $0x10] sm:$0xff]
      %v336 = vld [vmem:[%s200 + $0x18] sm:$0xff]
      %v337 = vld [vmem:[%s200 + $0x20] sm:$0xff]
      %v338 = vld [vmem:[%s200 + $0x28] sm:$0xff]
      %v339 = vld [vmem:[%s200 + $0x30] sm:$0xff]
      %v340 = vld [vmem:[%s200 + $0x38] sm:$0xff]
      %v341 = vld [vmem:[%s200 + $0x40] sm:$0xff]
      %v342 = vld [vmem:[%s200 + $0x48] sm:$0xff]
      %v343 = vld [vmem:[%s200 + $0x50] sm:$0xff]
      %v344 = vld [vmem:[%s200 + $0x58] sm:$0xff]
      %v345 = vld [vmem:[%s200 + $0x60] sm:$0xff]
      %v346 = vld [vmem:[%s200 + $0x68] sm:$0xff]
      %v347 = vld [vmem:[%s200 + $0x70] sm:$0xff]
      %v348 = vld [vmem:[%s200 + $0x78] sm:$0xff]
      %349 = vset.pattern.permute.xlu0 0
      %350 = vperm.xlu0 %349, %v333
      %v351 = vpop.permute.xlu0 %350
      %352 = vset.pattern.permute.xlu0 0
      %353 = vperm.xlu0 %352, %v334
      %v354 = vpop.permute.xlu0 %353
      %355 = vset.pattern.permute.xlu0 0
      %356 = vperm.xlu0 %355, %v335
      %v357 = vpop.permute.xlu0 %356
      %358 = vset.pattern.permute.xlu0 0
      %359 = vperm.xlu0 %358, %v336
      %v360 = vpop.permute.xlu0 %359
      %361 = vset.pattern.permute.xlu0 0
      %362 = vperm.xlu0 %361, %v337
      %v363 = vpop.permute.xlu0 %362
      %364 = vset.pattern.permute.xlu0 0
      %365 = vperm.xlu0 %364, %v338
      %v366 = vpop.permute.xlu0 %365
      %367 = vset.pattern.permute.xlu0 0
      %368 = vperm.xlu0 %367, %v339
      %v369 = vpop.permute.xlu0 %368
      %370 = vset.pattern.permute.xlu0 0
      %371 = vperm.xlu0 %370, %v340
      %v372 = vpop.permute.xlu0 %371
      %373 = vset.pattern.permute.xlu0 0
      %374 = vperm.xlu0 %373, %v341
      %v375 = vpop.permute.xlu0 %374
      %376 = vset.pattern.permute.xlu0 0
      %377 = vperm.xlu0 %376, %v342
      %v378 = vpop.permute.xlu0 %377
      %379 = vset.pattern.permute.xlu0 0
      %380 = vperm.xlu0 %379, %v343
      %v381 = vpop.permute.xlu0 %380
      %382 = vset.pattern.permute.xlu0 0
      %383 = vperm.xlu0 %382, %v344
      %v384 = vpop.permute.xlu0 %383
      %385 = vset.pattern.permute.xlu0 0
      %386 = vperm.xlu0 %385, %v345
      %v387 = vpop.permute.xlu0 %386
      %388 = vset.pattern.permute.xlu0 0
      %389 = vperm.xlu0 %388, %v346
      %v390 = vpop.permute.xlu0 %389
      %391 = vset.pattern.permute.xlu0 0
      %392 = vperm.xlu0 %391, %v347
      %v393 = vpop.permute.xlu0 %392
      %394 = vset.pattern.permute.xlu0 0
      %395 = vperm.xlu0 %394, %v348
      %v396 = vpop.permute.xlu0 %395
      %vm397 = vcmp.eq.s32.totalorder %v351, %v220
      %vm398 = vcmp.eq.s32.totalorder %v354, %v220
      %vm399 = vcmp.eq.s32.totalorder %v357, %v220
      %vm400 = vcmp.eq.s32.totalorder %v360, %v220
      %vm401 = vcmp.eq.s32.totalorder %v363, %v220
      %vm402 = vcmp.eq.s32.totalorder %v366, %v220
      %vm403 = vcmp.eq.s32.totalorder %v369, %v220
      %vm404 = vcmp.eq.s32.totalorder %v372, %v220
      %vm405 = vcmp.eq.s32.totalorder %v375, %v220
      %vm406 = vcmp.eq.s32.totalorder %v378, %v220
      %vm407 = vcmp.eq.s32.totalorder %v381, %v220
      %vm408 = vcmp.eq.s32.totalorder %v384, %v220
      %vm409 = vcmp.eq.s32.totalorder %v387, %v220
      %vm410 = vcmp.eq.s32.totalorder %v390, %v220
      %vm411 = vcmp.eq.s32.totalorder %v393, %v220
      %vm412 = vcmp.eq.s32.totalorder %v396, %v220
      %v413 = vsel %vm397, 1, 0
      %v414 = vsel %vm398, 1, 0
      %v415 = vsel %vm399, 1, 0
      %v416 = vsel %vm400, 1, 0
      %v417 = vsel %vm401, 1, 0
      %v418 = vsel %vm402, 1, 0
      %v419 = vsel %vm403, 1, 0
      %v420 = vsel %vm404, 1, 0
      %v421 = vsel %vm405, 1, 0
      %v422 = vsel %vm406, 1, 0
      %v423 = vsel %vm407, 1, 0
      %v424 = vsel %vm408, 1, 0
      %v425 = vsel %vm409, 1, 0
      %v426 = vsel %vm410, 1, 0
      %v427 = vsel %vm411, 1, 0
      %v428 = vsel %vm412, 1, 0
      %v429 = vcvt.s32.f32 %v413
      %v430 = vcvt.s32.f32 %v414
      %v431 = vcvt.s32.f32 %v415
      %v432 = vcvt.s32.f32 %v416
      %v433 = vcvt.s32.f32 %v417
      %v434 = vcvt.s32.f32 %v418
      %v435 = vcvt.s32.f32 %v419
      %v436 = vcvt.s32.f32 %v420
      %v437 = vcvt.s32.f32 %v421
      %v438 = vcvt.s32.f32 %v422
      %v439 = vcvt.s32.f32 %v423
      %v440 = vcvt.s32.f32 %v424
      %v441 = vcvt.s32.f32 %v425
      %v442 = vcvt.s32.f32 %v426
      %v443 = vcvt.s32.f32 %v427
      %v444 = vcvt.s32.f32 %v428
      %vm445 = vcmask 523264
      %v447 = vsel %vm445, %v317, 0
      %v450 = vsel %vm445, %v318, 0
      %v453 = vsel %vm445, %v319, 0
      %v456 = vsel %vm445, %v320, 0
      %v459 = vsel %vm445, %v321, 0
      %v462 = vsel %vm445, %v322, 0
      %v465 = vsel %vm445, %v323, 0
      %v468 = vsel %vm445, %v324, 0
      %v471 = vsel %vm445, %v325, 0
      %v474 = vsel %vm445, %v326, 0
      %v477 = vsel %vm445, %v327, 0
      %v480 = vsel %vm445, %v328, 0
      %v483 = vsel %vm445, %v329, 0
      %v486 = vsel %vm445, %v330, 0
      %v489 = vsel %vm445, %v331, 0
      %v492 = vsel %vm445, %v332, 0
      %494 = vmatpush.msra.mxu0 0.0
      %495 = vmatpush.msra.mxu0 0.0
      %496 = vmatpush.msra.mxu0 0.0
      %497 = vmatpush.msra.mxu0 0.0
      %498 = vmatpush.msra.mxu0 0.0
      %499 = vmatpush.msra.mxu0 0.0
      %500 = vmatpush.msra.mxu0 0.0
      %501 = vmatpush.msra.mxu0 0.0
      %v502 = vand.u32 %v218, 4294901760
      %503 = vmatpush.msra.mxu0 %v502
      %v504 = vand.u32 %v217, 4294901760
      %505 = vmatpush.msra.mxu0 %v504
      %v506 = vand.u32 %v216, 4294901760
      %507 = vmatpush.msra.mxu0 %v506
      %v508 = vand.u32 %v215, 4294901760
      %509 = vmatpush.msra.mxu0 %v508
      %v510 = vand.u32 %v214, 4294901760
      %511 = vmatpush.msra.mxu0 %v510
      %v512 = vand.u32 %v213, 4294901760
      %513 = vmatpush.msra.mxu0 %v512
      %v514 = vand.u32 %v212, 4294901760
      %515 = vmatpush.msra.mxu0 %v514
      %v516 = vand.u32 %v211, 4294901760
      %517 = vmatpush.msra.mxu0 %v516
      %v518 = vand.u32 %v447, 4294901760
      %v519 = vsub.f32 %v447, %v518
      %v520 = vand.u32 %v519, 4294901760
      %v521 = vsub.f32 %v519, %v520
      %v522 = vand.u32 %v521, 4294901760
      %523 = vmatmul.f32.gmra.mxu0 %v522
      %v524 = vpop.f32.mrf.mxu0
      %v525 = vadd.f32 0.0, %v524
      %v526 = vand.u32 %v450, 4294901760
      %v527 = vsub.f32 %v450, %v526
      %v528 = vand.u32 %v527, 4294901760
      %v529 = vsub.f32 %v527, %v528
      %v530 = vand.u32 %v529, 4294901760
      %531 = vmatmul.f32.gmra.mxu0 %v530
      %v532 = vpop.f32.mrf.mxu0
      %v533 = vadd.f32 0.0, %v532
      %v534 = vand.u32 %v453, 4294901760
      %v535 = vsub.f32 %v453, %v534
      %v536 = vand.u32 %v535, 4294901760
      %v537 = vsub.f32 %v535, %v536
      %v538 = vand.u32 %v537, 4294901760
      %539 = vmatmul.f32.gmra.mxu0 %v538
      %v540 = vpop.f32.mrf.mxu0
      %v541 = vadd.f32 0.0, %v540
      %v542 = vand.u32 %v456, 4294901760
      %v543 = vsub.f32 %v456, %v542
      %v544 = vand.u32 %v543, 4294901760
      %v545 = vsub.f32 %v543, %v544
      %v546 = vand.u32 %v545, 4294901760
      %547 = vmatmul.f32.gmra.mxu0 %v546
      %v548 = vpop.f32.mrf.mxu0
      %v549 = vadd.f32 0.0, %v548
      %v550 = vand.u32 %v459, 4294901760
      %v551 = vsub.f32 %v459, %v550
      %v552 = vand.u32 %v551, 4294901760
      %v553 = vsub.f32 %v551, %v552
      %v554 = vand.u32 %v553, 4294901760
      %555 = vmatmul.f32.gmra.mxu0 %v554
      %v556 = vpop.f32.mrf.mxu0
      %v557 = vadd.f32 0.0, %v556
      %v558 = vand.u32 %v462, 4294901760
      %v559 = vsub.f32 %v462, %v558
      %v560 = vand.u32 %v559, 4294901760
      %v561 = vsub.f32 %v559, %v560
      %v562 = vand.u32 %v561, 4294901760
      %563 = vmatmul.f32.gmra.mxu0 %v562
      %v564 = vpop.f32.mrf.mxu0
      %v565 = vadd.f32 0.0, %v564
      %v566 = vand.u32 %v465, 4294901760
      %v567 = vsub.f32 %v465, %v566
      %v568 = vand.u32 %v567, 4294901760
      %v569 = vsub.f32 %v567, %v568
      %v570 = vand.u32 %v569, 4294901760
      %571 = vmatmul.f32.gmra.mxu0 %v570
      %v572 = vpop.f32.mrf.mxu0
      %v573 = vadd.f32 0.0, %v572
      %v574 = vand.u32 %v468, 4294901760
      %v575 = vsub.f32 %v468, %v574
      %v576 = vand.u32 %v575, 4294901760
      %v577 = vsub.f32 %v575, %v576
      %v578 = vand.u32 %v577, 4294901760
      %579 = vmatmul.f32.gmra.mxu0 %v578
      %v580 = vpop.f32.mrf.mxu0
      %v581 = vadd.f32 0.0, %v580
      %v582 = vand.u32 %v471, 4294901760
      %v583 = vsub.f32 %v471, %v582
      %v584 = vand.u32 %v583, 4294901760
      %v585 = vsub.f32 %v583, %v584
      %v586 = vand.u32 %v585, 4294901760
      %587 = vmatmul.f32.gmra.mxu0 %v586
      %v588 = vpop.f32.mrf.mxu0
      %v589 = vadd.f32 0.0, %v588
      %v590 = vand.u32 %v474, 4294901760
      %v591 = vsub.f32 %v474, %v590
      %v592 = vand.u32 %v591, 4294901760
      %v593 = vsub.f32 %v591, %v592
      %v594 = vand.u32 %v593, 4294901760
      %595 = vmatmul.f32.gmra.mxu0 %v594
      %v596 = vpop.f32.mrf.mxu0
      %v597 = vadd.f32 0.0, %v596
      %v598 = vand.u32 %v477, 4294901760
      %v599 = vsub.f32 %v477, %v598
      %v600 = vand.u32 %v599, 4294901760
      %v601 = vsub.f32 %v599, %v600
      %v602 = vand.u32 %v601, 4294901760
      %603 = vmatmul.f32.gmra.mxu0 %v602
      %v604 = vpop.f32.mrf.mxu0
      %v605 = vadd.f32 0.0, %v604
      %v606 = vand.u32 %v480, 4294901760
      %v607 = vsub.f32 %v480, %v606
      %v608 = vand.u32 %v607, 4294901760
      %v609 = vsub.f32 %v607, %v608
      %v610 = vand.u32 %v609, 4294901760
      %611 = vmatmul.f32.gmra.mxu0 %v610
      %v612 = vpop.f32.mrf.mxu0
      %v613 = vadd.f32 0.0, %v612
      %v614 = vand.u32 %v483, 4294901760
      %v615 = vsub.f32 %v483, %v614
      %v616 = vand.u32 %v615, 4294901760
      %v617 = vsub.f32 %v615, %v616
      %v618 = vand.u32 %v617, 4294901760
      %619 = vmatmul.f32.gmra.mxu0 %v618
      %v620 = vpop.f32.mrf.mxu0
      %v621 = vadd.f32 0.0, %v620
      %v622 = vand.u32 %v486, 4294901760
      %v623 = vsub.f32 %v486, %v622
      %v624 = vand.u32 %v623, 4294901760
      %v625 = vsub.f32 %v623, %v624
      %v626 = vand.u32 %v625, 4294901760
      %627 = vmatmul.f32.gmra.mxu0 %v626
      %v628 = vpop.f32.mrf.mxu0
      %v629 = vadd.f32 0.0, %v628
      %v630 = vand.u32 %v489, 4294901760
      %v631 = vsub.f32 %v489, %v630
      %v632 = vand.u32 %v631, 4294901760
      %v633 = vsub.f32 %v631, %v632
      %v634 = vand.u32 %v633, 4294901760
      %635 = vmatmul.f32.gmra.mxu0 %v634
      %v636 = vpop.f32.mrf.mxu0
      %v637 = vadd.f32 0.0, %v636
      %v638 = vand.u32 %v492, 4294901760
      %v639 = vsub.f32 %v492, %v638
      %v640 = vand.u32 %v639, 4294901760
      %v641 = vsub.f32 %v639, %v640
      %v642 = vand.u32 %v641, 4294901760
      %643 = vmatmul.f32.gmra.mxu0 %v642
      %v644 = vpop.f32.mrf.mxu0
      %v645 = vadd.f32 0.0, %v644
      %646 = vdwg.mxu0
      %647 = vmatpush.msra.mxu0 0.0
      %648 = vmatpush.msra.mxu0 0.0
      %649 = vmatpush.msra.mxu0 0.0
      %650 = vmatpush.msra.mxu0 0.0
      %651 = vmatpush.msra.mxu0 0.0
      %652 = vmatpush.msra.mxu0 0.0
      %653 = vmatpush.msra.mxu0 0.0
      %654 = vmatpush.msra.mxu0 0.0
      %v655 = vand.u32 %v218, 4294901760
      %v656 = vsub.f32 %v218, %v655
      %v657 = vand.u32 %v656, 4294901760
      %v658 = vsub.f32 %v656, %v657
      %v659 = vand.u32 %v658, 4294901760
      %660 = vmatpush.msra.mxu0 %v659
      %v661 = vand.u32 %v217, 4294901760
      %v662 = vsub.f32 %v217, %v661
      %v663 = vand.u32 %v662, 4294901760
      %v664 = vsub.f32 %v662, %v663
      %v665 = vand.u32 %v664, 4294901760
      %666 = vmatpush.msra.mxu0 %v665
      %v667 = vand.u32 %v216, 4294901760
      %v668 = vsub.f32 %v216, %v667
      %v669 = vand.u32 %v668, 4294901760
      %v670 = vsub.f32 %v668, %v669
      %v671 = vand.u32 %v670, 4294901760
      %672 = vmatpush.msra.mxu0 %v671
      %v673 = vand.u32 %v215, 4294901760
      %v674 = vsub.f32 %v215, %v673
      %v675 = vand.u32 %v674, 4294901760
      %v676 = vsub.f32 %v674, %v675
      %v677 = vand.u32 %v676, 4294901760
      %678 = vmatpush.msra.mxu0 %v677
      %v679 = vand.u32 %v214, 4294901760
      %v680 = vsub.f32 %v214, %v679
      %v681 = vand.u32 %v680, 4294901760
      %v682 = vsub.f32 %v680, %v681
      %v683 = vand.u32 %v682, 4294901760
      %684 = vmatpush.msra.mxu0 %v683
      %v685 = vand.u32 %v213, 4294901760
      %v686 = vsub.f32 %v213, %v685
      %v687 = vand.u32 %v686, 4294901760
      %v688 = vsub.f32 %v686, %v687
      %v689 = vand.u32 %v688, 4294901760
      %690 = vmatpush.msra.mxu0 %v689
      %v691 = vand.u32 %v212, 4294901760
      %v692 = vsub.f32 %v212, %v691
      %v693 = vand.u32 %v692, 4294901760
      %v694 = vsub.f32 %v692, %v693
      %v695 = vand.u32 %v694, 4294901760
      %696 = vmatpush.msra.mxu0 %v695
      %v697 = vand.u32 %v211, 4294901760
      %v698 = vsub.f32 %v211, %v697
      %v699 = vand.u32 %v698, 4294901760
      %v700 = vsub.f32 %v698, %v699
      %v701 = vand.u32 %v700, 4294901760
      %702 = vmatpush.msra.mxu0 %v701
      %v703 = vand.u32 %v447, 4294901760
      %704 = vmatmul.f32.gmra.mxu0 %v703
      %v705 = vpop.f32.mrf.mxu0
      %v706 = vadd.f32 %v525, %v705
      %v707 = vand.u32 %v450, 4294901760
      %708 = vmatmul.f32.gmra.mxu0 %v707
      %v709 = vpop.f32.mrf.mxu0
      %v710 = vadd.f32 %v533, %v709
      %v711 = vand.u32 %v453, 4294901760
      %712 = vmatmul.f32.gmra.mxu0 %v711
      %v713 = vpop.f32.mrf.mxu0
      %v714 = vadd.f32 %v541, %v713
      %v715 = vand.u32 %v456, 4294901760
      %716 = vmatmul.f32.gmra.mxu0 %v715
      %v717 = vpop.f32.mrf.mxu0
      %v718 = vadd.f32 %v549, %v717
      %v719 = vand.u32 %v459, 4294901760
      %720 = vmatmul.f32.gmra.mxu0 %v719
      %v721 = vpop.f32.mrf.mxu0
      %v722 = vadd.f32 %v557, %v721
      %v723 = vand.u32 %v462, 4294901760
      %724 = vmatmul.f32.gmra.mxu0 %v723
      %v725 = vpop.f32.mrf.mxu0
      %v726 = vadd.f32 %v565, %v725
      %v727 = vand.u32 %v465, 4294901760
      %728 = vmatmul.f32.gmra.mxu0 %v727
      %v729 = vpop.f32.mrf.mxu0
      %v730 = vadd.f32 %v573, %v729
      %v731 = vand.u32 %v468, 4294901760
      %732 = vmatmul.f32.gmra.mxu0 %v731
      %v733 = vpop.f32.mrf.mxu0
      %v734 = vadd.f32 %v581, %v733
      %v735 = vand.u32 %v471, 4294901760
      %736 = vmatmul.f32.gmra.mxu0 %v735
      %v737 = vpop.f32.mrf.mxu0
      %v738 = vadd.f32 %v589, %v737
      %v739 = vand.u32 %v474, 4294901760
      %740 = vmatmul.f32.gmra.mxu0 %v739
      %v741 = vpop.f32.mrf.mxu0
      %v742 = vadd.f32 %v597, %v741
      %v743 = vand.u32 %v477, 4294901760
      %744 = vmatmul.f32.gmra.mxu0 %v743
      %v745 = vpop.f32.mrf.mxu0
      %v746 = vadd.f32 %v605, %v745
      %v747 = vand.u32 %v480, 4294901760
      %748 = vmatmul.f32.gmra.mxu0 %v747
      %v749 = vpop.f32.mrf.mxu0
      %v750 = vadd.f32 %v613, %v749
      %v751 = vand.u32 %v483, 4294901760
      %752 = vmatmul.f32.gmra.mxu0 %v751
      %v753 = vpop.f32.mrf.mxu0
      %v754 = vadd.f32 %v621, %v753
      %v755 = vand.u32 %v486, 4294901760
      %756 = vmatmul.f32.gmra.mxu0 %v755
      %v757 = vpop.f32.mrf.mxu0
      %v758 = vadd.f32 %v629, %v757
      %v759 = vand.u32 %v489, 4294901760
      %760 = vmatmul.f32.gmra.mxu0 %v759
      %v761 = vpop.f32.mrf.mxu0
      %v762 = vadd.f32 %v637, %v761
      %v763 = vand.u32 %v492, 4294901760
      %764 = vmatmul.f32.gmra.mxu0 %v763
      %v765 = vpop.f32.mrf.mxu0
      %v766 = vadd.f32 %v645, %v765
      %767 = vdwg.mxu0
      %768 = vmatpush.msra.mxu0 0.0
      %769 = vmatpush.msra.mxu0 0.0
      %770 = vmatpush.msra.mxu0 0.0
      %771 = vmatpush.msra.mxu0 0.0
      %772 = vmatpush.msra.mxu0 0.0
      %773 = vmatpush.msra.mxu0 0.0
      %774 = vmatpush.msra.mxu0 0.0
      %775 = vmatpush.msra.mxu0 0.0
      %v776 = vand.u32 %v218, 4294901760
      %v777 = vsub.f32 %v218, %v776
      %778 = vmatpush.msra.mxu0 %v777
      %v779 = vand.u32 %v217, 4294901760
      %v780 = vsub.f32 %v217, %v779
      %781 = vmatpush.msra.mxu0 %v780
      %v782 = vand.u32 %v216, 4294901760
      %v783 = vsub.f32 %v216, %v782
      %784 = vmatpush.msra.mxu0 %v783
      %v785 = vand.u32 %v215, 4294901760
      %v786 = vsub.f32 %v215, %v785
      %787 = vmatpush.msra.mxu0 %v786
      %v788 = vand.u32 %v214, 4294901760
      %v789 = vsub.f32 %v214, %v788
      %790 = vmatpush.msra.mxu0 %v789
      %v791 = vand.u32 %v213, 4294901760
      %v792 = vsub.f32 %v213, %v791
      %793 = vmatpush.msra.mxu0 %v792
      %v794 = vand.u32 %v212, 4294901760
      %v795 = vsub.f32 %v212, %v794
      %796 = vmatpush.msra.mxu0 %v795
      %v797 = vand.u32 %v211, 4294901760
      %v798 = vsub.f32 %v211, %v797
      %799 = vmatpush.msra.mxu0 %v798
      %v800 = vand.u32 %v447, 4294901760
      %v801 = vsub.f32 %v447, %v800
      %802 = vmatmul.f32.gmra.mxu0 %v801
      %v803 = vpop.f32.mrf.mxu0
      %v804 = vadd.f32 %v706, %v803
      %v805 = vand.u32 %v450, 4294901760
      %v806 = vsub.f32 %v450, %v805
      %807 = vmatmul.f32.gmra.mxu0 %v806
      %v808 = vpop.f32.mrf.mxu0
      %v809 = vadd.f32 %v710, %v808
      %v810 = vand.u32 %v453, 4294901760
      %v811 = vsub.f32 %v453, %v810
      %812 = vmatmul.f32.gmra.mxu0 %v811
      %v813 = vpop.f32.mrf.mxu0
      %v814 = vadd.f32 %v714, %v813
      %v815 = vand.u32 %v456, 4294901760
      %v816 = vsub.f32 %v456, %v815
      %817 = vmatmul.f32.gmra.mxu0 %v816
      %v818 = vpop.f32.mrf.mxu0
      %v819 = vadd.f32 %v718, %v818
      %v820 = vand.u32 %v459, 4294901760
      %v821 = vsub.f32 %v459, %v820
      %822 = vmatmul.f32.gmra.mxu0 %v821
      %v823 = vpop.f32.mrf.mxu0
      %v824 = vadd.f32 %v722, %v823
      %v825 = vand.u32 %v462, 4294901760
      %v826 = vsub.f32 %v462, %v825
      %827 = vmatmul.f32.gmra.mxu0 %v826
      %v828 = vpop.f32.mrf.mxu0
      %v829 = vadd.f32 %v726, %v828
      %v830 = vand.u32 %v465, 4294901760
      %v831 = vsub.f32 %v465, %v830
      %832 = vmatmul.f32.gmra.mxu0 %v831
      %v833 = vpop.f32.mrf.mxu0
      %v834 = vadd.f32 %v730, %v833
      %v835 = vand.u32 %v468, 4294901760
      %v836 = vsub.f32 %v468, %v835
      %837 = vmatmul.f32.gmra.mxu0 %v836
      %v838 = vpop.f32.mrf.mxu0
      %v839 = vadd.f32 %v734, %v838
      %v840 = vand.u32 %v471, 4294901760
      %v841 = vsub.f32 %v471, %v840
      %842 = vmatmul.f32.gmra.mxu0 %v841
      %v843 = vpop.f32.mrf.mxu0
      %v844 = vadd.f32 %v738, %v843
      %v845 = vand.u32 %v474, 4294901760
      %v846 = vsub.f32 %v474, %v845
      %847 = vmatmul.f32.gmra.mxu0 %v846
      %v848 = vpop.f32.mrf.mxu0
      %v849 = vadd.f32 %v742, %v848
      %v850 = vand.u32 %v477, 4294901760
      %v851 = vsub.f32 %v477, %v850
      %852 = vmatmul.f32.gmra.mxu0 %v851
      %v853 = vpop.f32.mrf.mxu0
      %v854 = vadd.f32 %v746, %v853
      %v855 = vand.u32 %v480, 4294901760
      %v856 = vsub.f32 %v480, %v855
      %857 = vmatmul.f32.gmra.mxu0 %v856
      %v858 = vpop.f32.mrf.mxu0
      %v859 = vadd.f32 %v750, %v858
      %v860 = vand.u32 %v483, 4294901760
      %v861 = vsub.f32 %v483, %v860
      %862 = vmatmul.f32.gmra.mxu0 %v861
      %v863 = vpop.f32.mrf.mxu0
      %v864 = vadd.f32 %v754, %v863
      %v865 = vand.u32 %v486, 4294901760
      %v866 = vsub.f32 %v486, %v865
      %867 = vmatmul.f32.gmra.mxu0 %v866
      %v868 = vpop.f32.mrf.mxu0
      %v869 = vadd.f32 %v758, %v868
      %v870 = vand.u32 %v489, 4294901760
      %v871 = vsub.f32 %v489, %v870
      %872 = vmatmul.f32.gmra.mxu0 %v871
      %v873 = vpop.f32.mrf.mxu0
      %v874 = vadd.f32 %v762, %v873
      %v875 = vand.u32 %v492, 4294901760
      %v876 = vsub.f32 %v492, %v875
      %877 = vmatmul.f32.gmra.mxu0 %v876
      %v878 = vpop.f32.mrf.mxu0
      %v879 = vadd.f32 %v766, %v878
      %880 = vdwg.mxu0
      %881 = vmatpush.msra.mxu0 0.0
      %882 = vmatpush.msra.mxu0 0.0
      %883 = vmatpush.msra.mxu0 0.0
      %884 = vmatpush.msra.mxu0 0.0
      %885 = vmatpush.msra.mxu0 0.0
      %886 = vmatpush.msra.mxu0 0.0
      %887 = vmatpush.msra.mxu0 0.0
      %888 = vmatpush.msra.mxu0 0.0
      %v889 = vand.u32 %v218, 4294901760
      %890 = vmatpush.msra.mxu0 %v889
      %v891 = vand.u32 %v217, 4294901760
      %892 = vmatpush.msra.mxu0 %v891
      %v893 = vand.u32 %v216, 4294901760
      %894 = vmatpush.msra.mxu0 %v893
      %v895 = vand.u32 %v215, 4294901760
      %896 = vmatpush.msra.mxu0 %v895
      %v897 = vand.u32 %v214, 4294901760
      %898 = vmatpush.msra.mxu0 %v897
      %v899 = vand.u32 %v213, 4294901760
      %900 = vmatpush.msra.mxu0 %v899
      %v901 = vand.u32 %v212, 4294901760
      %902 = vmatpush.msra.mxu0 %v901
      %v903 = vand.u32 %v211, 4294901760
      %904 = vmatpush.msra.mxu0 %v903
      %v905 = vand.u32 %v447, 4294901760
      %v906 = vsub.f32 %v447, %v905
      %v907 = vand.u32 %v906, 4294901760
      %908 = vmatmul.f32.gmra.mxu0 %v907
      %v909 = vpop.f32.mrf.mxu0
      %v910 = vadd.f32 %v804, %v909
      %v911 = vand.u32 %v450, 4294901760
      %v912 = vsub.f32 %v450, %v911
      %v913 = vand.u32 %v912, 4294901760
      %914 = vmatmul.f32.gmra.mxu0 %v913
      %v915 = vpop.f32.mrf.mxu0
      %v916 = vadd.f32 %v809, %v915
      %v917 = vand.u32 %v453, 4294901760
      %v918 = vsub.f32 %v453, %v917
      %v919 = vand.u32 %v918, 4294901760
      %920 = vmatmul.f32.gmra.mxu0 %v919
      %v921 = vpop.f32.mrf.mxu0
      %v922 = vadd.f32 %v814, %v921
      %v923 = vand.u32 %v456, 4294901760
      %v924 = vsub.f32 %v456, %v923
      %v925 = vand.u32 %v924, 4294901760
      %926 = vmatmul.f32.gmra.mxu0 %v925
      %v927 = vpop.f32.mrf.mxu0
      %v928 = vadd.f32 %v819, %v927
      %v929 = vand.u32 %v459, 4294901760
      %v930 = vsub.f32 %v459, %v929
      %v931 = vand.u32 %v930, 4294901760
      %932 = vmatmul.f32.gmra.mxu0 %v931
      %v933 = vpop.f32.mrf.mxu0
      %v934 = vadd.f32 %v824, %v933
      %v935 = vand.u32 %v462, 4294901760
      %v936 = vsub.f32 %v462, %v935
      %v937 = vand.u32 %v936, 4294901760
      %938 = vmatmul.f32.gmra.mxu0 %v937
      %v939 = vpop.f32.mrf.mxu0
      %v940 = vadd.f32 %v829, %v939
      %v941 = vand.u32 %v465, 4294901760
      %v942 = vsub.f32 %v465, %v941
      %v943 = vand.u32 %v942, 4294901760
      %944 = vmatmul.f32.gmra.mxu0 %v943
      %v945 = vpop.f32.mrf.mxu0
      %v946 = vadd.f32 %v834, %v945
      %v947 = vand.u32 %v468, 4294901760
      %v948 = vsub.f32 %v468, %v947
      %v949 = vand.u32 %v948, 4294901760
      %950 = vmatmul.f32.gmra.mxu0 %v949
      %v951 = vpop.f32.mrf.mxu0
      %v952 = vadd.f32 %v839, %v951
      %v953 = vand.u32 %v471, 4294901760
      %v954 = vsub.f32 %v471, %v953
      %v955 = vand.u32 %v954, 4294901760
      %956 = vmatmul.f32.gmra.mxu0 %v955
      %v957 = vpop.f32.mrf.mxu0
      %v958 = vadd.f32 %v844, %v957
      %v959 = vand.u32 %v474, 4294901760
      %v960 = vsub.f32 %v474, %v959
      %v961 = vand.u32 %v960, 4294901760
      %962 = vmatmul.f32.gmra.mxu0 %v961
      %v963 = vpop.f32.mrf.mxu0
      %v964 = vadd.f32 %v849, %v963
      %v965 = vand.u32 %v477, 4294901760
      %v966 = vsub.f32 %v477, %v965
      %v967 = vand.u32 %v966, 4294901760
      %968 = vmatmul.f32.gmra.mxu0 %v967
      %v969 = vpop.f32.mrf.mxu0
      %v970 = vadd.f32 %v854, %v969
      %v971 = vand.u32 %v480, 4294901760
      %v972 = vsub.f32 %v480, %v971
      %v973 = vand.u32 %v972, 4294901760
      %974 = vmatmul.f32.gmra.mxu0 %v973
      %v975 = vpop.f32.mrf.mxu0
      %v976 = vadd.f32 %v859, %v975
      %v977 = vand.u32 %v483, 4294901760
      %v978 = vsub.f32 %v483, %v977
      %v979 = vand.u32 %v978, 4294901760
      %980 = vmatmul.f32.gmra.mxu0 %v979
      %v981 = vpop.f32.mrf.mxu0
      %v982 = vadd.f32 %v864, %v981
      %v983 = vand.u32 %v486, 4294901760
      %v984 = vsub.f32 %v486, %v983
      %v985 = vand.u32 %v984, 4294901760
      %986 = vmatmul.f32.gmra.mxu0 %v985
      %v987 = vpop.f32.mrf.mxu0
      %v988 = vadd.f32 %v869, %v987
      %v989 = vand.u32 %v489, 4294901760
      %v990 = vsub.f32 %v489, %v989
      %v991 = vand.u32 %v990, 4294901760
      %992 = vmatmul.f32.gmra.mxu0 %v991
      %v993 = vpop.f32.mrf.mxu0
      %v994 = vadd.f32 %v874, %v993
      %v995 = vand.u32 %v492, 4294901760
      %v996 = vsub.f32 %v492, %v995
      %v997 = vand.u32 %v996, 4294901760
      %998 = vmatmul.f32.gmra.mxu0 %v997
      %v999 = vpop.f32.mrf.mxu0
      %v1000 = vadd.f32 %v879, %v999
      %1001 = vdwg.mxu0
      %1002 = vmatpush.msra.mxu0 0.0
      %1003 = vmatpush.msra.mxu0 0.0
      %1004 = vmatpush.msra.mxu0 0.0
      %1005 = vmatpush.msra.mxu0 0.0
      %1006 = vmatpush.msra.mxu0 0.0
      %1007 = vmatpush.msra.mxu0 0.0
      %1008 = vmatpush.msra.mxu0 0.0
      %1009 = vmatpush.msra.mxu0 0.0
      %v1010 = vand.u32 %v218, 4294901760
      %v1011 = vsub.f32 %v218, %v1010
      %v1012 = vand.u32 %v1011, 4294901760
      %1013 = vmatpush.msra.mxu0 %v1012
      %v1014 = vand.u32 %v217, 4294901760
      %v1015 = vsub.f32 %v217, %v1014
      %v1016 = vand.u32 %v1015, 4294901760
      %1017 = vmatpush.msra.mxu0 %v1016
      %v1018 = vand.u32 %v216, 4294901760
      %v1019 = vsub.f32 %v216, %v1018
      %v1020 = vand.u32 %v1019, 4294901760
      %1021 = vmatpush.msra.mxu0 %v1020
      %v1022 = vand.u32 %v215, 4294901760
      %v1023 = vsub.f32 %v215, %v1022
      %v1024 = vand.u32 %v1023, 4294901760
      %1025 = vmatpush.msra.mxu0 %v1024
      %v1026 = vand.u32 %v214, 4294901760
      %v1027 = vsub.f32 %v214, %v1026
      %v1028 = vand.u32 %v1027, 4294901760
      %1029 = vmatpush.msra.mxu0 %v1028
      %v1030 = vand.u32 %v213, 4294901760
      %v1031 = vsub.f32 %v213, %v1030
      %v1032 = vand.u32 %v1031, 4294901760
      %1033 = vmatpush.msra.mxu0 %v1032
      %v1034 = vand.u32 %v212, 4294901760
      %v1035 = vsub.f32 %v212, %v1034
      %v1036 = vand.u32 %v1035, 4294901760
      %1037 = vmatpush.msra.mxu0 %v1036
      %v1038 = vand.u32 %v211, 4294901760
      %v1039 = vsub.f32 %v211, %v1038
      %v1040 = vand.u32 %v1039, 4294901760
      %1041 = vmatpush.msra.mxu0 %v1040
      %v1042 = vand.u32 %v447, 4294901760
      %1043 = vmatmul.f32.gmra.mxu0 %v1042
      %v1044 = vpop.f32.mrf.mxu0
      %v1045 = vadd.f32 %v910, %v1044
      %v1046 = vand.u32 %v450, 4294901760
      %1047 = vmatmul.f32.gmra.mxu0 %v1046
      %v1048 = vpop.f32.mrf.mxu0
      %v1049 = vadd.f32 %v916, %v1048
      %v1050 = vand.u32 %v453, 4294901760
      %1051 = vmatmul.f32.gmra.mxu0 %v1050
      %v1052 = vpop.f32.mrf.mxu0
      %v1053 = vadd.f32 %v922, %v1052
      %v1054 = vand.u32 %v456, 4294901760
      %1055 = vmatmul.f32.gmra.mxu0 %v1054
      %v1056 = vpop.f32.mrf.mxu0
      %v1057 = vadd.f32 %v928, %v1056
      %v1058 = vand.u32 %v459, 4294901760
      %1059 = vmatmul.f32.gmra.mxu0 %v1058
      %v1060 = vpop.f32.mrf.mxu0
      %v1061 = vadd.f32 %v934, %v1060
      %v1062 = vand.u32 %v462, 4294901760
      %1063 = vmatmul.f32.gmra.mxu0 %v1062
      %v1064 = vpop.f32.mrf.mxu0
      %v1065 = vadd.f32 %v940, %v1064
      %v1066 = vand.u32 %v465, 4294901760
      %1067 = vmatmul.f32.gmra.mxu0 %v1066
      %v1068 = vpop.f32.mrf.mxu0
      %v1069 = vadd.f32 %v946, %v1068
      %v1070 = vand.u32 %v468, 4294901760
      %1071 = vmatmul.f32.gmra.mxu0 %v1070
      %v1072 = vpop.f32.mrf.mxu0
      %v1073 = vadd.f32 %v952, %v1072
      %v1074 = vand.u32 %v471, 4294901760
      %1075 = vmatmul.f32.gmra.mxu0 %v1074
      %v1076 = vpop.f32.mrf.mxu0
      %v1077 = vadd.f32 %v958, %v1076
      %v1078 = vand.u32 %v474, 4294901760
      %1079 = vmatmul.f32.gmra.mxu0 %v1078
      %v1080 = vpop.f32.mrf.mxu0
      %v1081 = vadd.f32 %v964, %v1080
      %v1082 = vand.u32 %v477, 4294901760
      %1083 = vmatmul.f32.gmra.mxu0 %v1082
      %v1084 = vpop.f32.mrf.mxu0
      %v1085 = vadd.f32 %v970, %v1084
      %v1086 = vand.u32 %v480, 4294901760
      %1087 = vmatmul.f32.gmra.mxu0 %v1086
      %v1088 = vpop.f32.mrf.mxu0
      %v1089 = vadd.f32 %v976, %v1088
      %v1090 = vand.u32 %v483, 4294901760
      %1091 = vmatmul.f32.gmra.mxu0 %v1090
      %v1092 = vpop.f32.mrf.mxu0
      %v1093 = vadd.f32 %v982, %v1092
      %v1094 = vand.u32 %v486, 4294901760
      %1095 = vmatmul.f32.gmra.mxu0 %v1094
      %v1096 = vpop.f32.mrf.mxu0
      %v1097 = vadd.f32 %v988, %v1096
      %v1098 = vand.u32 %v489, 4294901760
      %1099 = vmatmul.f32.gmra.mxu0 %v1098
      %v1100 = vpop.f32.mrf.mxu0
      %v1101 = vadd.f32 %v994, %v1100
      %v1102 = vand.u32 %v492, 4294901760
      %1103 = vmatmul.f32.gmra.mxu0 %v1102
      %v1104 = vpop.f32.mrf.mxu0
      %v1105 = vadd.f32 %v1000, %v1104
      %1106 = vdwg.mxu0
      %1107 = vmatpush.msra.mxu0 0.0
      %1108 = vmatpush.msra.mxu0 0.0
      %1109 = vmatpush.msra.mxu0 0.0
      %1110 = vmatpush.msra.mxu0 0.0
      %1111 = vmatpush.msra.mxu0 0.0
      %1112 = vmatpush.msra.mxu0 0.0
      %1113 = vmatpush.msra.mxu0 0.0
      %1114 = vmatpush.msra.mxu0 0.0
      %v1115 = vand.u32 %v218, 4294901760
      %1116 = vmatpush.msra.mxu0 %v1115
      %v1117 = vand.u32 %v217, 4294901760
      %1118 = vmatpush.msra.mxu0 %v1117
      %v1119 = vand.u32 %v216, 4294901760
      %1120 = vmatpush.msra.mxu0 %v1119
      %v1121 = vand.u32 %v215, 4294901760
      %1122 = vmatpush.msra.mxu0 %v1121
      %v1123 = vand.u32 %v214, 4294901760
      %1124 = vmatpush.msra.mxu0 %v1123
      %v1125 = vand.u32 %v213, 4294901760
      %1126 = vmatpush.msra.mxu0 %v1125
      %v1127 = vand.u32 %v212, 4294901760
      %1128 = vmatpush.msra.mxu0 %v1127
      %v1129 = vand.u32 %v211, 4294901760
      %1130 = vmatpush.msra.mxu0 %v1129
      %v1131 = vand.u32 %v447, 4294901760
      %1132 = vmatmul.f32.gmra.mxu0 %v1131
      %v1133 = vpop.f32.mrf.mxu0
      %v1134 = vadd.f32 %v1045, %v1133
      %v1135 = vand.u32 %v450, 4294901760
      %1136 = vmatmul.f32.gmra.mxu0 %v1135
      %v1137 = vpop.f32.mrf.mxu0
      %v1138 = vadd.f32 %v1049, %v1137
      %v1139 = vand.u32 %v453, 4294901760
      %1140 = vmatmul.f32.gmra.mxu0 %v1139
      %v1141 = vpop.f32.mrf.mxu0
      %v1142 = vadd.f32 %v1053, %v1141
      %v1143 = vand.u32 %v456, 4294901760
      %1144 = vmatmul.f32.gmra.mxu0 %v1143
      %v1145 = vpop.f32.mrf.mxu0
      %v1146 = vadd.f32 %v1057, %v1145
      %v1147 = vand.u32 %v459, 4294901760
      %1148 = vmatmul.f32.gmra.mxu0 %v1147
      %v1149 = vpop.f32.mrf.mxu0
      %v1150 = vadd.f32 %v1061, %v1149
      %v1151 = vand.u32 %v462, 4294901760
      %1152 = vmatmul.f32.gmra.mxu0 %v1151
      %v1153 = vpop.f32.mrf.mxu0
      %v1154 = vadd.f32 %v1065, %v1153
      %v1155 = vand.u32 %v465, 4294901760
      %1156 = vmatmul.f32.gmra.mxu0 %v1155
      %v1157 = vpop.f32.mrf.mxu0
      %v1158 = vadd.f32 %v1069, %v1157
      %v1159 = vand.u32 %v468, 4294901760
      %1160 = vmatmul.f32.gmra.mxu0 %v1159
      %v1161 = vpop.f32.mrf.mxu0
      %v1162 = vadd.f32 %v1073, %v1161
      %v1163 = vand.u32 %v471, 4294901760
      %1164 = vmatmul.f32.gmra.mxu0 %v1163
      %v1165 = vpop.f32.mrf.mxu0
      %v1166 = vadd.f32 %v1077, %v1165
      %v1167 = vand.u32 %v474, 4294901760
      %1168 = vmatmul.f32.gmra.mxu0 %v1167
      %v1169 = vpop.f32.mrf.mxu0
      %v1170 = vadd.f32 %v1081, %v1169
      %v1171 = vand.u32 %v477, 4294901760
      %1172 = vmatmul.f32.gmra.mxu0 %v1171
      %v1173 = vpop.f32.mrf.mxu0
      %v1174 = vadd.f32 %v1085, %v1173
      %v1175 = vand.u32 %v480, 4294901760
      %1176 = vmatmul.f32.gmra.mxu0 %v1175
      %v1177 = vpop.f32.mrf.mxu0
      %v1178 = vadd.f32 %v1089, %v1177
      %v1179 = vand.u32 %v483, 4294901760
      %1180 = vmatmul.f32.gmra.mxu0 %v1179
      %v1181 = vpop.f32.mrf.mxu0
      %v1182 = vadd.f32 %v1093, %v1181
      %v1183 = vand.u32 %v486, 4294901760
      %1184 = vmatmul.f32.gmra.mxu0 %v1183
      %v1185 = vpop.f32.mrf.mxu0
      %v1186 = vadd.f32 %v1097, %v1185
      %v1187 = vand.u32 %v489, 4294901760
      %1188 = vmatmul.f32.gmra.mxu0 %v1187
      %v1189 = vpop.f32.mrf.mxu0
      %v1190 = vadd.f32 %v1101, %v1189
      %v1191 = vand.u32 %v492, 4294901760
      %1192 = vmatmul.f32.gmra.mxu0 %v1191
      %v1193 = vpop.f32.mrf.mxu0
      %v1194 = vadd.f32 %v1105, %v1193
      %1195 = vdwg.mxu0
      %v1197 = vsel %vm445, %v429, 0
      %v1200 = vsel %vm445, %v430, 0
      %v1203 = vsel %vm445, %v431, 0
      %v1206 = vsel %vm445, %v432, 0
      %v1209 = vsel %vm445, %v433, 0
      %v1212 = vsel %vm445, %v434, 0
      %v1215 = vsel %vm445, %v435, 0
      %v1218 = vsel %vm445, %v436, 0
      %v1221 = vsel %vm445, %v437, 0
      %v1224 = vsel %vm445, %v438, 0
      %v1227 = vsel %vm445, %v439, 0
      %v1230 = vsel %vm445, %v440, 0
      %v1233 = vsel %vm445, %v441, 0
      %v1236 = vsel %vm445, %v442, 0
      %v1239 = vsel %vm445, %v443, 0
      %v1242 = vsel %vm445, %v444, 0
      %1244 = vmatpush.msra.mxu0 0.0
      %1245 = vmatpush.msra.mxu0 0.0
      %1246 = vmatpush.msra.mxu0 0.0
      %1247 = vmatpush.msra.mxu0 0.0
      %1248 = vmatpush.msra.mxu0 0.0
      %1249 = vmatpush.msra.mxu0 0.0
      %1250 = vmatpush.msra.mxu0 0.0
      %1251 = vmatpush.msra.mxu0 0.0
      %v1252 = vand.u32 %v218, 4294901760
      %1253 = vmatpush.msra.mxu0 %v1252
      %v1254 = vand.u32 %v217, 4294901760
      %1255 = vmatpush.msra.mxu0 %v1254
      %v1256 = vand.u32 %v216, 4294901760
      %1257 = vmatpush.msra.mxu0 %v1256
      %v1258 = vand.u32 %v215, 4294901760
      %1259 = vmatpush.msra.mxu0 %v1258
      %v1260 = vand.u32 %v214, 4294901760
      %1261 = vmatpush.msra.mxu0 %v1260
      %v1262 = vand.u32 %v213, 4294901760
      %1263 = vmatpush.msra.mxu0 %v1262
      %v1264 = vand.u32 %v212, 4294901760
      %1265 = vmatpush.msra.mxu0 %v1264
      %v1266 = vand.u32 %v211, 4294901760
      %1267 = vmatpush.msra.mxu0 %v1266
      %v1268 = vand.u32 %v1197, 4294901760
      %v1269 = vsub.f32 %v1197, %v1268
      %v1270 = vand.u32 %v1269, 4294901760
      %v1271 = vsub.f32 %v1269, %v1270
      %v1272 = vand.u32 %v1271, 4294901760
      %1273 = vmatmul.f32.gmra.mxu0 %v1272
      %v1274 = vpop.f32.mrf.mxu0
      %v1275 = vadd.f32 0.0, %v1274
      %v1276 = vand.u32 %v1200, 4294901760
      %v1277 = vsub.f32 %v1200, %v1276
      %v1278 = vand.u32 %v1277, 4294901760
      %v1279 = vsub.f32 %v1277, %v1278
      %v1280 = vand.u32 %v1279, 4294901760
      %1281 = vmatmul.f32.gmra.mxu0 %v1280
      %v1282 = vpop.f32.mrf.mxu0
      %v1283 = vadd.f32 0.0, %v1282
      %v1284 = vand.u32 %v1203, 4294901760
      %v1285 = vsub.f32 %v1203, %v1284
      %v1286 = vand.u32 %v1285, 4294901760
      %v1287 = vsub.f32 %v1285, %v1286
      %v1288 = vand.u32 %v1287, 4294901760
      %1289 = vmatmul.f32.gmra.mxu0 %v1288
      %v1290 = vpop.f32.mrf.mxu0
      %v1291 = vadd.f32 0.0, %v1290
      %v1292 = vand.u32 %v1206, 4294901760
      %v1293 = vsub.f32 %v1206, %v1292
      %v1294 = vand.u32 %v1293, 4294901760
      %v1295 = vsub.f32 %v1293, %v1294
      %v1296 = vand.u32 %v1295, 4294901760
      %1297 = vmatmul.f32.gmra.mxu0 %v1296
      %v1298 = vpop.f32.mrf.mxu0
      %v1299 = vadd.f32 0.0, %v1298
      %v1300 = vand.u32 %v1209, 4294901760
      %v1301 = vsub.f32 %v1209, %v1300
      %v1302 = vand.u32 %v1301, 4294901760
      %v1303 = vsub.f32 %v1301, %v1302
      %v1304 = vand.u32 %v1303, 4294901760
      %1305 = vmatmul.f32.gmra.mxu0 %v1304
      %v1306 = vpop.f32.mrf.mxu0
      %v1307 = vadd.f32 0.0, %v1306
      %v1308 = vand.u32 %v1212, 4294901760
      %v1309 = vsub.f32 %v1212, %v1308
      %v1310 = vand.u32 %v1309, 4294901760
      %v1311 = vsub.f32 %v1309, %v1310
      %v1312 = vand.u32 %v1311, 4294901760
      %1313 = vmatmul.f32.gmra.mxu0 %v1312
      %v1314 = vpop.f32.mrf.mxu0
      %v1315 = vadd.f32 0.0, %v1314
      %v1316 = vand.u32 %v1215, 4294901760
      %v1317 = vsub.f32 %v1215, %v1316
      %v1318 = vand.u32 %v1317, 4294901760
      %v1319 = vsub.f32 %v1317, %v1318
      %v1320 = vand.u32 %v1319, 4294901760
      %1321 = vmatmul.f32.gmra.mxu0 %v1320
      %v1322 = vpop.f32.mrf.mxu0
      %v1323 = vadd.f32 0.0, %v1322
      %v1324 = vand.u32 %v1218, 4294901760
      %v1325 = vsub.f32 %v1218, %v1324
      %v1326 = vand.u32 %v1325, 4294901760
      %v1327 = vsub.f32 %v1325, %v1326
      %v1328 = vand.u32 %v1327, 4294901760
      %1329 = vmatmul.f32.gmra.mxu0 %v1328
      %v1330 = vpop.f32.mrf.mxu0
      %v1331 = vadd.f32 0.0, %v1330
      %v1332 = vand.u32 %v1221, 4294901760
      %v1333 = vsub.f32 %v1221, %v1332
      %v1334 = vand.u32 %v1333, 4294901760
      %v1335 = vsub.f32 %v1333, %v1334
      %v1336 = vand.u32 %v1335, 4294901760
      %1337 = vmatmul.f32.gmra.mxu0 %v1336
      %v1338 = vpop.f32.mrf.mxu0
      %v1339 = vadd.f32 0.0, %v1338
      %v1340 = vand.u32 %v1224, 4294901760
      %v1341 = vsub.f32 %v1224, %v1340
      %v1342 = vand.u32 %v1341, 4294901760
      %v1343 = vsub.f32 %v1341, %v1342
      %v1344 = vand.u32 %v1343, 4294901760
      %1345 = vmatmul.f32.gmra.mxu0 %v1344
      %v1346 = vpop.f32.mrf.mxu0
      %v1347 = vadd.f32 0.0, %v1346
      %v1348 = vand.u32 %v1227, 4294901760
      %v1349 = vsub.f32 %v1227, %v1348
      %v1350 = vand.u32 %v1349, 4294901760
      %v1351 = vsub.f32 %v1349, %v1350
      %v1352 = vand.u32 %v1351, 4294901760
      %1353 = vmatmul.f32.gmra.mxu0 %v1352
      %v1354 = vpop.f32.mrf.mxu0
      %v1355 = vadd.f32 0.0, %v1354
      %v1356 = vand.u32 %v1230, 4294901760
      %v1357 = vsub.f32 %v1230, %v1356
      %v1358 = vand.u32 %v1357, 4294901760
      %v1359 = vsub.f32 %v1357, %v1358
      %v1360 = vand.u32 %v1359, 4294901760
      %1361 = vmatmul.f32.gmra.mxu0 %v1360
      %v1362 = vpop.f32.mrf.mxu0
      %v1363 = vadd.f32 0.0, %v1362
      %v1364 = vand.u32 %v1233, 4294901760
      %v1365 = vsub.f32 %v1233, %v1364
      %v1366 = vand.u32 %v1365, 4294901760
      %v1367 = vsub.f32 %v1365, %v1366
      %v1368 = vand.u32 %v1367, 4294901760
      %1369 = vmatmul.f32.gmra.mxu0 %v1368
      %v1370 = vpop.f32.mrf.mxu0
      %v1371 = vadd.f32 0.0, %v1370
      %v1372 = vand.u32 %v1236, 4294901760
      %v1373 = vsub.f32 %v1236, %v1372
      %v1374 = vand.u32 %v1373, 4294901760
      %v1375 = vsub.f32 %v1373, %v1374
      %v1376 = vand.u32 %v1375, 4294901760
      %1377 = vmatmul.f32.gmra.mxu0 %v1376
      %v1378 = vpop.f32.mrf.mxu0
      %v1379 = vadd.f32 0.0, %v1378
      %v1380 = vand.u32 %v1239, 4294901760
      %v1381 = vsub.f32 %v1239, %v1380
      %v1382 = vand.u32 %v1381, 4294901760
      %v1383 = vsub.f32 %v1381, %v1382
      %v1384 = vand.u32 %v1383, 4294901760
      %1385 = vmatmul.f32.gmra.mxu0 %v1384
      %v1386 = vpop.f32.mrf.mxu0
      %v1387 = vadd.f32 0.0, %v1386
      %v1388 = vand.u32 %v1242, 4294901760
      %v1389 = vsub.f32 %v1242, %v1388
      %v1390 = vand.u32 %v1389, 4294901760
      %v1391 = vsub.f32 %v1389, %v1390
      %v1392 = vand.u32 %v1391, 4294901760
      %1393 = vmatmul.f32.gmra.mxu0 %v1392
      %v1394 = vpop.f32.mrf.mxu0
      %v1395 = vadd.f32 0.0, %v1394
      %1396 = vdwg.mxu0
      %1397 = vmatpush.msra.mxu0 0.0
      %1398 = vmatpush.msra.mxu0 0.0
      %1399 = vmatpush.msra.mxu0 0.0
      %1400 = vmatpush.msra.mxu0 0.0
      %1401 = vmatpush.msra.mxu0 0.0
      %1402 = vmatpush.msra.mxu0 0.0
      %1403 = vmatpush.msra.mxu0 0.0
      %1404 = vmatpush.msra.mxu0 0.0
      %v1405 = vand.u32 %v218, 4294901760
      %v1406 = vsub.f32 %v218, %v1405
      %v1407 = vand.u32 %v1406, 4294901760
      %v1408 = vsub.f32 %v1406, %v1407
      %v1409 = vand.u32 %v1408, 4294901760
      %1410 = vmatpush.msra.mxu0 %v1409
      %v1411 = vand.u32 %v217, 4294901760
      %v1412 = vsub.f32 %v217, %v1411
      %v1413 = vand.u32 %v1412, 4294901760
      %v1414 = vsub.f32 %v1412, %v1413
      %v1415 = vand.u32 %v1414, 4294901760
      %1416 = vmatpush.msra.mxu0 %v1415
      %v1417 = vand.u32 %v216, 4294901760
      %v1418 = vsub.f32 %v216, %v1417
      %v1419 = vand.u32 %v1418, 4294901760
      %v1420 = vsub.f32 %v1418, %v1419
      %v1421 = vand.u32 %v1420, 4294901760
      %1422 = vmatpush.msra.mxu0 %v1421
      %v1423 = vand.u32 %v215, 4294901760
      %v1424 = vsub.f32 %v215, %v1423
      %v1425 = vand.u32 %v1424, 4294901760
      %v1426 = vsub.f32 %v1424, %v1425
      %v1427 = vand.u32 %v1426, 4294901760
      %1428 = vmatpush.msra.mxu0 %v1427
      %v1429 = vand.u32 %v214, 4294901760
      %v1430 = vsub.f32 %v214, %v1429
      %v1431 = vand.u32 %v1430, 4294901760
      %v1432 = vsub.f32 %v1430, %v1431
      %v1433 = vand.u32 %v1432, 4294901760
      %1434 = vmatpush.msra.mxu0 %v1433
      %v1435 = vand.u32 %v213, 4294901760
      %v1436 = vsub.f32 %v213, %v1435
      %v1437 = vand.u32 %v1436, 4294901760
      %v1438 = vsub.f32 %v1436, %v1437
      %v1439 = vand.u32 %v1438, 4294901760
      %1440 = vmatpush.msra.mxu0 %v1439
      %v1441 = vand.u32 %v212, 4294901760
      %v1442 = vsub.f32 %v212, %v1441
      %v1443 = vand.u32 %v1442, 4294901760
      %v1444 = vsub.f32 %v1442, %v1443
      %v1445 = vand.u32 %v1444, 4294901760
      %1446 = vmatpush.msra.mxu0 %v1445
      %v1447 = vand.u32 %v211, 4294901760
      %v1448 = vsub.f32 %v211, %v1447
      %v1449 = vand.u32 %v1448, 4294901760
      %v1450 = vsub.f32 %v1448, %v1449
      %v1451 = vand.u32 %v1450, 4294901760
      %1452 = vmatpush.msra.mxu0 %v1451
      %v1453 = vand.u32 %v1197, 4294901760
      %1454 = vmatmul.f32.gmra.mxu0 %v1453
      %v1455 = vpop.f32.mrf.mxu0
      %v1456 = vadd.f32 %v1275, %v1455
      %v1457 = vand.u32 %v1200, 4294901760
      %1458 = vmatmul.f32.gmra.mxu0 %v1457
      %v1459 = vpop.f32.mrf.mxu0
      %v1460 = vadd.f32 %v1283, %v1459
      %v1461 = vand.u32 %v1203, 4294901760
      %1462 = vmatmul.f32.gmra.mxu0 %v1461
      %v1463 = vpop.f32.mrf.mxu0
      %v1464 = vadd.f32 %v1291, %v1463
      %v1465 = vand.u32 %v1206, 4294901760
      %1466 = vmatmul.f32.gmra.mxu0 %v1465
      %v1467 = vpop.f32.mrf.mxu0
      %v1468 = vadd.f32 %v1299, %v1467
      %v1469 = vand.u32 %v1209, 4294901760
      %1470 = vmatmul.f32.gmra.mxu0 %v1469
      %v1471 = vpop.f32.mrf.mxu0
      %v1472 = vadd.f32 %v1307, %v1471
      %v1473 = vand.u32 %v1212, 4294901760
      %1474 = vmatmul.f32.gmra.mxu0 %v1473
      %v1475 = vpop.f32.mrf.mxu0
      %v1476 = vadd.f32 %v1315, %v1475
      %v1477 = vand.u32 %v1215, 4294901760
      %1478 = vmatmul.f32.gmra.mxu0 %v1477
      %v1479 = vpop.f32.mrf.mxu0
      %v1480 = vadd.f32 %v1323, %v1479
      %v1481 = vand.u32 %v1218, 4294901760
      %1482 = vmatmul.f32.gmra.mxu0 %v1481
      %v1483 = vpop.f32.mrf.mxu0
      %v1484 = vadd.f32 %v1331, %v1483
      %v1485 = vand.u32 %v1221, 4294901760
      %1486 = vmatmul.f32.gmra.mxu0 %v1485
      %v1487 = vpop.f32.mrf.mxu0
      %v1488 = vadd.f32 %v1339, %v1487
      %v1489 = vand.u32 %v1224, 4294901760
      %1490 = vmatmul.f32.gmra.mxu0 %v1489
      %v1491 = vpop.f32.mrf.mxu0
      %v1492 = vadd.f32 %v1347, %v1491
      %v1493 = vand.u32 %v1227, 4294901760
      %1494 = vmatmul.f32.gmra.mxu0 %v1493
      %v1495 = vpop.f32.mrf.mxu0
      %v1496 = vadd.f32 %v1355, %v1495
      %v1497 = vand.u32 %v1230, 4294901760
      %1498 = vmatmul.f32.gmra.mxu0 %v1497
      %v1499 = vpop.f32.mrf.mxu0
      %v1500 = vadd.f32 %v1363, %v1499
      %v1501 = vand.u32 %v1233, 4294901760
      %1502 = vmatmul.f32.gmra.mxu0 %v1501
      %v1503 = vpop.f32.mrf.mxu0
      %v1504 = vadd.f32 %v1371, %v1503
      %v1505 = vand.u32 %v1236, 4294901760
      %1506 = vmatmul.f32.gmra.mxu0 %v1505
      %v1507 = vpop.f32.mrf.mxu0
      %v1508 = vadd.f32 %v1379, %v1507
      %v1509 = vand.u32 %v1239, 4294901760
      %1510 = vmatmul.f32.gmra.mxu0 %v1509
      %v1511 = vpop.f32.mrf.mxu0
      %v1512 = vadd.f32 %v1387, %v1511
      %v1513 = vand.u32 %v1242, 4294901760
      %1514 = vmatmul.f32.gmra.mxu0 %v1513
      %v1515 = vpop.f32.mrf.mxu0
      %v1516 = vadd.f32 %v1395, %v1515
      %1517 = vdwg.mxu0
      %1518 = vmatpush.msra.mxu0 0.0
      %1519 = vmatpush.msra.mxu0 0.0
      %1520 = vmatpush.msra.mxu0 0.0
      %1521 = vmatpush.msra.mxu0 0.0
      %1522 = vmatpush.msra.mxu0 0.0
      %1523 = vmatpush.msra.mxu0 0.0
      %1524 = vmatpush.msra.mxu0 0.0
      %1525 = vmatpush.msra.mxu0 0.0
      %v1526 = vand.u32 %v218, 4294901760
      %v1527 = vsub.f32 %v218, %v1526
      %1528 = vmatpush.msra.mxu0 %v1527
      %v1529 = vand.u32 %v217, 4294901760
      %v1530 = vsub.f32 %v217, %v1529
      %1531 = vmatpush.msra.mxu0 %v1530
      %v1532 = vand.u32 %v216, 4294901760
      %v1533 = vsub.f32 %v216, %v1532
      %1534 = vmatpush.msra.mxu0 %v1533
      %v1535 = vand.u32 %v215, 4294901760
      %v1536 = vsub.f32 %v215, %v1535
      %1537 = vmatpush.msra.mxu0 %v1536
      %v1538 = vand.u32 %v214, 4294901760
      %v1539 = vsub.f32 %v214, %v1538
      %1540 = vmatpush.msra.mxu0 %v1539
      %v1541 = vand.u32 %v213, 4294901760
      %v1542 = vsub.f32 %v213, %v1541
      %1543 = vmatpush.msra.mxu0 %v1542
      %v1544 = vand.u32 %v212, 4294901760
      %v1545 = vsub.f32 %v212, %v1544
      %1546 = vmatpush.msra.mxu0 %v1545
      %v1547 = vand.u32 %v211, 4294901760
      %v1548 = vsub.f32 %v211, %v1547
      %1549 = vmatpush.msra.mxu0 %v1548
      %v1550 = vand.u32 %v1197, 4294901760
      %v1551 = vsub.f32 %v1197, %v1550
      %1552 = vmatmul.f32.gmra.mxu0 %v1551
      %v1553 = vpop.f32.mrf.mxu0
      %v1554 = vadd.f32 %v1456, %v1553
      %v1555 = vand.u32 %v1200, 4294901760
      %v1556 = vsub.f32 %v1200, %v1555
      %1557 = vmatmul.f32.gmra.mxu0 %v1556
      %v1558 = vpop.f32.mrf.mxu0
      %v1559 = vadd.f32 %v1460, %v1558
      %v1560 = vand.u32 %v1203, 4294901760
      %v1561 = vsub.f32 %v1203, %v1560
      %1562 = vmatmul.f32.gmra.mxu0 %v1561
      %v1563 = vpop.f32.mrf.mxu0
      %v1564 = vadd.f32 %v1464, %v1563
      %v1565 = vand.u32 %v1206, 4294901760
      %v1566 = vsub.f32 %v1206, %v1565
      %1567 = vmatmul.f32.gmra.mxu0 %v1566
      %v1568 = vpop.f32.mrf.mxu0
      %v1569 = vadd.f32 %v1468, %v1568
      %v1570 = vand.u32 %v1209, 4294901760
      %v1571 = vsub.f32 %v1209, %v1570
      %1572 = vmatmul.f32.gmra.mxu0 %v1571
      %v1573 = vpop.f32.mrf.mxu0
      %v1574 = vadd.f32 %v1472, %v1573
      %v1575 = vand.u32 %v1212, 4294901760
      %v1576 = vsub.f32 %v1212, %v1575
      %1577 = vmatmul.f32.gmra.mxu0 %v1576
      %v1578 = vpop.f32.mrf.mxu0
      %v1579 = vadd.f32 %v1476, %v1578
      %v1580 = vand.u32 %v1215, 4294901760
      %v1581 = vsub.f32 %v1215, %v1580
      %1582 = vmatmul.f32.gmra.mxu0 %v1581
      %v1583 = vpop.f32.mrf.mxu0
      %v1584 = vadd.f32 %v1480, %v1583
      %v1585 = vand.u32 %v1218, 4294901760
      %v1586 = vsub.f32 %v1218, %v1585
      %1587 = vmatmul.f32.gmra.mxu0 %v1586
      %v1588 = vpop.f32.mrf.mxu0
      %v1589 = vadd.f32 %v1484, %v1588
      %v1590 = vand.u32 %v1221, 4294901760
      %v1591 = vsub.f32 %v1221, %v1590
      %1592 = vmatmul.f32.gmra.mxu0 %v1591
      %v1593 = vpop.f32.mrf.mxu0
      %v1594 = vadd.f32 %v1488, %v1593
      %v1595 = vand.u32 %v1224, 4294901760
      %v1596 = vsub.f32 %v1224, %v1595
      %1597 = vmatmul.f32.gmra.mxu0 %v1596
      %v1598 = vpop.f32.mrf.mxu0
      %v1599 = vadd.f32 %v1492, %v1598
      %v1600 = vand.u32 %v1227, 4294901760
      %v1601 = vsub.f32 %v1227, %v1600
      %1602 = vmatmul.f32.gmra.mxu0 %v1601
      %v1603 = vpop.f32.mrf.mxu0
      %v1604 = vadd.f32 %v1496, %v1603
      %v1605 = vand.u32 %v1230, 4294901760
      %v1606 = vsub.f32 %v1230, %v1605
      %1607 = vmatmul.f32.gmra.mxu0 %v1606
      %v1608 = vpop.f32.mrf.mxu0
      %v1609 = vadd.f32 %v1500, %v1608
      %v1610 = vand.u32 %v1233, 4294901760
      %v1611 = vsub.f32 %v1233, %v1610
      %1612 = vmatmul.f32.gmra.mxu0 %v1611
      %v1613 = vpop.f32.mrf.mxu0
      %v1614 = vadd.f32 %v1504, %v1613
      %v1615 = vand.u32 %v1236, 4294901760
      %v1616 = vsub.f32 %v1236, %v1615
      %1617 = vmatmul.f32.gmra.mxu0 %v1616
      %v1618 = vpop.f32.mrf.mxu0
      %v1619 = vadd.f32 %v1508, %v1618
      %v1620 = vand.u32 %v1239, 4294901760
      %v1621 = vsub.f32 %v1239, %v1620
      %1622 = vmatmul.f32.gmra.mxu0 %v1621
      %v1623 = vpop.f32.mrf.mxu0
      %v1624 = vadd.f32 %v1512, %v1623
      %v1625 = vand.u32 %v1242, 4294901760
      %v1626 = vsub.f32 %v1242, %v1625
      %1627 = vmatmul.f32.gmra.mxu0 %v1626
      %v1628 = vpop.f32.mrf.mxu0
      %v1629 = vadd.f32 %v1516, %v1628
      %1630 = vdwg.mxu0
      %1631 = vmatpush.msra.mxu0 0.0
      %1632 = vmatpush.msra.mxu0 0.0
      %1633 = vmatpush.msra.mxu0 0.0
      %1634 = vmatpush.msra.mxu0 0.0
      %1635 = vmatpush.msra.mxu0 0.0
      %1636 = vmatpush.msra.mxu0 0.0
      %1637 = vmatpush.msra.mxu0 0.0
      %1638 = vmatpush.msra.mxu0 0.0
      %v1639 = vand.u32 %v218, 4294901760
      %1640 = vmatpush.msra.mxu0 %v1639
      %v1641 = vand.u32 %v217, 4294901760
      %1642 = vmatpush.msra.mxu0 %v1641
      %v1643 = vand.u32 %v216, 4294901760
      %1644 = vmatpush.msra.mxu0 %v1643
      %v1645 = vand.u32 %v215, 4294901760
      %1646 = vmatpush.msra.mxu0 %v1645
      %v1647 = vand.u32 %v214, 4294901760
      %1648 = vmatpush.msra.mxu0 %v1647
      %v1649 = vand.u32 %v213, 4294901760
      %1650 = vmatpush.msra.mxu0 %v1649
      %v1651 = vand.u32 %v212, 4294901760
      %1652 = vmatpush.msra.mxu0 %v1651
      %v1653 = vand.u32 %v211, 4294901760
      %1654 = vmatpush.msra.mxu0 %v1653
      %v1655 = vand.u32 %v1197, 4294901760
      %v1656 = vsub.f32 %v1197, %v1655
      %v1657 = vand.u32 %v1656, 4294901760
      %1658 = vmatmul.f32.gmra.mxu0 %v1657
      %v1659 = vpop.f32.mrf.mxu0
      %v1660 = vadd.f32 %v1554, %v1659
      %v1661 = vand.u32 %v1200, 4294901760
      %v1662 = vsub.f32 %v1200, %v1661
      %v1663 = vand.u32 %v1662, 4294901760
      %1664 = vmatmul.f32.gmra.mxu0 %v1663
      %v1665 = vpop.f32.mrf.mxu0
      %v1666 = vadd.f32 %v1559, %v1665
      %v1667 = vand.u32 %v1203, 4294901760
      %v1668 = vsub.f32 %v1203, %v1667
      %v1669 = vand.u32 %v1668, 4294901760
      %1670 = vmatmul.f32.gmra.mxu0 %v1669
      %v1671 = vpop.f32.mrf.mxu0
      %v1672 = vadd.f32 %v1564, %v1671
      %v1673 = vand.u32 %v1206, 4294901760
      %v1674 = vsub.f32 %v1206, %v1673
      %v1675 = vand.u32 %v1674, 4294901760
      %1676 = vmatmul.f32.gmra.mxu0 %v1675
      %v1677 = vpop.f32.mrf.mxu0
      %v1678 = vadd.f32 %v1569, %v1677
      %v1679 = vand.u32 %v1209, 4294901760
      %v1680 = vsub.f32 %v1209, %v1679
      %v1681 = vand.u32 %v1680, 4294901760
      %1682 = vmatmul.f32.gmra.mxu0 %v1681
      %v1683 = vpop.f32.mrf.mxu0
      %v1684 = vadd.f32 %v1574, %v1683
      %v1685 = vand.u32 %v1212, 4294901760
      %v1686 = vsub.f32 %v1212, %v1685
      %v1687 = vand.u32 %v1686, 4294901760
      %1688 = vmatmul.f32.gmra.mxu0 %v1687
      %v1689 = vpop.f32.mrf.mxu0
      %v1690 = vadd.f32 %v1579, %v1689
      %v1691 = vand.u32 %v1215, 4294901760
      %v1692 = vsub.f32 %v1215, %v1691
      %v1693 = vand.u32 %v1692, 4294901760
      %1694 = vmatmul.f32.gmra.mxu0 %v1693
      %v1695 = vpop.f32.mrf.mxu0
      %v1696 = vadd.f32 %v1584, %v1695
      %v1697 = vand.u32 %v1218, 4294901760
      %v1698 = vsub.f32 %v1218, %v1697
      %v1699 = vand.u32 %v1698, 4294901760
      %1700 = vmatmul.f32.gmra.mxu0 %v1699
      %v1701 = vpop.f32.mrf.mxu0
      %v1702 = vadd.f32 %v1589, %v1701
      %v1703 = vand.u32 %v1221, 4294901760
      %v1704 = vsub.f32 %v1221, %v1703
      %v1705 = vand.u32 %v1704, 4294901760
      %1706 = vmatmul.f32.gmra.mxu0 %v1705
      %v1707 = vpop.f32.mrf.mxu0
      %v1708 = vadd.f32 %v1594, %v1707
      %v1709 = vand.u32 %v1224, 4294901760
      %v1710 = vsub.f32 %v1224, %v1709
      %v1711 = vand.u32 %v1710, 4294901760
      %1712 = vmatmul.f32.gmra.mxu0 %v1711
      %v1713 = vpop.f32.mrf.mxu0
      %v1714 = vadd.f32 %v1599, %v1713
      %v1715 = vand.u32 %v1227, 4294901760
      %v1716 = vsub.f32 %v1227, %v1715
      %v1717 = vand.u32 %v1716, 4294901760
      %1718 = vmatmul.f32.gmra.mxu0 %v1717
      %v1719 = vpop.f32.mrf.mxu0
      %v1720 = vadd.f32 %v1604, %v1719
      %v1721 = vand.u32 %v1230, 4294901760
      %v1722 = vsub.f32 %v1230, %v1721
      %v1723 = vand.u32 %v1722, 4294901760
      %1724 = vmatmul.f32.gmra.mxu0 %v1723
      %v1725 = vpop.f32.mrf.mxu0
      %v1726 = vadd.f32 %v1609, %v1725
      %v1727 = vand.u32 %v1233, 4294901760
      %v1728 = vsub.f32 %v1233, %v1727
      %v1729 = vand.u32 %v1728, 4294901760
      %1730 = vmatmul.f32.gmra.mxu0 %v1729
      %v1731 = vpop.f32.mrf.mxu0
      %v1732 = vadd.f32 %v1614, %v1731
      %v1733 = vand.u32 %v1236, 4294901760
      %v1734 = vsub.f32 %v1236, %v1733
      %v1735 = vand.u32 %v1734, 4294901760
      %1736 = vmatmul.f32.gmra.mxu0 %v1735
      %v1737 = vpop.f32.mrf.mxu0
      %v1738 = vadd.f32 %v1619, %v1737
      %v1739 = vand.u32 %v1239, 4294901760
      %v1740 = vsub.f32 %v1239, %v1739
      %v1741 = vand.u32 %v1740, 4294901760
      %1742 = vmatmul.f32.gmra.mxu0 %v1741
      %v1743 = vpop.f32.mrf.mxu0
      %v1744 = vadd.f32 %v1624, %v1743
      %v1745 = vand.u32 %v1242, 4294901760
      %v1746 = vsub.f32 %v1242, %v1745
      %v1747 = vand.u32 %v1746, 4294901760
      %1748 = vmatmul.f32.gmra.mxu0 %v1747
      %v1749 = vpop.f32.mrf.mxu0
      %v1750 = vadd.f32 %v1629, %v1749
      %1751 = vdwg.mxu0
      %1752 = vmatpush.msra.mxu0 0.0
      %1753 = vmatpush.msra.mxu0 0.0
      %1754 = vmatpush.msra.mxu0 0.0
      %1755 = vmatpush.msra.mxu0 0.0
      %1756 = vmatpush.msra.mxu0 0.0
      %1757 = vmatpush.msra.mxu0 0.0
      %1758 = vmatpush.msra.mxu0 0.0
      %1759 = vmatpush.msra.mxu0 0.0
      %v1760 = vand.u32 %v218, 4294901760
      %v1761 = vsub.f32 %v218, %v1760
      %v1762 = vand.u32 %v1761, 4294901760
      %1763 = vmatpush.msra.mxu0 %v1762
      %v1764 = vand.u32 %v217, 4294901760
      %v1765 = vsub.f32 %v217, %v1764
      %v1766 = vand.u32 %v1765, 4294901760
      %1767 = vmatpush.msra.mxu0 %v1766
      %v1768 = vand.u32 %v216, 4294901760
      %v1769 = vsub.f32 %v216, %v1768
      %v1770 = vand.u32 %v1769, 4294901760
      %1771 = vmatpush.msra.mxu0 %v1770
      %v1772 = vand.u32 %v215, 4294901760
      %v1773 = vsub.f32 %v215, %v1772
      %v1774 = vand.u32 %v1773, 4294901760
      %1775 = vmatpush.msra.mxu0 %v1774
      %v1776 = vand.u32 %v214, 4294901760
      %v1777 = vsub.f32 %v214, %v1776
      %v1778 = vand.u32 %v1777, 4294901760
      %1779 = vmatpush.msra.mxu0 %v1778
      %v1780 = vand.u32 %v213, 4294901760
      %v1781 = vsub.f32 %v213, %v1780
      %v1782 = vand.u32 %v1781, 4294901760
      %1783 = vmatpush.msra.mxu0 %v1782
      %v1784 = vand.u32 %v212, 4294901760
      %v1785 = vsub.f32 %v212, %v1784
      %v1786 = vand.u32 %v1785, 4294901760
      %1787 = vmatpush.msra.mxu0 %v1786
      %v1788 = vand.u32 %v211, 4294901760
      %v1789 = vsub.f32 %v211, %v1788
      %v1790 = vand.u32 %v1789, 4294901760
      %1791 = vmatpush.msra.mxu0 %v1790
      %v1792 = vand.u32 %v1197, 4294901760
      %1793 = vmatmul.f32.gmra.mxu0 %v1792
      %v1794 = vpop.f32.mrf.mxu0
      %v1795 = vadd.f32 %v1660, %v1794
      %v1796 = vand.u32 %v1200, 4294901760
      %1797 = vmatmul.f32.gmra.mxu0 %v1796
      %v1798 = vpop.f32.mrf.mxu0
      %v1799 = vadd.f32 %v1666, %v1798
      %v1800 = vand.u32 %v1203, 4294901760
      %1801 = vmatmul.f32.gmra.mxu0 %v1800
      %v1802 = vpop.f32.mrf.mxu0
      %v1803 = vadd.f32 %v1672, %v1802
      %v1804 = vand.u32 %v1206, 4294901760
      %1805 = vmatmul.f32.gmra.mxu0 %v1804
      %v1806 = vpop.f32.mrf.mxu0
      %v1807 = vadd.f32 %v1678, %v1806
      %v1808 = vand.u32 %v1209, 4294901760
      %1809 = vmatmul.f32.gmra.mxu0 %v1808
      %v1810 = vpop.f32.mrf.mxu0
      %v1811 = vadd.f32 %v1684, %v1810
      %v1812 = vand.u32 %v1212, 4294901760
      %1813 = vmatmul.f32.gmra.mxu0 %v1812
      %v1814 = vpop.f32.mrf.mxu0
      %v1815 = vadd.f32 %v1690, %v1814
      %v1816 = vand.u32 %v1215, 4294901760
      %1817 = vmatmul.f32.gmra.mxu0 %v1816
      %v1818 = vpop.f32.mrf.mxu0
      %v1819 = vadd.f32 %v1696, %v1818
      %v1820 = vand.u32 %v1218, 4294901760
      %1821 = vmatmul.f32.gmra.mxu0 %v1820
      %v1822 = vpop.f32.mrf.mxu0
      %v1823 = vadd.f32 %v1702, %v1822
      %v1824 = vand.u32 %v1221, 4294901760
      %1825 = vmatmul.f32.gmra.mxu0 %v1824
      %v1826 = vpop.f32.mrf.mxu0
      %v1827 = vadd.f32 %v1708, %v1826
      %v1828 = vand.u32 %v1224, 4294901760
      %1829 = vmatmul.f32.gmra.mxu0 %v1828
      %v1830 = vpop.f32.mrf.mxu0
      %v1831 = vadd.f32 %v1714, %v1830
      %v1832 = vand.u32 %v1227, 4294901760
      %1833 = vmatmul.f32.gmra.mxu0 %v1832
      %v1834 = vpop.f32.mrf.mxu0
      %v1835 = vadd.f32 %v1720, %v1834
      %v1836 = vand.u32 %v1230, 4294901760
      %1837 = vmatmul.f32.gmra.mxu0 %v1836
      %v1838 = vpop.f32.mrf.mxu0
      %v1839 = vadd.f32 %v1726, %v1838
      %v1840 = vand.u32 %v1233, 4294901760
      %1841 = vmatmul.f32.gmra.mxu0 %v1840
      %v1842 = vpop.f32.mrf.mxu0
      %v1843 = vadd.f32 %v1732, %v1842
      %v1844 = vand.u32 %v1236, 4294901760
      %1845 = vmatmul.f32.gmra.mxu0 %v1844
      %v1846 = vpop.f32.mrf.mxu0
      %v1847 = vadd.f32 %v1738, %v1846
      %v1848 = vand.u32 %v1239, 4294901760
      %1849 = vmatmul.f32.gmra.mxu0 %v1848
      %v1850 = vpop.f32.mrf.mxu0
      %v1851 = vadd.f32 %v1744, %v1850
      %v1852 = vand.u32 %v1242, 4294901760
      %1853 = vmatmul.f32.gmra.mxu0 %v1852
      %v1854 = vpop.f32.mrf.mxu0
      %v1855 = vadd.f32 %v1750, %v1854
      %1856 = vdwg.mxu0
      %1857 = vmatpush.msra.mxu0 0.0
      %1858 = vmatpush.msra.mxu0 0.0
      %1859 = vmatpush.msra.mxu0 0.0
      %1860 = vmatpush.msra.mxu0 0.0
      %1861 = vmatpush.msra.mxu0 0.0
      %1862 = vmatpush.msra.mxu0 0.0
      %1863 = vmatpush.msra.mxu0 0.0
      %1864 = vmatpush.msra.mxu0 0.0
      %v1865 = vand.u32 %v218, 4294901760
      %1866 = vmatpush.msra.mxu0 %v1865
      %v1867 = vand.u32 %v217, 4294901760
      %1868 = vmatpush.msra.mxu0 %v1867
      %v1869 = vand.u32 %v216, 4294901760
      %1870 = vmatpush.msra.mxu0 %v1869
      %v1871 = vand.u32 %v215, 4294901760
      %1872 = vmatpush.msra.mxu0 %v1871
      %v1873 = vand.u32 %v214, 4294901760
      %1874 = vmatpush.msra.mxu0 %v1873
      %v1875 = vand.u32 %v213, 4294901760
      %1876 = vmatpush.msra.mxu0 %v1875
      %v1877 = vand.u32 %v212, 4294901760
      %1878 = vmatpush.msra.mxu0 %v1877
      %v1879 = vand.u32 %v211, 4294901760
      %1880 = vmatpush.msra.mxu0 %v1879
      %v1881 = vand.u32 %v1197, 4294901760
      %1882 = vmatmul.f32.gmra.mxu0 %v1881
      %v1883 = vpop.f32.mrf.mxu0
      %v1884 = vadd.f32 %v1795, %v1883
      %v1885 = vand.u32 %v1200, 4294901760
      %1886 = vmatmul.f32.gmra.mxu0 %v1885
      %v1887 = vpop.f32.mrf.mxu0
      %v1888 = vadd.f32 %v1799, %v1887
      %v1889 = vand.u32 %v1203, 4294901760
      %1890 = vmatmul.f32.gmra.mxu0 %v1889
      %v1891 = vpop.f32.mrf.mxu0
      %v1892 = vadd.f32 %v1803, %v1891
      %v1893 = vand.u32 %v1206, 4294901760
      %1894 = vmatmul.f32.gmra.mxu0 %v1893
      %v1895 = vpop.f32.mrf.mxu0
      %v1896 = vadd.f32 %v1807, %v1895
      %v1897 = vand.u32 %v1209, 4294901760
      %1898 = vmatmul.f32.gmra.mxu0 %v1897
      %v1899 = vpop.f32.mrf.mxu0
      %v1900 = vadd.f32 %v1811, %v1899
      %v1901 = vand.u32 %v1212, 4294901760
      %1902 = vmatmul.f32.gmra.mxu0 %v1901
      %v1903 = vpop.f32.mrf.mxu0
      %v1904 = vadd.f32 %v1815, %v1903
      %v1905 = vand.u32 %v1215, 4294901760
      %1906 = vmatmul.f32.gmra.mxu0 %v1905
      %v1907 = vpop.f32.mrf.mxu0
      %v1908 = vadd.f32 %v1819, %v1907
      %v1909 = vand.u32 %v1218, 4294901760
      %1910 = vmatmul.f32.gmra.mxu0 %v1909
      %v1911 = vpop.f32.mrf.mxu0
      %v1912 = vadd.f32 %v1823, %v1911
      %v1913 = vand.u32 %v1221, 4294901760
      %1914 = vmatmul.f32.gmra.mxu0 %v1913
      %v1915 = vpop.f32.mrf.mxu0
      %v1916 = vadd.f32 %v1827, %v1915
      %v1917 = vand.u32 %v1224, 4294901760
      %1918 = vmatmul.f32.gmra.mxu0 %v1917
      %v1919 = vpop.f32.mrf.mxu0
      %v1920 = vadd.f32 %v1831, %v1919
      %v1921 = vand.u32 %v1227, 4294901760
      %1922 = vmatmul.f32.gmra.mxu0 %v1921
      %v1923 = vpop.f32.mrf.mxu0
      %v1924 = vadd.f32 %v1835, %v1923
      %v1925 = vand.u32 %v1230, 4294901760
      %1926 = vmatmul.f32.gmra.mxu0 %v1925
      %v1927 = vpop.f32.mrf.mxu0
      %v1928 = vadd.f32 %v1839, %v1927
      %v1929 = vand.u32 %v1233, 4294901760
      %1930 = vmatmul.f32.gmra.mxu0 %v1929
      %v1931 = vpop.f32.mrf.mxu0
      %v1932 = vadd.f32 %v1843, %v1931
      %v1933 = vand.u32 %v1236, 4294901760
      %1934 = vmatmul.f32.gmra.mxu0 %v1933
      %v1935 = vpop.f32.mrf.mxu0
      %v1936 = vadd.f32 %v1847, %v1935
      %v1937 = vand.u32 %v1239, 4294901760
      %1938 = vmatmul.f32.gmra.mxu0 %v1937
      %v1939 = vpop.f32.mrf.mxu0
      %v1940 = vadd.f32 %v1851, %v1939
      %v1941 = vand.u32 %v1242, 4294901760
      %1942 = vmatmul.f32.gmra.mxu0 %v1941
      %v1943 = vpop.f32.mrf.mxu0
      %v1944 = vadd.f32 %v1855, %v1943
      %1945 = vdwg.mxu0
      %1962 = vrot.lane.b32.xlu0 %v1884, 7
      %v1963 = vpop.permute.xlu0 %1962
      %1964 = vrot.lane.b32.xlu0 %v1888, 7
      %v1965 = vpop.permute.xlu0 %1964
      %1966 = vrot.lane.b32.xlu0 %v1892, 7
      %v1967 = vpop.permute.xlu0 %1966
      %1968 = vrot.lane.b32.xlu0 %v1896, 7
      %v1969 = vpop.permute.xlu0 %1968
      %1970 = vrot.lane.b32.xlu0 %v1900, 7
      %v1971 = vpop.permute.xlu0 %1970
      %1972 = vrot.lane.b32.xlu0 %v1904, 7
      %v1973 = vpop.permute.xlu0 %1972
      %1974 = vrot.lane.b32.xlu0 %v1908, 7
      %v1975 = vpop.permute.xlu0 %1974
      %1976 = vrot.lane.b32.xlu0 %v1912, 7
      %v1977 = vpop.permute.xlu0 %1976
      %1978 = vrot.lane.b32.xlu0 %v1916, 7
      %v1979 = vpop.permute.xlu0 %1978
      %1980 = vrot.lane.b32.xlu0 %v1920, 7
      %v1981 = vpop.permute.xlu0 %1980
      %1982 = vrot.lane.b32.xlu0 %v1924, 7
      %v1983 = vpop.permute.xlu0 %1982
      %1984 = vrot.lane.b32.xlu0 %v1928, 7
      %v1985 = vpop.permute.xlu0 %1984
      %1986 = vrot.lane.b32.xlu0 %v1932, 7
      %v1987 = vpop.permute.xlu0 %1986
      %1988 = vrot.lane.b32.xlu0 %v1936, 7
      %v1989 = vpop.permute.xlu0 %1988
      %1990 = vrot.lane.b32.xlu0 %v1940, 7
      %v1991 = vpop.permute.xlu0 %1990
      %1992 = vrot.lane.b32.xlu0 %v1944, 7
      %v1993 = vpop.permute.xlu0 %1992
      %vm2010 = vcmask 56320
      %v2011 = vsel %vm2010, %v1134, %v1963
      %v2012 = vsel %vm2010, %v1138, %v1965
      %v2013 = vsel %vm2010, %v1142, %v1967
      %v2014 = vsel %vm2010, %v1146, %v1969
      %v2015 = vsel %vm2010, %v1150, %v1971
      %v2016 = vsel %vm2010, %v1154, %v1973
      %v2017 = vsel %vm2010, %v1158, %v1975
      %v2018 = vsel %vm2010, %v1162, %v1977
      %v2019 = vsel %vm2010, %v1166, %v1979
      %v2020 = vsel %vm2010, %v1170, %v1981
      %v2021 = vsel %vm2010, %v1174, %v1983
      %v2022 = vsel %vm2010, %v1178, %v1985
      %v2023 = vsel %vm2010, %v1182, %v1987
      %v2024 = vsel %vm2010, %v1186, %v1989
      %v2025 = vsel %vm2010, %v1190, %v1991
      %v2026 = vsel %vm2010, %v1194, %v1993
      %vm2027 = vcmask 89088
      %2028 = vst.msk [vmem:[%s210] sm:$0xff] %vm2027, %v2011
      %2029 = vst.msk [vmem:[%s210 + $0x8] sm:$0xff] %vm2027, %v2012
      %2030 = vst.msk [vmem:[%s210 + $0x10] sm:$0xff] %vm2027, %v2013
      %2031 = vst.msk [vmem:[%s210 + $0x18] sm:$0xff] %vm2027, %v2014
      %2032 = vst.msk [vmem:[%s210 + $0x20] sm:$0xff] %vm2027, %v2015
      %2033 = vst.msk [vmem:[%s210 + $0x28] sm:$0xff] %vm2027, %v2016
      %2034 = vst.msk [vmem:[%s210 + $0x30] sm:$0xff] %vm2027, %v2017
      %2035 = vst.msk [vmem:[%s210 + $0x38] sm:$0xff] %vm2027, %v2018
      %2036 = vst.msk [vmem:[%s210 + $0x40] sm:$0xff] %vm2027, %v2019
      %2037 = vst.msk [vmem:[%s210 + $0x48] sm:$0xff] %vm2027, %v2020
      %2038 = vst.msk [vmem:[%s210 + $0x50] sm:$0xff] %vm2027, %v2021
      %2039 = vst.msk [vmem:[%s210 + $0x58] sm:$0xff] %vm2027, %v2022
      %2040 = vst.msk [vmem:[%s210 + $0x60] sm:$0xff] %vm2027, %v2023
      %2041 = vst.msk [vmem:[%s210 + $0x68] sm:$0xff] %vm2027, %v2024
      %2042 = vst.msk [vmem:[%s210 + $0x70] sm:$0xff] %vm2027, %v2025
      %2043 = vst.msk [vmem:[%s210 + $0x78] sm:$0xff] %vm2027, %v2026
      %p2044 = scmp.lt.s32.totalorder %s14, 1
      %s2045 = scalar_select %p2044, %s14, 1
      %s2046 = smul.addr %s2045, 16
      %s2047 = smul.addr %s2046, 8
      %s2048 = scalar_lea.vmem %s3, %s2047
      // Predicated region
      $region33: #{local_grouper.3} parent=31 // pred_check
        %p2049 = pneg %p110
      $region34: #{local_grouper.3} parent=31 // pred_check_branch
        %2051 = sbr.rel (%p2049) target = $region36
      $region35: #{local_grouper.3} parent=31 // pred_region
        _
      $region36: #{local_grouper.3} parent=31 // pred_fallthru
        _
    $region32: #{local_grouper.3} parent=5 // pred_fallthru
      _
    %p2052 = scmp.le.s32.totalorder 2, %s9
    // Predicated region
    $region37: #{local_grouper.3} parent=5 // pred_check
      %p2053 = pneg %p2052
    $region38: #{local_grouper.3} parent=5 // pred_check_branch
      %2055 = sbr.rel (%p2053) target = $region40
    $region39: #{local_grouper.3} parent=5 // pred_region
      %s2056 = ssub.s32 %s9, 2
      // Predicated region
      $region41: #{local_grouper.3} parent=39 // pred_check
        %p2057 = pneg %p116
      $region42: #{local_grouper.3} parent=39 // pred_check_branch
        %2059 = sbr.rel (%p2057) target = $region44
      $region43: #{local_grouper.3} parent=39 // pred_region
        %p2060 = scmp.lt.s32.totalorder %s15, 1
        %s2061 = scalar_select %p2060, %s15, 1
        %s2062 = smul.addr %s2061, 16
        %s2063 = smul.addr %s2062, 8
        %s2064 = scalar_lea.vmem %s3, %s2063
      $region44: #{local_grouper.3} parent=39 // pred_fallthru
        _
    $region40: #{local_grouper.3} parent=5 // pred_fallthru
      _
  $region6: #{local_grouper.3} parent=0 // loop_footer
    %s13 = sadd.s32 1, %s9
  $region7: #{local_grouper.3} parent=0 // loop_footer_branch
    %8 = sbr.rel target = $region3
  $region8: #{local_grouper.3} parent=0 // loop_exit
    _

</llo_original>
